<compile_context>
chip_gen: v6e
topology: v6e:2x2x1
jax: 0.10.0
libtpu: 0.0.40
codegen_flags: <defaults>
</compile_context>

<pallas_src>
import math

import jax
import jax.numpy as jnp
from jax.experimental import pallas as pl
from jax.experimental.pallas import tpu as pltpu

D_MODEL = 32
HEADS = 4
D_K = D_MODEL // HEADS
D_FF = 2048          # nn.Linear(d_model, d_ff=2048) default
EPS = 1e-6
NEG_INF = -1000000000.0


# --------------------------- in-kernel helpers ---------------------------
def _layer_norm(x, alpha, bias):
    """PyTorch `Norm`: alpha * (x - mean) / (std_unbiased + eps) + bias."""
    d = x.shape[-1]
    mean = jnp.mean(x, axis=-1, keepdims=True)
    xc = x - mean
    var = jnp.sum(xc * xc, axis=-1, keepdims=True) * (1.0 / (d - 1))  # torch.std (N-1)
    inv = pl.reciprocal(jnp.sqrt(var) + EPS, approx=False)
    return alpha * xc * inv + bias


def _split_heads(x2d, col0, n_rows):
    """(n_rows, D) lane slab -> (HEADS, n_rows, D_K) head-batched tensor."""
    return jnp.stack(
        [x2d[:, col0 + h * D_K: col0 + (h + 1) * D_K] for h in range(HEADS)],
        axis=0)


def _mha(q2d, kv2d, mask_bias, wo, bo, Sq, Sk):
    """Multi-head attention core + single output projection.

    q2d      : (Sq, D)  projected queries (1/sqrt(d_k) already folded into wq)
    kv2d     : (Sk, 2D) projected keys|values
    mask_bias: (Sq, Sk) additive float32 bias (0 where kept, -1e9 where masked)
    Returns (Sq, D) = concat(heads) @ wo + bo.
    """
    q3 = _split_heads(q2d, 0, Sq)                 # (H, Sq, d_k)
    k3 = _split_heads(kv2d, 0, Sk)                # (H, Sk, d_k)
    v3 = _split_heads(kv2d, D_MODEL, Sk)          # (H, Sk, d_k)

    # batched (over heads) score / value contractions
    s = jnp.einsum('hqd,hkd->hqk', q3, k3,
                   preferred_element_type=jnp.float32)          # (H, Sq, Sk)
    s = s + mask_bias                                           # broadcast over heads
    mx = jnp.max(s, axis=-1, keepdims=True)
    e = jnp.exp(s - mx)
    p = e * pl.reciprocal(jnp.sum(e, axis=-1, keepdims=True), approx=False)
    o3 = jnp.einsum('hqk,hkd->hqd', p, v3,
                    preferred_element_type=jnp.float32)         # (H, Sq, d_k)

    concat = jnp.concatenate([o3[h] for h in range(HEADS)], axis=-1)   # (Sq, D)
    return jnp.dot(concat, wo, preferred_element_type=jnp.float32) + bo


# --------------------------- fused decoder-layer kernel ---------------------------
def _decoder_layer_kernel(x_ref, e_ref, trg_mask_ref, src_mask_ref,
                          n1a_ref, n1b_ref, n2a_ref, n2b_ref, n3a_ref, n3b_ref,
                          wqkv1_ref, bqkv1_ref, wo1_ref, bo1_ref,
                          wq2_ref, bq2_ref, wkv2_ref, bkv2_ref, wo2_ref, bo2_ref,
                          w1_ref, b1_ref, w2_ref, b2_ref,
                          o_ref):
    St, D = x_ref.shape
    Ss = e_ref.shape[0]

    x = x_ref[...]                     # (St, D) float32 (no redundant cast)
    e = e_ref[...]                     # (Ss, D) float32

    # Additive mask biases, computed once per attention call.
    trg_bias = jnp.broadcast_to(
        jnp.where(trg_mask_ref[...] == 0, NEG_INF, 0.0).astype(jnp.float32),
        (St, St))
    src_bias = jnp.broadcast_to(
        jnp.where(src_mask_ref[...] == 0, NEG_INF, 0.0).astype(jnp.float32),
        (St, Ss))

    # ---- sublayer 1: x = x + attn1(norm1(x), trg_mask)   (dropout = identity) ----
    x2 = _layer_norm(x, n1a_ref[...], n1b_ref[...])
    qkv = jnp.dot(x2, wqkv1_ref[...],
                  preferred_element_type=jnp.float32) + bqkv1_ref[...]   # (St, 3D)
    x = x + _mha(qkv[:, :D], qkv[:, D:], trg_bias,
                 wo1_ref[...], bo1_ref[...], St, St)

    # ---- sublayer 2: x = x + attn2(norm2(x), e_outputs, src_mask) ----
    x2 = _layer_norm(x, n2a_ref[...], n2b_ref[...])
    q = jnp.dot(x2, wq2_ref[...],
                preferred_element_type=jnp.float32) + bq2_ref[...]        # (St, D)
    kv = jnp.dot(e, wkv2_ref[...],
                 preferred_element_type=jnp.float32) + bkv2_ref[...]      # (Ss, 2D)
    x = x + _mha(q, kv, src_bias, wo2_ref[...], bo2_ref[...], St, Ss)

    # ---- sublayer 3: x = x + FFN(norm3(x)) ; bf16 weights, f32 accumulation ----
    x2 = _layer_norm(x, n3a_ref[...], n3b_ref[...])
    h = jnp.dot(x2.astype(jnp.bfloat16), w1_ref[...],
                preferred_element_type=jnp.float32) + b1_ref[...]
    h = jnp.maximum(h, 0.0).astype(jnp.bfloat16)
    x = x + jnp.dot(h, w2_ref[...],
                    preferred_element_type=jnp.float32) + b2_ref[...]

    o_ref[...] = x.astype(o_ref.dtype)


# ------------------------------- wrapper -------------------------------
def decoder_layer(params, x, e_outputs, src_mask, trg_mask):
    B, St, D = x.shape
    Ss = e_outputs.shape[1]
    a1, a2, ff = params['attn1'], params['attn2'], params['ff']

    # Flatten to lane-dense 2-D slabs in the wrapper (free layout plumbing).
    x2d = x.reshape(B * St, D)
    e2d = e_outputs.reshape(B * Ss, D)

    weights = (
        params['n1_a'], params['n1_b'],
        params['n2_a'], params['n2_b'],
        params['n3_a'], params['n3_b'],
        a1['wqkv'], a1['bqkv'], a1['wo'], a1['bo'],
        a2['wq'], a2['bq'], a2['wkv'], a2['bkv'], a2['wo'], a2['bo'],
        ff['w1'], ff['b1'], ff['w2'], ff['b2'],
    )

    # Weights: full block, constant index_map -> stay resident across grid steps.
    weight_specs = [pl.BlockSpec(w.shape, lambda b: (0, 0)) for w in weights]

    in_specs = [
        pl.BlockSpec((St, D), lambda b: (b, 0)),                       # x rows of batch b
        pl.BlockSpec((Ss, D), lambda b: (b, 0)),                       # encoder rows of batch b
        pl.BlockSpec((None,) + trg_mask.shape[1:], lambda b: (b, 0, 0)),
        pl.BlockSpec((None,) + src_mask.shape[1:], lambda b: (b, 0, 0)),
    ] + weight_specs

    # Advisory cost estimate so XLA schedules around the custom call sensibly.
    matmul_flops = 2 * B * (
        St * D * 3 * D          # fused QKV
        + 2 * St * St * D       # self-attn scores + PV
        + St * D * D            # self-attn out proj
        + St * D * D            # cross Q
        + Ss * D * 2 * D        # cross K|V
        + 2 * St * Ss * D       # cross scores + PV
        + St * D * D            # cross out proj
        + 2 * St * D * D_FF)    # FFN
    transcendentals = B * (HEADS * (St * St + St * Ss) + 3 * St)
    bytes_accessed = (sum(int(a.size) * a.dtype.itemsize for a in (x2d, e2d, trg_mask, src_mask) + weights)
                      + B * St * D * x.dtype.itemsize)

    out2d = pl.pallas_call(
        _decoder_layer_kernel,
        out_shape=jax.ShapeDtypeStruct((B * St, D), x.dtype),
        grid=(B,),
        in_specs=in_specs,
        out_specs=pl.BlockSpec((St, D), lambda b: (b, 0)),
        compiler_params=pltpu.CompilerParams(
            dimension_semantics=("parallel",),          # shard batch across TCs on v7x
            vmem_limit_bytes=32 * 1024 * 1024),
        cost_estimate=pl.CostEstimate(flops=matmul_flops,
                                      transcendentals=transcendentals,
                                      bytes_accessed=bytes_accessed),
    )(x2d, e2d, trg_mask, src_mask, *weights)
    return out2d.reshape(B, St, D)


# ------------------------------- parameters -------------------------------
def init_params(key):
    def lin(k, din, dout):
        k1, k2 = jax.random.split(k)
        w = 0.05 * jax.random.normal(k1, (din, dout), jnp.float32)   # (in, out) layout
        b = 0.05 * jax.random.normal(k2, (dout,), jnp.float32)
        return w, b

    keys = jax.random.split(key, 4)
    inv_sqrt_dk = 1.0 / math.sqrt(D_K)   # folded into Q projection (one-time transform)

    def mha_self(k):
        kq, kk, kv, ko = jax.random.split(k, 4)
        wq, bq = lin(kq, D_MODEL, D_MODEL)
        wk, bk = lin(kk, D_MODEL, D_MODEL)
        wv, bv = lin(kv, D_MODEL, D_MODEL)
        wo, bo = lin(ko, D_MODEL, D_MODEL)
        wq = wq * inv_sqrt_dk
        bq = bq * inv_sqrt_dk
        return dict(wqkv=jnp.concatenate([wq, wk, wv], axis=1),
                    bqkv=jnp.concatenate([bq, bk, bv]).reshape(1, 3 * D_MODEL),
                    wo=wo, bo=bo.reshape(1, D_MODEL))

    def mha_cross(k):
        kq, kk, kv, ko = jax.random.split(k, 4)
        wq, bq = lin(kq, D_MODEL, D_MODEL)
        wk, bk = lin(kk, D_MODEL, D_MODEL)
        wv, bv = lin(kv, D_MODEL, D_MODEL)
        wo, bo = lin(ko, D_MODEL, D_MODEL)
        wq = wq * inv_sqrt_dk
        bq = bq * inv_sqrt_dk
        return dict(wq=wq, bq=bq.reshape(1, D_MODEL),
                    wkv=jnp.concatenate([wk, wv], axis=1),
                    bkv=jnp.concatenate([bk, bv]).reshape(1, 2 * D_MODEL),
                    wo=wo, bo=bo.reshape(1, D_MODEL))

    w1, b1 = lin(keys[0], D_MODEL, D_FF)
    w2, b2 = lin(keys[1], D_FF, D_MODEL)

    ones = jnp.ones((1, D_MODEL), jnp.float32)
    zeros = jnp.zeros((1, D_MODEL), jnp.float32)
    return dict(
        n1_a=ones, n1_b=zeros,
        n2_a=ones, n2_b=zeros,
        n3_a=ones, n3_b=zeros,
        attn1=mha_self(keys[2]),
        attn2=mha_cross(keys[3]),
        # bf16 FFN weights: dominant DMA / MXU-feed traffic halved (accum stays f32)
        ff=dict(w1=w1.astype(jnp.bfloat16), b1=b1.reshape(1, D_FF),
                w2=w2.astype(jnp.bfloat16), b2=b2.reshape(1, D_MODEL)),
    )


if __name__ == "__main__":
    key = jax.random.PRNGKey(0)
    kx, ke, kp = jax.random.split(key, 3)

    B, S_TRG, S_SRC = 2, 8, 16
    x = jax.random.normal(kx, (B, S_TRG, D_MODEL), jnp.float32)
    e_outputs = jax.random.normal(ke, (B, S_SRC, D_MODEL), jnp.float32)

    # causal target mask (B, S_trg, S_trg); padding-style source mask (B, 1, S_src)
    trg_mask = jnp.broadcast_to(
        jnp.tril(jnp.ones((S_TRG, S_TRG), jnp.int32))[None], (B, S_TRG, S_TRG))
    src_mask = jnp.ones((B, 1, S_SRC), jnp.int32).at[1, 0, 13:].set(0)

    params = init_params(kp)
    out = decoder_layer(params, x, e_outputs, src_mask, trg_mask)
    jax.block_until_ready(out)
    assert out.shape == (B, S_TRG, D_MODEL) and out.dtype == jnp.float32
    print("KERNEL_OK")
</pallas_src>

<mosaic_0001>
module attributes {stable_mosaic.version = 11 : i64} {
  func.func @_decoder_layer_kernel(%arg0: i32, %arg1: memref<8x32xf32, #tpu.memory_space<vmem>>, %arg2: memref<16x32xf32, #tpu.memory_space<vmem>>, %arg3: memref<1x8x8xi32, #tpu.memory_space<vmem>>, %arg4: memref<1x1x16xi32, #tpu.memory_space<vmem>>, %arg5: memref<1x32xf32, #tpu.memory_space<vmem>>, %arg6: memref<1x32xf32, #tpu.memory_space<vmem>>, %arg7: memref<1x32xf32, #tpu.memory_space<vmem>>, %arg8: memref<1x32xf32, #tpu.memory_space<vmem>>, %arg9: memref<1x32xf32, #tpu.memory_space<vmem>>, %arg10: memref<1x32xf32, #tpu.memory_space<vmem>>, %arg11: memref<32x96xf32, #tpu.memory_space<vmem>>, %arg12: memref<1x96xf32, #tpu.memory_space<vmem>>, %arg13: memref<32x32xf32, #tpu.memory_space<vmem>>, %arg14: memref<1x32xf32, #tpu.memory_space<vmem>>, %arg15: memref<32x32xf32, #tpu.memory_space<vmem>>, %arg16: memref<1x32xf32, #tpu.memory_space<vmem>>, %arg17: memref<32x64xf32, #tpu.memory_space<vmem>>, %arg18: memref<1x64xf32, #tpu.memory_space<vmem>>, %arg19: memref<32x32xf32, #tpu.memory_space<vmem>>, %arg20: memref<1x32xf32, #tpu.memory_space<vmem>>, %arg21: memref<32x2048xbf16, #tpu.memory_space<vmem>>, %arg22: memref<1x2048xf32, #tpu.memory_space<vmem>>, %arg23: memref<2048x32xbf16, #tpu.memory_space<vmem>>, %arg24: memref<1x32xf32, #tpu.memory_space<vmem>>, %arg25: memref<8x32xf32, #tpu.memory_space<vmem>>) attributes {dimension_semantics = [#tpu.dimension_semantics<parallel>], iteration_bounds = array<i64: 2>, scalar_prefetch = 0 : i64, scratch_operands = 0 : i64, tpu.core_type = #tpu.core_type<tc>, window_params = [{transform_indices = @transform_0, window_bounds = array<i64: 8, 32>}, {transform_indices = @transform_1, window_bounds = array<i64: 16, 32>}, {transform_indices = @transform_2, window_bounds = array<i64: 1, 8, 8>}, {transform_indices = @transform_3, window_bounds = array<i64: 1, 1, 16>}, {pipeline_mode = #tpu.pipeline_mode<synchronous>, transform_indices = @transform_4, window_bounds = array<i64: 1, 32>}, {pipeline_mode = #tpu.pipeline_mode<synchronous>, transform_indices = @transform_5, window_bounds = array<i64: 1, 32>}, {pipeline_mode = #tpu.pipeline_mode<synchronous>, transform_indices = @transform_6, window_bounds = array<i64: 1, 32>}, {pipeline_mode = #tpu.pipeline_mode<synchronous>, transform_indices = @transform_7, window_bounds = array<i64: 1, 32>}, {pipeline_mode = #tpu.pipeline_mode<synchronous>, transform_indices = @transform_8, window_bounds = array<i64: 1, 32>}, {pipeline_mode = #tpu.pipeline_mode<synchronous>, transform_indices = @transform_9, window_bounds = array<i64: 1, 32>}, {pipeline_mode = #tpu.pipeline_mode<synchronous>, transform_indices = @transform_10, window_bounds = array<i64: 32, 96>}, {pipeline_mode = #tpu.pipeline_mode<synchronous>, transform_indices = @transform_11, window_bounds = array<i64: 1, 96>}, {pipeline_mode = #tpu.pipeline_mode<synchronous>, transform_indices = @transform_12, window_bounds = array<i64: 32, 32>}, {pipeline_mode = #tpu.pipeline_mode<synchronous>, transform_indices = @transform_13, window_bounds = array<i64: 1, 32>}, {pipeline_mode = #tpu.pipeline_mode<synchronous>, transform_indices = @transform_14, window_bounds = array<i64: 32, 32>}, {pipeline_mode = #tpu.pipeline_mode<synchronous>, transform_indices = @transform_15, window_bounds = array<i64: 1, 32>}, {pipeline_mode = #tpu.pipeline_mode<synchronous>, transform_indices = @transform_16, window_bounds = array<i64: 32, 64>}, {pipeline_mode = #tpu.pipeline_mode<synchronous>, transform_indices = @transform_17, window_bounds = array<i64: 1, 64>}, {pipeline_mode = #tpu.pipeline_mode<synchronous>, transform_indices = @transform_18, window_bounds = array<i64: 32, 32>}, {pipeline_mode = #tpu.pipeline_mode<synchronous>, transform_indices = @transform_19, window_bounds = array<i64: 1, 32>}, {pipeline_mode = #tpu.pipeline_mode<synchronous>, transform_indices = @transform_20, window_bounds = array<i64: 32, 2048>}, {pipeline_mode = #tpu.pipeline_mode<synchronous>, transform_indices = @transform_21, window_bounds = array<i64: 1, 2048>}, {pipeline_mode = #tpu.pipeline_mode<synchronous>, transform_indices = @transform_22, window_bounds = array<i64: 2048, 32>}, {pipeline_mode = #tpu.pipeline_mode<synchronous>, transform_indices = @transform_23, window_bounds = array<i64: 1, 32>}, {transform_indices = @transform_24, window_bounds = array<i64: 8, 32>}]} {
    %c0 = arith.constant 0 : index
    %c0_0 = arith.constant 0 : index
    %0 = vector.load %arg1[%c0, %c0_0] : memref<8x32xf32, #tpu.memory_space<vmem>>, vector<8x32xf32>
    %c0_1 = arith.constant 0 : index
    %c0_2 = arith.constant 0 : index
    %1 = vector.load %arg2[%c0_1, %c0_2] : memref<16x32xf32, #tpu.memory_space<vmem>>, vector<16x32xf32>
    %c0_3 = arith.constant 0 : index
    %c0_4 = arith.constant 0 : index
    %c0_5 = arith.constant 0 : index
    %2 = vector.load %arg3[%c0_3, %c0_4, %c0_5] : memref<1x8x8xi32, #tpu.memory_space<vmem>>, vector<1x8x8xi32>
    %3 = vector.shape_cast %2 : vector<1x8x8xi32> to vector<8x8xi32>
    %c0_i32 = arith.constant 0 : i32
    %4 = vector.broadcast %c0_i32 : i32 to vector<8x8xi32>
    %5 = arith.cmpi eq, %3, %4 : vector<8x8xi32>
    %cst = arith.constant -1.000000e+09 : f32
    %cst_6 = arith.constant 0.000000e+00 : f32
    %6 = vector.broadcast %cst : f32 to vector<8x8xf32>
    %7 = vector.broadcast %cst_6 : f32 to vector<8x8xf32>
    %8 = arith.select %5, %6, %7 : vector<8x8xi1>, vector<8x8xf32>
    %c0_7 = arith.constant 0 : index
    %c0_8 = arith.constant 0 : index
    %c0_9 = arith.constant 0 : index
    %9 = vector.load %arg4[%c0_7, %c0_8, %c0_9] : memref<1x1x16xi32, #tpu.memory_space<vmem>>, vector<1x1x16xi32>
    %10 = vector.shape_cast %9 : vector<1x1x16xi32> to vector<1x16xi32>
    %c0_i32_10 = arith.constant 0 : i32
    %11 = vector.broadcast %c0_i32_10 : i32 to vector<1x16xi32>
    %12 = arith.cmpi eq, %10, %11 : vector<1x16xi32>
    %cst_11 = arith.constant -1.000000e+09 : f32
    %cst_12 = arith.constant 0.000000e+00 : f32
    %13 = vector.broadcast %cst_11 : f32 to vector<1x16xf32>
    %14 = vector.broadcast %cst_12 : f32 to vector<1x16xf32>
    %15 = arith.select %12, %13, %14 : vector<1x16xi1>, vector<1x16xf32>
    %16 = vector.shape_cast %15 : vector<1x16xf32> to vector<1x16xf32>
    %17 = vector.broadcast %16 : vector<1x16xf32> to vector<8x16xf32>
    %c0_13 = arith.constant 0 : index
    %c0_14 = arith.constant 0 : index
    %18 = vector.load %arg5[%c0_13, %c0_14] : memref<1x32xf32, #tpu.memory_space<vmem>>, vector<1x32xf32>
    %c0_15 = arith.constant 0 : index
    %c0_16 = arith.constant 0 : index
    %19 = vector.load %arg6[%c0_15, %c0_16] : memref<1x32xf32, #tpu.memory_space<vmem>>, vector<1x32xf32>
    %cst_17 = arith.constant dense<0.000000e+00> : vector<8xf32>
    %20 = vector.multi_reduction <add>, %0, %cst_17 [1] : vector<8x32xf32> to vector<8xf32>
    %21 = vector.shape_cast %20 : vector<8xf32> to vector<8x1xf32>
    %cst_18 = arith.constant 3.200000e+01 : f32
    %22 = vector.broadcast %cst_18 : f32 to vector<8x1xf32>
    %23 = arith.divf %21, %22 : vector<8x1xf32>
    %24 = vector.broadcast %23 : vector<8x1xf32> to vector<8x32xf32>
    %25 = arith.subf %0, %24 : vector<8x32xf32>
    %26 = arith.mulf %25, %25 : vector<8x32xf32>
    %cst_19 = arith.constant dense<0.000000e+00> : vector<8xf32>
    %27 = vector.multi_reduction <add>, %26, %cst_19 [1] : vector<8x32xf32> to vector<8xf32>
    %28 = vector.shape_cast %27 : vector<8xf32> to vector<8x1xf32>
    %cst_20 = arith.constant 0.0322580636 : f32
    %29 = vector.broadcast %cst_20 : f32 to vector<8x1xf32>
    %30 = arith.mulf %28, %29 : vector<8x1xf32>
    %31 = math.sqrt %30 : vector<8x1xf32>
    %cst_21 = arith.constant 9.99999997E-7 : f32
    %32 = vector.broadcast %cst_21 : f32 to vector<8x1xf32>
    %33 = arith.addf %31, %32 : vector<8x1xf32>
    %34 = tpu.reciprocal %33 : vector<8x1xf32> -> vector<8x1xf32>
    %35 = vector.broadcast %18 : vector<1x32xf32> to vector<8x32xf32>
    %36 = arith.mulf %35, %25 : vector<8x32xf32>
    %37 = vector.broadcast %34 : vector<8x1xf32> to vector<8x32xf32>
    %38 = arith.mulf %36, %37 : vector<8x32xf32>
    %39 = vector.broadcast %19 : vector<1x32xf32> to vector<8x32xf32>
    %40 = arith.addf %38, %39 : vector<8x32xf32>
    %c0_22 = arith.constant 0 : index
    %c0_23 = arith.constant 0 : index
    %41 = vector.load %arg11[%c0_22, %c0_23] : memref<32x96xf32, #tpu.memory_space<vmem>>, vector<32x96xf32>
    %cst_24 = arith.constant dense<0.000000e+00> : vector<8x96xf32>
    %42 = tpu.matmul %40, %41, %cst_24 {dimension_numbers = #tpu.dot_dimension_numbers<[1], [0], [0], [1], [0, 0, 1, 1], [], []>} : vector<8x32xf32>, vector<32x96xf32>, vector<8x96xf32> -> vector<8x96xf32>
    %c0_25 = arith.constant 0 : index
    %c0_26 = arith.constant 0 : index
    %43 = vector.load %arg12[%c0_25, %c0_26] : memref<1x96xf32, #tpu.memory_space<vmem>>, vector<1x96xf32>
    %44 = vector.broadcast %43 : vector<1x96xf32> to vector<8x96xf32>
    %45 = arith.addf %42, %44 : vector<8x96xf32>
    %46 = vector.extract_strided_slice %45 {offsets = [0, 0], sizes = [8, 32], strides = [1, 1]} : vector<8x96xf32> to vector<8x32xf32>
    %47 = vector.extract_strided_slice %45 {offsets = [0, 32], sizes = [8, 64], strides = [1, 1]} : vector<8x96xf32> to vector<8x64xf32>
    %c0_27 = arith.constant 0 : index
    %c0_28 = arith.constant 0 : index
    %48 = vector.load %arg13[%c0_27, %c0_28] : memref<32x32xf32, #tpu.memory_space<vmem>>, vector<32x32xf32>
    %c0_29 = arith.constant 0 : index
    %c0_30 = arith.constant 0 : index
    %49 = vector.load %arg14[%c0_29, %c0_30] : memref<1x32xf32, #tpu.memory_space<vmem>>, vector<1x32xf32>
    %50 = vector.extract_strided_slice %46 {offsets = [0, 0], sizes = [8, 8], strides = [1, 1]} : vector<8x32xf32> to vector<8x8xf32>
    %51 = vector.extract_strided_slice %46 {offsets = [0, 8], sizes = [8, 8], strides = [1, 1]} : vector<8x32xf32> to vector<8x8xf32>
    %52 = vector.extract_strided_slice %46 {offsets = [0, 16], sizes = [8, 8], strides = [1, 1]} : vector<8x32xf32> to vector<8x8xf32>
    %53 = vector.extract_strided_slice %46 {offsets = [0, 24], sizes = [8, 8], strides = [1, 1]} : vector<8x32xf32> to vector<8x8xf32>
    %54 = vector.shape_cast %50 : vector<8x8xf32> to vector<1x8x8xf32>
    %55 = vector.shape_cast %51 : vector<8x8xf32> to vector<1x8x8xf32>
    %56 = vector.shape_cast %52 : vector<8x8xf32> to vector<1x8x8xf32>
    %57 = vector.shape_cast %53 : vector<8x8xf32> to vector<1x8x8xf32>
    %58 = tpu.concatenate %54, %55, %56, %57 in 0 : vector<1x8x8xf32>, vector<1x8x8xf32>, vector<1x8x8xf32>, vector<1x8x8xf32> -> vector<4x8x8xf32>
    %59 = vector.extract_strided_slice %47 {offsets = [0, 0], sizes = [8, 8], strides = [1, 1]} : vector<8x64xf32> to vector<8x8xf32>
    %60 = vector.extract_strided_slice %47 {offsets = [0, 8], sizes = [8, 8], strides = [1, 1]} : vector<8x64xf32> to vector<8x8xf32>
    %61 = vector.extract_strided_slice %47 {offsets = [0, 16], sizes = [8, 8], strides = [1, 1]} : vector<8x64xf32> to vector<8x8xf32>
    %62 = vector.extract_strided_slice %47 {offsets = [0, 24], sizes = [8, 8], strides = [1, 1]} : vector<8x64xf32> to vector<8x8xf32>
    %63 = vector.shape_cast %59 : vector<8x8xf32> to vector<1x8x8xf32>
    %64 = vector.shape_cast %60 : vector<8x8xf32> to vector<1x8x8xf32>
    %65 = vector.shape_cast %61 : vector<8x8xf32> to vector<1x8x8xf32>
    %66 = vector.shape_cast %62 : vector<8x8xf32> to vector<1x8x8xf32>
    %67 = tpu.concatenate %63, %64, %65, %66 in 0 : vector<1x8x8xf32>, vector<1x8x8xf32>, vector<1x8x8xf32>, vector<1x8x8xf32> -> vector<4x8x8xf32>
    %68 = vector.extract_strided_slice %47 {offsets = [0, 32], sizes = [8, 8], strides = [1, 1]} : vector<8x64xf32> to vector<8x8xf32>
    %69 = vector.extract_strided_slice %47 {offsets = [0, 40], sizes = [8, 8], strides = [1, 1]} : vector<8x64xf32> to vector<8x8xf32>
    %70 = vector.extract_strided_slice %47 {offsets = [0, 48], sizes = [8, 8], strides = [1, 1]} : vector<8x64xf32> to vector<8x8xf32>
    %71 = vector.extract_strided_slice %47 {offsets = [0, 56], sizes = [8, 8], strides = [1, 1]} : vector<8x64xf32> to vector<8x8xf32>
    %72 = vector.shape_cast %68 : vector<8x8xf32> to vector<1x8x8xf32>
    %73 = vector.shape_cast %69 : vector<8x8xf32> to vector<1x8x8xf32>
    %74 = vector.shape_cast %70 : vector<8x8xf32> to vector<1x8x8xf32>
    %75 = vector.shape_cast %71 : vector<8x8xf32> to vector<1x8x8xf32>
    %76 = tpu.concatenate %72, %73, %74, %75 in 0 : vector<1x8x8xf32>, vector<1x8x8xf32>, vector<1x8x8xf32>, vector<1x8x8xf32> -> vector<4x8x8xf32>
    "tpu.trace_start"() <{level = 10 : i32, message = "hqd,hkd->hqk"}> : () -> ()
    %cst_31 = arith.constant dense<0.000000e+00> : vector<4x8x8xf32>
    %77 = tpu.matmul %58, %67, %cst_31 {dimension_numbers = #tpu.dot_dimension_numbers<[2], [2], [1], [1], [0, 0, 0, 1, 1, 1], [0], [0]>} : vector<4x8x8xf32>, vector<4x8x8xf32>, vector<4x8x8xf32> -> vector<4x8x8xf32>
    "tpu.trace_stop"() : () -> ()
    %78 = vector.shape_cast %8 : vector<8x8xf32> to vector<1x8x8xf32>
    %79 = vector.broadcast %78 : vector<1x8x8xf32> to vector<4x8x8xf32>
    %80 = arith.addf %77, %79 : vector<4x8x8xf32>
    %cst_32 = arith.constant dense<0xFF800000> : vector<4x8xf32>
    %81 = vector.multi_reduction <maximumf>, %80, %cst_32 [2] : vector<4x8x8xf32> to vector<4x8xf32>
    %82 = vector.shape_cast %81 : vector<4x8xf32> to vector<4x8x1xf32>
    %83 = vector.broadcast %82 : vector<4x8x1xf32> to vector<4x8x8xf32>
    %84 = arith.subf %80, %83 : vector<4x8x8xf32>
    %85 = math.exp %84 : vector<4x8x8xf32>
    %cst_33 = arith.constant dense<0.000000e+00> : vector<4x8xf32>
    %86 = vector.multi_reduction <add>, %85, %cst_33 [2] : vector<4x8x8xf32> to vector<4x8xf32>
    %87 = vector.shape_cast %86 : vector<4x8xf32> to vector<4x8x1xf32>
    %88 = tpu.reciprocal %87 : vector<4x8x1xf32> -> vector<4x8x1xf32>
    %89 = vector.broadcast %88 : vector<4x8x1xf32> to vector<4x8x8xf32>
    %90 = arith.mulf %85, %89 : vector<4x8x8xf32>
    "tpu.trace_start"() <{level = 10 : i32, message = "hqk,hkd->hqd"}> : () -> ()
    %cst_34 = arith.constant dense<0.000000e+00> : vector<4x8x8xf32>
    %91 = tpu.matmul %90, %76, %cst_34 {dimension_numbers = #tpu.dot_dimension_numbers<[2], [1], [1], [2], [0, 0, 0, 1, 1, 2], [0], [0]>} : vector<4x8x8xf32>, vector<4x8x8xf32>, vector<4x8x8xf32> -> vector<4x8x8xf32>
    "tpu.trace_stop"() : () -> ()
    %92 = vector.extract_strided_slice %91 {offsets = [0, 0, 0], sizes = [1, 8, 8], strides = [1, 1, 1]} : vector<4x8x8xf32> to vector<1x8x8xf32>
    %93 = vector.shape_cast %92 : vector<1x8x8xf32> to vector<8x8xf32>
    %94 = vector.extract_strided_slice %91 {offsets = [1, 0, 0], sizes = [1, 8, 8], strides = [1, 1, 1]} : vector<4x8x8xf32> to vector<1x8x8xf32>
    %95 = vector.shape_cast %94 : vector<1x8x8xf32> to vector<8x8xf32>
    %96 = vector.extract_strided_slice %91 {offsets = [2, 0, 0], sizes = [1, 8, 8], strides = [1, 1, 1]} : vector<4x8x8xf32> to vector<1x8x8xf32>
    %97 = vector.shape_cast %96 : vector<1x8x8xf32> to vector<8x8xf32>
    %98 = vector.extract_strided_slice %91 {offsets = [3, 0, 0], sizes = [1, 8, 8], strides = [1, 1, 1]} : vector<4x8x8xf32> to vector<1x8x8xf32>
    %99 = vector.shape_cast %98 : vector<1x8x8xf32> to vector<8x8xf32>
    %100 = tpu.concatenate %93, %95, %97, %99 in 1 : vector<8x8xf32>, vector<8x8xf32>, vector<8x8xf32>, vector<8x8xf32> -> vector<8x32xf32>
    %cst_35 = arith.constant dense<0.000000e+00> : vector<8x32xf32>
    %101 = tpu.matmul %100, %48, %cst_35 {dimension_numbers = #tpu.dot_dimension_numbers<[1], [0], [0], [1], [0, 0, 1, 1], [], []>} : vector<8x32xf32>, vector<32x32xf32>, vector<8x32xf32> -> vector<8x32xf32>
    %102 = vector.broadcast %49 : vector<1x32xf32> to vector<8x32xf32>
    %103 = arith.addf %101, %102 : vector<8x32xf32>
    %104 = arith.addf %0, %103 : vector<8x32xf32>
    %c0_36 = arith.constant 0 : index
    %c0_37 = arith.constant 0 : index
    %105 = vector.load %arg7[%c0_36, %c0_37] : memref<1x32xf32, #tpu.memory_space<vmem>>, vector<1x32xf32>
    %c0_38 = arith.constant 0 : index
    %c0_39 = arith.constant 0 : index
    %106 = vector.load %arg8[%c0_38, %c0_39] : memref<1x32xf32, #tpu.memory_space<vmem>>, vector<1x32xf32>
    %cst_40 = arith.constant dense<0.000000e+00> : vector<8xf32>
    %107 = vector.multi_reduction <add>, %104, %cst_40 [1] : vector<8x32xf32> to vector<8xf32>
    %108 = vector.shape_cast %107 : vector<8xf32> to vector<8x1xf32>
    %cst_41 = arith.constant 3.200000e+01 : f32
    %109 = vector.broadcast %cst_41 : f32 to vector<8x1xf32>
    %110 = arith.divf %108, %109 : vector<8x1xf32>
    %111 = vector.broadcast %110 : vector<8x1xf32> to vector<8x32xf32>
    %112 = arith.subf %104, %111 : vector<8x32xf32>
    %113 = arith.mulf %112, %112 : vector<8x32xf32>
    %cst_42 = arith.constant dense<0.000000e+00> : vector<8xf32>
    %114 = vector.multi_reduction <add>, %113, %cst_42 [1] : vector<8x32xf32> to vector<8xf32>
    %115 = vector.shape_cast %114 : vector<8xf32> to vector<8x1xf32>
    %cst_43 = arith.constant 0.0322580636 : f32
    %116 = vector.broadcast %cst_43 : f32 to vector<8x1xf32>
    %117 = arith.mulf %115, %116 : vector<8x1xf32>
    %118 = math.sqrt %117 : vector<8x1xf32>
    %cst_44 = arith.constant 9.99999997E-7 : f32
    %119 = vector.broadcast %cst_44 : f32 to vector<8x1xf32>
    %120 = arith.addf %118, %119 : vector<8x1xf32>
    %121 = tpu.reciprocal %120 : vector<8x1xf32> -> vector<8x1xf32>
    %122 = vector.broadcast %105 : vector<1x32xf32> to vector<8x32xf32>
    %123 = arith.mulf %122, %112 : vector<8x32xf32>
    %124 = vector.broadcast %121 : vector<8x1xf32> to vector<8x32xf32>
    %125 = arith.mulf %123, %124 : vector<8x32xf32>
    %126 = vector.broadcast %106 : vector<1x32xf32> to vector<8x32xf32>
    %127 = arith.addf %125, %126 : vector<8x32xf32>
    %c0_45 = arith.constant 0 : index
    %c0_46 = arith.constant 0 : index
    %128 = vector.load %arg15[%c0_45, %c0_46] : memref<32x32xf32, #tpu.memory_space<vmem>>, vector<32x32xf32>
    %cst_47 = arith.constant dense<0.000000e+00> : vector<8x32xf32>
    %129 = tpu.matmul %127, %128, %cst_47 {dimension_numbers = #tpu.dot_dimension_numbers<[1], [0], [0], [1], [0, 0, 1, 1], [], []>} : vector<8x32xf32>, vector<32x32xf32>, vector<8x32xf32> -> vector<8x32xf32>
    %c0_48 = arith.constant 0 : index
    %c0_49 = arith.constant 0 : index
    %130 = vector.load %arg16[%c0_48, %c0_49] : memref<1x32xf32, #tpu.memory_space<vmem>>, vector<1x32xf32>
    %131 = vector.broadcast %130 : vector<1x32xf32> to vector<8x32xf32>
    %132 = arith.addf %129, %131 : vector<8x32xf32>
    %c0_50 = arith.constant 0 : index
    %c0_51 = arith.constant 0 : index
    %133 = vector.load %arg17[%c0_50, %c0_51] : memref<32x64xf32, #tpu.memory_space<vmem>>, vector<32x64xf32>
    %cst_52 = arith.constant dense<0.000000e+00> : vector<16x64xf32>
    %134 = tpu.matmul %1, %133, %cst_52 {dimension_numbers = #tpu.dot_dimension_numbers<[1], [0], [0], [1], [0, 0, 1, 1], [], []>} : vector<16x32xf32>, vector<32x64xf32>, vector<16x64xf32> -> vector<16x64xf32>
    %c0_53 = arith.constant 0 : index
    %c0_54 = arith.constant 0 : index
    %135 = vector.load %arg18[%c0_53, %c0_54] : memref<1x64xf32, #tpu.memory_space<vmem>>, vector<1x64xf32>
    %136 = vector.broadcast %135 : vector<1x64xf32> to vector<16x64xf32>
    %137 = arith.addf %134, %136 : vector<16x64xf32>
    %c0_55 = arith.constant 0 : index
    %c0_56 = arith.constant 0 : index
    %138 = vector.load %arg19[%c0_55, %c0_56] : memref<32x32xf32, #tpu.memory_space<vmem>>, vector<32x32xf32>
    %c0_57 = arith.constant 0 : index
    %c0_58 = arith.constant 0 : index
    %139 = vector.load %arg20[%c0_57, %c0_58] : memref<1x32xf32, #tpu.memory_space<vmem>>, vector<1x32xf32>
    %140 = vector.extract_strided_slice %132 {offsets = [0, 0], sizes = [8, 8], strides = [1, 1]} : vector<8x32xf32> to vector<8x8xf32>
    %141 = vector.extract_strided_slice %132 {offsets = [0, 8], sizes = [8, 8], strides = [1, 1]} : vector<8x32xf32> to vector<8x8xf32>
    %142 = vector.extract_strided_slice %132 {offsets = [0, 16], sizes = [8, 8], strides = [1, 1]} : vector<8x32xf32> to vector<8x8xf32>
    %143 = vector.extract_strided_slice %132 {offsets = [0, 24], sizes = [8, 8], strides = [1, 1]} : vector<8x32xf32> to vector<8x8xf32>
    %144 = vector.shape_cast %140 : vector<8x8xf32> to vector<1x8x8xf32>
    %145 = vector.shape_cast %141 : vector<8x8xf32> to vector<1x8x8xf32>
    %146 = vector.shape_cast %142 : vector<8x8xf32> to vector<1x8x8xf32>
    %147 = vector.shape_cast %143 : vector<8x8xf32> to vector<1x8x8xf32>
    %148 = tpu.concatenate %144, %145, %146, %147 in 0 : vector<1x8x8xf32>, vector<1x8x8xf32>, vector<1x8x8xf32>, vector<1x8x8xf32> -> vector<4x8x8xf32>
    %149 = vector.extract_strided_slice %137 {offsets = [0, 0], sizes = [16, 8], strides = [1, 1]} : vector<16x64xf32> to vector<16x8xf32>
    %150 = vector.extract_strided_slice %137 {offsets = [0, 8], sizes = [16, 8], strides = [1, 1]} : vector<16x64xf32> to vector<16x8xf32>
    %151 = vector.extract_strided_slice %137 {offsets = [0, 16], sizes = [16, 8], strides = [1, 1]} : vector<16x64xf32> to vector<16x8xf32>
    %152 = vector.extract_strided_slice %137 {offsets = [0, 24], sizes = [16, 8], strides = [1, 1]} : vector<16x64xf32> to vector<16x8xf32>
    %153 = vector.shape_cast %149 : vector<16x8xf32> to vector<1x16x8xf32>
    %154 = vector.shape_cast %150 : vector<16x8xf32> to vector<1x16x8xf32>
    %155 = vector.shape_cast %151 : vector<16x8xf32> to vector<1x16x8xf32>
    %156 = vector.shape_cast %152 : vector<16x8xf32> to vector<1x16x8xf32>
    %157 = tpu.concatenate %153, %154, %155, %156 in 0 : vector<1x16x8xf32>, vector<1x16x8xf32>, vector<1x16x8xf32>, vector<1x16x8xf32> -> vector<4x16x8xf32>
    %158 = vector.extract_strided_slice %137 {offsets = [0, 32], sizes = [16, 8], strides = [1, 1]} : vector<16x64xf32> to vector<16x8xf32>
    %159 = vector.extract_strided_slice %137 {offsets = [0, 40], sizes = [16, 8], strides = [1, 1]} : vector<16x64xf32> to vector<16x8xf32>
    %160 = vector.extract_strided_slice %137 {offsets = [0, 48], sizes = [16, 8], strides = [1, 1]} : vector<16x64xf32> to vector<16x8xf32>
    %161 = vector.extract_strided_slice %137 {offsets = [0, 56], sizes = [16, 8], strides = [1, 1]} : vector<16x64xf32> to vector<16x8xf32>
    %162 = vector.shape_cast %158 : vector<16x8xf32> to vector<1x16x8xf32>
    %163 = vector.shape_cast %159 : vector<16x8xf32> to vector<1x16x8xf32>
    %164 = vector.shape_cast %160 : vector<16x8xf32> to vector<1x16x8xf32>
    %165 = vector.shape_cast %161 : vector<16x8xf32> to vector<1x16x8xf32>
    %166 = tpu.concatenate %162, %163, %164, %165 in 0 : vector<1x16x8xf32>, vector<1x16x8xf32>, vector<1x16x8xf32>, vector<1x16x8xf32> -> vector<4x16x8xf32>
    "tpu.trace_start"() <{level = 10 : i32, message = "hqd,hkd->hqk"}> : () -> ()
    %cst_59 = arith.constant dense<0.000000e+00> : vector<4x8x16xf32>
    %167 = tpu.matmul %148, %157, %cst_59 {dimension_numbers = #tpu.dot_dimension_numbers<[2], [2], [1], [1], [0, 0, 0, 1, 1, 1], [0], [0]>} : vector<4x8x8xf32>, vector<4x16x8xf32>, vector<4x8x16xf32> -> vector<4x8x16xf32>
    "tpu.trace_stop"() : () -> ()
    %168 = vector.shape_cast %17 : vector<8x16xf32> to vector<1x8x16xf32>
    %169 = vector.broadcast %168 : vector<1x8x16xf32> to vector<4x8x16xf32>
    %170 = arith.addf %167, %169 : vector<4x8x16xf32>
    %cst_60 = arith.constant dense<0xFF800000> : vector<4x8xf32>
    %171 = vector.multi_reduction <maximumf>, %170, %cst_60 [2] : vector<4x8x16xf32> to vector<4x8xf32>
    %172 = vector.shape_cast %171 : vector<4x8xf32> to vector<4x8x1xf32>
    %173 = vector.broadcast %172 : vector<4x8x1xf32> to vector<4x8x16xf32>
    %174 = arith.subf %170, %173 : vector<4x8x16xf32>
    %175 = math.exp %174 : vector<4x8x16xf32>
    %cst_61 = arith.constant dense<0.000000e+00> : vector<4x8xf32>
    %176 = vector.multi_reduction <add>, %175, %cst_61 [2] : vector<4x8x16xf32> to vector<4x8xf32>
    %177 = vector.shape_cast %176 : vector<4x8xf32> to vector<4x8x1xf32>
    %178 = tpu.reciprocal %177 : vector<4x8x1xf32> -> vector<4x8x1xf32>
    %179 = vector.broadcast %178 : vector<4x8x1xf32> to vector<4x8x16xf32>
    %180 = arith.mulf %175, %179 : vector<4x8x16xf32>
    "tpu.trace_start"() <{level = 10 : i32, message = "hqk,hkd->hqd"}> : () -> ()
    %cst_62 = arith.constant dense<0.000000e+00> : vector<4x8x8xf32>
    %181 = tpu.matmul %180, %166, %cst_62 {dimension_numbers = #tpu.dot_dimension_numbers<[2], [1], [1], [2], [0, 0, 0, 1, 1, 2], [0], [0]>} : vector<4x8x16xf32>, vector<4x16x8xf32>, vector<4x8x8xf32> -> vector<4x8x8xf32>
    "tpu.trace_stop"() : () -> ()
    %182 = vector.extract_strided_slice %181 {offsets = [0, 0, 0], sizes = [1, 8, 8], strides = [1, 1, 1]} : vector<4x8x8xf32> to vector<1x8x8xf32>
    %183 = vector.shape_cast %182 : vector<1x8x8xf32> to vector<8x8xf32>
    %184 = vector.extract_strided_slice %181 {offsets = [1, 0, 0], sizes = [1, 8, 8], strides = [1, 1, 1]} : vector<4x8x8xf32> to vector<1x8x8xf32>
    %185 = vector.shape_cast %184 : vector<1x8x8xf32> to vector<8x8xf32>
    %186 = vector.extract_strided_slice %181 {offsets = [2, 0, 0], sizes = [1, 8, 8], strides = [1, 1, 1]} : vector<4x8x8xf32> to vector<1x8x8xf32>
    %187 = vector.shape_cast %186 : vector<1x8x8xf32> to vector<8x8xf32>
    %188 = vector.extract_strided_slice %181 {offsets = [3, 0, 0], sizes = [1, 8, 8], strides = [1, 1, 1]} : vector<4x8x8xf32> to vector<1x8x8xf32>
    %189 = vector.shape_cast %188 : vector<1x8x8xf32> to vector<8x8xf32>
    %190 = tpu.concatenate %183, %185, %187, %189 in 1 : vector<8x8xf32>, vector<8x8xf32>, vector<8x8xf32>, vector<8x8xf32> -> vector<8x32xf32>
    %cst_63 = arith.constant dense<0.000000e+00> : vector<8x32xf32>
    %191 = tpu.matmul %190, %138, %cst_63 {dimension_numbers = #tpu.dot_dimension_numbers<[1], [0], [0], [1], [0, 0, 1, 1], [], []>} : vector<8x32xf32>, vector<32x32xf32>, vector<8x32xf32> -> vector<8x32xf32>
    %192 = vector.broadcast %139 : vector<1x32xf32> to vector<8x32xf32>
    %193 = arith.addf %191, %192 : vector<8x32xf32>
    %194 = arith.addf %104, %193 : vector<8x32xf32>
    %c0_64 = arith.constant 0 : index
    %c0_65 = arith.constant 0 : index
    %195 = vector.load %arg9[%c0_64, %c0_65] : memref<1x32xf32, #tpu.memory_space<vmem>>, vector<1x32xf32>
    %c0_66 = arith.constant 0 : index
    %c0_67 = arith.constant 0 : index
    %196 = vector.load %arg10[%c0_66, %c0_67] : memref<1x32xf32, #tpu.memory_space<vmem>>, vector<1x32xf32>
    %cst_68 = arith.constant dense<0.000000e+00> : vector<8xf32>
    %197 = vector.multi_reduction <add>, %194, %cst_68 [1] : vector<8x32xf32> to vector<8xf32>
    %198 = vector.shape_cast %197 : vector<8xf32> to vector<8x1xf32>
    %cst_69 = arith.constant 3.200000e+01 : f32
    %199 = vector.broadcast %cst_69 : f32 to vector<8x1xf32>
    %200 = arith.divf %198, %199 : vector<8x1xf32>
    %201 = vector.broadcast %200 : vector<8x1xf32> to vector<8x32xf32>
    %202 = arith.subf %194, %201 : vector<8x32xf32>
    %203 = arith.mulf %202, %202 : vector<8x32xf32>
    %cst_70 = arith.constant dense<0.000000e+00> : vector<8xf32>
    %204 = vector.multi_reduction <add>, %203, %cst_70 [1] : vector<8x32xf32> to vector<8xf32>
    %205 = vector.shape_cast %204 : vector<8xf32> to vector<8x1xf32>
    %cst_71 = arith.constant 0.0322580636 : f32
    %206 = vector.broadcast %cst_71 : f32 to vector<8x1xf32>
    %207 = arith.mulf %205, %206 : vector<8x1xf32>
    %208 = math.sqrt %207 : vector<8x1xf32>
    %cst_72 = arith.constant 9.99999997E-7 : f32
    %209 = vector.broadcast %cst_72 : f32 to vector<8x1xf32>
    %210 = arith.addf %208, %209 : vector<8x1xf32>
    %211 = tpu.reciprocal %210 : vector<8x1xf32> -> vector<8x1xf32>
    %212 = vector.broadcast %195 : vector<1x32xf32> to vector<8x32xf32>
    %213 = arith.mulf %212, %202 : vector<8x32xf32>
    %214 = vector.broadcast %211 : vector<8x1xf32> to vector<8x32xf32>
    %215 = arith.mulf %213, %214 : vector<8x32xf32>
    %216 = vector.broadcast %196 : vector<1x32xf32> to vector<8x32xf32>
    %217 = arith.addf %215, %216 : vector<8x32xf32>
    %218 = arith.truncf %217 : vector<8x32xf32> to vector<8x32xbf16>
    %c0_73 = arith.constant 0 : index
    %c0_74 = arith.constant 0 : index
    %219 = vector.load %arg21[%c0_73, %c0_74] : memref<32x2048xbf16, #tpu.memory_space<vmem>>, vector<32x2048xbf16>
    %cst_75 = arith.constant dense<0.000000e+00> : vector<8x2048xf32>
    %220 = tpu.matmul %218, %219, %cst_75 {dimension_numbers = #tpu.dot_dimension_numbers<[1], [0], [0], [1], [0, 0, 1, 1], [], []>} : vector<8x32xbf16>, vector<32x2048xbf16>, vector<8x2048xf32> -> vector<8x2048xf32>
    %c0_76 = arith.constant 0 : index
    %c0_77 = arith.constant 0 : index
    %221 = vector.load %arg22[%c0_76, %c0_77] : memref<1x2048xf32, #tpu.memory_space<vmem>>, vector<1x2048xf32>
    %222 = vector.broadcast %221 : vector<1x2048xf32> to vector<8x2048xf32>
    %223 = arith.addf %220, %222 : vector<8x2048xf32>
    %cst_78 = arith.constant 0.000000e+00 : f32
    %224 = vector.broadcast %cst_78 : f32 to vector<8x2048xf32>
    %225 = arith.maximumf %223, %224 : vector<8x2048xf32>
    %226 = arith.truncf %225 : vector<8x2048xf32> to vector<8x2048xbf16>
    %c0_79 = arith.constant 0 : index
    %c0_80 = arith.constant 0 : index
    %227 = vector.load %arg23[%c0_79, %c0_80] : memref<2048x32xbf16, #tpu.memory_space<vmem>>, vector<2048x32xbf16>
    %cst_81 = arith.constant dense<0.000000e+00> : vector<8x32xf32>
    %228 = tpu.matmul %226, %227, %cst_81 {dimension_numbers = #tpu.dot_dimension_numbers<[1], [0], [0], [1], [0, 0, 1, 1], [], []>} : vector<8x2048xbf16>, vector<2048x32xbf16>, vector<8x32xf32> -> vector<8x32xf32>
    %229 = arith.addf %194, %228 : vector<8x32xf32>
    %c0_82 = arith.constant 0 : index
    %c0_83 = arith.constant 0 : index
    %230 = vector.load %arg24[%c0_82, %c0_83] : memref<1x32xf32, #tpu.memory_space<vmem>>, vector<1x32xf32>
    %231 = vector.broadcast %230 : vector<1x32xf32> to vector<8x32xf32>
    %232 = arith.addf %229, %231 : vector<8x32xf32>
    %c0_84 = arith.constant 0 : index
    %c0_85 = arith.constant 0 : index
    %233 = vector.load %arg25[%c0_84, %c0_85] : memref<8x32xf32, #tpu.memory_space<vmem>>, vector<8x32xf32>
    tpu.vector_store %arg25[%c0_84, %c0_85], %232 {strides = array<i32>} : memref<8x32xf32, #tpu.memory_space<vmem>>, vector<8x32xf32>,
    return
  }
  func.func @transform_0(%arg0: i32) -> (i32, i32) {
    %c0_i32 = arith.constant 0 : i32
    %c0_i32_0 = arith.constant 0 : i32
    return %arg0, %c0_i32 : i32, i32
  }
  func.func @transform_1(%arg0: i32) -> (i32, i32) {
    %c0_i32 = arith.constant 0 : i32
    %c0_i32_0 = arith.constant 0 : i32
    return %arg0, %c0_i32 : i32, i32
  }
  func.func @transform_2(%arg0: i32) -> (i32, i32, i32) {
    %c0_i32 = arith.constant 0 : i32
    %c0_i32_0 = arith.constant 0 : i32
    %c0_i32_1 = arith.constant 0 : i32
    return %arg0, %c0_i32, %c0_i32_0 : i32, i32, i32
  }
  func.func @transform_3(%arg0: i32) -> (i32, i32, i32) {
    %c0_i32 = arith.constant 0 : i32
    %c0_i32_0 = arith.constant 0 : i32
    %c0_i32_1 = arith.constant 0 : i32
    return %arg0, %c0_i32, %c0_i32_0 : i32, i32, i32
  }
  func.func @transform_4(%arg0: i32) -> (i32, i32) {
    %c0_i32 = arith.constant 0 : i32
    %c0_i32_0 = arith.constant 0 : i32
    %c0_i32_1 = arith.constant 0 : i32
    return %c0_i32, %c0_i32_0 : i32, i32
  }
  func.func @transform_5(%arg0: i32) -> (i32, i32) {
    %c0_i32 = arith.constant 0 : i32
    %c0_i32_0 = arith.constant 0 : i32
    %c0_i32_1 = arith.constant 0 : i32
    return %c0_i32, %c0_i32_0 : i32, i32
  }
  func.func @transform_6(%arg0: i32) -> (i32, i32) {
    %c0_i32 = arith.constant 0 : i32
    %c0_i32_0 = arith.constant 0 : i32
    %c0_i32_1 = arith.constant 0 : i32
    return %c0_i32, %c0_i32_0 : i32, i32
  }
  func.func @transform_7(%arg0: i32) -> (i32, i32) {
    %c0_i32 = arith.constant 0 : i32
    %c0_i32_0 = arith.constant 0 : i32
    %c0_i32_1 = arith.constant 0 : i32
    return %c0_i32, %c0_i32_0 : i32, i32
  }
  func.func @transform_8(%arg0: i32) -> (i32, i32) {
    %c0_i32 = arith.constant 0 : i32
    %c0_i32_0 = arith.constant 0 : i32
    %c0_i32_1 = arith.constant 0 : i32
    return %c0_i32, %c0_i32_0 : i32, i32
  }
  func.func @transform_9(%arg0: i32) -> (i32, i32) {
    %c0_i32 = arith.constant 0 : i32
    %c0_i32_0 = arith.constant 0 : i32
    %c0_i32_1 = arith.constant 0 : i32
    return %c0_i32, %c0_i32_0 : i32, i32
  }
  func.func @transform_10(%arg0: i32) -> (i32, i32) {
    %c0_i32 = arith.constant 0 : i32
    %c0_i32_0 = arith.constant 0 : i32
    %c0_i32_1 = arith.constant 0 : i32
    return %c0_i32, %c0_i32_0 : i32, i32
  }
  func.func @transform_11(%arg0: i32) -> (i32, i32) {
    %c0_i32 = arith.constant 0 : i32
    %c0_i32_0 = arith.constant 0 : i32
    %c0_i32_1 = arith.constant 0 : i32
    return %c0_i32, %c0_i32_0 : i32, i32
  }
  func.func @transform_12(%arg0: i32) -> (i32, i32) {
    %c0_i32 = arith.constant 0 : i32
    %c0_i32_0 = arith.constant 0 : i32
    %c0_i32_1 = arith.constant 0 : i32
    return %c0_i32, %c0_i32_0 : i32, i32
  }
  func.func @transform_13(%arg0: i32) -> (i32, i32) {
    %c0_i32 = arith.constant 0 : i32
    %c0_i32_0 = arith.constant 0 : i32
    %c0_i32_1 = arith.constant 0 : i32
    return %c0_i32, %c0_i32_0 : i32, i32
  }
  func.func @transform_14(%arg0: i32) -> (i32, i32) {
    %c0_i32 = arith.constant 0 : i32
    %c0_i32_0 = arith.constant 0 : i32
    %c0_i32_1 = arith.constant 0 : i32
    return %c0_i32, %c0_i32_0 : i32, i32
  }
  func.func @transform_15(%arg0: i32) -> (i32, i32) {
    %c0_i32 = arith.constant 0 : i32
    %c0_i32_0 = arith.constant 0 : i32
    %c0_i32_1 = arith.constant 0 : i32
    return %c0_i32, %c0_i32_0 : i32, i32
  }
  func.func @transform_16(%arg0: i32) -> (i32, i32) {
    %c0_i32 = arith.constant 0 : i32
    %c0_i32_0 = arith.constant 0 : i32
    %c0_i32_1 = arith.constant 0 : i32
    return %c0_i32, %c0_i32_0 : i32, i32
  }
  func.func @transform_17(%arg0: i32) -> (i32, i32) {
    %c0_i32 = arith.constant 0 : i32
    %c0_i32_0 = arith.constant 0 : i32
    %c0_i32_1 = arith.constant 0 : i32
    return %c0_i32, %c0_i32_0 : i32, i32
  }
  func.func @transform_18(%arg0: i32) -> (i32, i32) {
    %c0_i32 = arith.constant 0 : i32
    %c0_i32_0 = arith.constant 0 : i32
    %c0_i32_1 = arith.constant 0 : i32
    return %c0_i32, %c0_i32_0 : i32, i32
  }
  func.func @transform_19(%arg0: i32) -> (i32, i32) {
    %c0_i32 = arith.constant 0 : i32
    %c0_i32_0 = arith.constant 0 : i32
    %c0_i32_1 = arith.constant 0 : i32
    return %c0_i32, %c0_i32_0 : i32, i32
  }
  func.func @transform_20(%arg0: i32) -> (i32, i32) {
    %c0_i32 = arith.constant 0 : i32
    %c0_i32_0 = arith.constant 0 : i32
    %c0_i32_1 = arith.constant 0 : i32
    return %c0_i32, %c0_i32_0 : i32, i32
  }
  func.func @transform_21(%arg0: i32) -> (i32, i32) {
    %c0_i32 = arith.constant 0 : i32
    %c0_i32_0 = arith.constant 0 : i32
    %c0_i32_1 = arith.constant 0 : i32
    return %c0_i32, %c0_i32_0 : i32, i32
  }
  func.func @transform_22(%arg0: i32) -> (i32, i32) {
    %c0_i32 = arith.constant 0 : i32
    %c0_i32_0 = arith.constant 0 : i32
    %c0_i32_1 = arith.constant 0 : i32
    return %c0_i32, %c0_i32_0 : i32, i32
  }
  func.func @transform_23(%arg0: i32) -> (i32, i32) {
    %c0_i32 = arith.constant 0 : i32
    %c0_i32_0 = arith.constant 0 : i32
    %c0_i32_1 = arith.constant 0 : i32
    return %c0_i32, %c0_i32_0 : i32, i32
  }
  func.func @transform_24(%arg0: i32) -> (i32, i32) {
    %c0_i32 = arith.constant 0 : i32
    %c0_i32_0 = arith.constant 0 : i32
    return %arg0, %c0_i32 : i32, i32
  }
}

</mosaic_0001>

<llo_original>
// kernel: tpu_custom_call.1
$region0: #{tpu_custom_call.1}
  #allocation0 [shape = 'u32[]', space=smem, size = 0x4, offset = 0x4, fixed_abs, tag = 'smem constant byte address 0x4 - core index']
  #allocation1 [shape = 'u32[144,128]{1,0:T(1,128)}', space=vmem, size = 0x12000, scoped, tag = 'internal scratch']
  %s0 = inlined_call_operand.vmem [shape: f32[16,32], index: 0, kind: input, shape index: {}]
  %s1 = inlined_call_operand.vmem [shape: f32[32,32], index: 1, kind: input, shape index: {}]
  %s2 = inlined_call_operand.vmem [shape: s32[2,8,8], index: 2, kind: input, shape index: {}]
  %s3 = inlined_call_operand.vmem [shape: s32[2,1,16], index: 3, kind: input, shape index: {}]
  %s4 = inlined_call_operand.vmem [shape: f32[1,32], index: 4, kind: input, shape index: {}]
  %s5 = inlined_call_operand.vmem [shape: f32[1,32], index: 5, kind: input, shape index: {}]
  %s6 = inlined_call_operand.vmem [shape: f32[1,32], index: 6, kind: input, shape index: {}]
  %s7 = inlined_call_operand.vmem [shape: f32[1,32], index: 7, kind: input, shape index: {}]
  %s8 = inlined_call_operand.vmem [shape: f32[1,32], index: 8, kind: input, shape index: {}]
  %s9 = inlined_call_operand.vmem [shape: f32[1,32], index: 9, kind: input, shape index: {}]
  %s10 = inlined_call_operand.vmem [shape: f32[32,96], index: 10, kind: input, shape index: {}]
  %s11 = inlined_call_operand.vmem [shape: f32[1,96], index: 11, kind: input, shape index: {}]
  %s12 = inlined_call_operand.vmem [shape: f32[32,32], index: 12, kind: input, shape index: {}]
  %s13 = inlined_call_operand.vmem [shape: f32[1,32], index: 13, kind: input, shape index: {}]
  %s14 = inlined_call_operand.vmem [shape: f32[32,32], index: 14, kind: input, shape index: {}]
  %s15 = inlined_call_operand.vmem [shape: f32[1,32], index: 15, kind: input, shape index: {}]
  %s16 = inlined_call_operand.vmem [shape: f32[32,64], index: 16, kind: input, shape index: {}]
  %s17 = inlined_call_operand.vmem [shape: f32[1,64], index: 17, kind: input, shape index: {}]
  %s18 = inlined_call_operand.vmem [shape: f32[32,32], index: 18, kind: input, shape index: {}]
  %s19 = inlined_call_operand.vmem [shape: f32[1,32], index: 19, kind: input, shape index: {}]
  %s20 = inlined_call_operand.vmem [shape: bf16[32,2048], index: 20, kind: input, shape index: {}]
  %s21 = inlined_call_operand.vmem [shape: f32[1,2048], index: 21, kind: input, shape index: {}]
  %s22 = inlined_call_operand.vmem [shape: bf16[2048,32], index: 22, kind: input, shape index: {}]
  %s23 = inlined_call_operand.vmem [shape: f32[1,32], index: 23, kind: input, shape index: {}]
  %s24 = inlined_call_operand.hbm [shape: f32[16,32], index: 24, kind: output, shape index: {}]
  %s25 = sld [smem:[#allocation0]]
  $region129: #{tpu_custom_call.1} parent=0
    _
  %s27 = ssub.s32 1, %s25
  %s28 = scalar_select 0, %s27, %s25
  $region1: #{tpu_custom_call.1} parent=0
    #allocation2 [shape = 'u8[8192]{0}', space=vmem, size = 0x2000, scoped, tag = 'output window, operand 0']
    #allocation3 [shape = 's32[2]{0}', space=sflag, size = 0x8, scoped, tag = 'scoped memory for tpu_custom_call.1']
    %29 = vsyncpa [#allocation3], 0
    %s30 = scalar_lea.sflag [#allocation3], 1
    %31 = vsyncpa %s30, 0
    loop: start=0, step=1, limit=4
    $region2: #{tpu_custom_call.1} parent=1 // loop_pre_header
      _
    $region3: #{tpu_custom_call.1} parent=1 // loop_header
      %s33 = sphi 0, %s37
      %p34 = scmp.ge.s32.totalorder %s33, 4
      %s43 = sphi 0, %s45
      %s46 = sphi 0, %s43
      %s47 = sphi 0, %s46
      %s63 = sphi 0, %s47
      %s69 = sphi 0, %s71
      %s72 = sphi 0, %s69
      %s73 = sphi 0, %s72
      %s89 = sphi 0, %s73
      %s95 = sphi 0, %s97
      %s98 = sphi 0, %s95
      %s99 = sphi 0, %s98
      %s115 = sphi 0, %s99
      %s121 = sphi 0, %s123
      %s124 = sphi 0, %s121
      %s125 = sphi 0, %s124
      %s141 = sphi 0, %s125
      %s145 = sphi 0, %s145
      %s147 = sphi 0, %s145
      %s148 = sphi 0, %s147
      %s162 = sphi 0, %s148
      %s166 = sphi 0, %s166
      %s168 = sphi 0, %s166
      %s169 = sphi 0, %s168
      %s183 = sphi 0, %s169
      %s187 = sphi 0, %s187
      %s189 = sphi 0, %s187
      %s190 = sphi 0, %s189
      %s204 = sphi 0, %s190
      %s208 = sphi 0, %s208
      %s210 = sphi 0, %s208
      %s211 = sphi 0, %s210
      %s225 = sphi 0, %s211
      %s229 = sphi 0, %s229
      %s231 = sphi 0, %s229
      %s232 = sphi 0, %s231
      %s246 = sphi 0, %s232
      %s250 = sphi 0, %s250
      %s252 = sphi 0, %s250
      %s253 = sphi 0, %s252
      %s267 = sphi 0, %s253
      %s271 = sphi 0, %s271
      %s273 = sphi 0, %s271
      %s274 = sphi 0, %s273
      %s288 = sphi 0, %s274
      %s292 = sphi 0, %s292
      %s294 = sphi 0, %s292
      %s295 = sphi 0, %s294
      %s309 = sphi 0, %s295
      %s313 = sphi 0, %s313
      %s315 = sphi 0, %s313
      %s316 = sphi 0, %s315
      %s330 = sphi 0, %s316
      %s334 = sphi 0, %s334
      %s336 = sphi 0, %s334
      %s337 = sphi 0, %s336
      %s351 = sphi 0, %s337
      %s355 = sphi 0, %s355
      %s357 = sphi 0, %s355
      %s358 = sphi 0, %s357
      %s372 = sphi 0, %s358
      %s376 = sphi 0, %s376
      %s378 = sphi 0, %s376
      %s379 = sphi 0, %s378
      %s393 = sphi 0, %s379
      %s397 = sphi 0, %s397
      %s399 = sphi 0, %s397
      %s400 = sphi 0, %s399
      %s414 = sphi 0, %s400
      %s418 = sphi 0, %s418
      %s420 = sphi 0, %s418
      %s421 = sphi 0, %s420
      %s435 = sphi 0, %s421
      %s439 = sphi 0, %s439
      %s441 = sphi 0, %s439
      %s442 = sphi 0, %s441
      %s456 = sphi 0, %s442
      %s460 = sphi 0, %s460
      %s462 = sphi 0, %s460
      %s463 = sphi 0, %s462
      %s477 = sphi 0, %s463
      %s481 = sphi 0, %s481
      %s483 = sphi 0, %s481
      %s484 = sphi 0, %s483
      %s498 = sphi 0, %s484
      %s502 = sphi 0, %s502
      %s504 = sphi 0, %s502
      %s505 = sphi 0, %s504
      %s519 = sphi 0, %s505
      %s523 = sphi 0, %s523
      %s525 = sphi 0, %s523
      %s526 = sphi 0, %s525
      %s540 = sphi 0, %s526
      %s544 = sphi 0, %s544
      %s546 = sphi 0, %s544
      %s547 = sphi 0, %s546
      %s561 = sphi 0, %s547
      %s567 = sphi 0, %s569
      %s570 = sphi 0, %s567
      %s571 = sphi 0, %s570
      %s587 = sphi 0, %s571
    $region4: #{tpu_custom_call.1} parent=1 // loop_header_branch
      %36 = sbr.rel (%p34) target = $region8
    $region5: #{tpu_custom_call.1} parent=1 // loop_body
      %s38 = ssub.s32 %s33, 1
      %s39 = ssub.s32 %s33, 2
      %s40 = sadd.s32 %s33, 1
      %s41 = ssub.s32 %s33, %s40
      %p42 = scmp.eq.s32.totalorder %s41, 0
      %s44 = sadd.s32 %s43, 1
      %s45 = scalar_select %p42, %s43, %s44
      %p48 = pneg %p42
      %p49 = scmp.eq.s32.totalorder %s33, 1
      %p50 = por %p48, %p49
      %p51 = scmp.ne.s32.totalorder %s43, %s46
      %p52 = scmp.eq.s32.totalorder %s33, 0
      %p53 = por %p51, %p52
      %p54 = scmp.ne.s32.totalorder %s43, %s46
      %p55 = scmp.eq.s32.totalorder %s38, 1
      %p56 = por %p54, %p55
      %p57 = scmp.ne.s32.totalorder %s46, %s47
      %p58 = scmp.eq.s32.totalorder %s38, 0
      %p59 = por %p57, %p58
      %p60 = scmp.ne.s32.totalorder %s46, %s47
      %p61 = scmp.eq.s32.totalorder %s39, 1
      %p62 = por %p60, %p61
      %p64 = scmp.ne.s32.totalorder %s47, %s63
      %p65 = scmp.eq.s32.totalorder %s39, 0
      %p66 = por %p64, %p65
      %s67 = ssub.s32 %s33, %s40
      %p68 = scmp.eq.s32.totalorder %s67, 0
      %s70 = sadd.s32 %s69, 1
      %s71 = scalar_select %p68, %s69, %s70
      %p74 = pneg %p68
      %p75 = scmp.eq.s32.totalorder %s33, 1
      %p76 = por %p74, %p75
      %p77 = scmp.ne.s32.totalorder %s69, %s72
      %p78 = scmp.eq.s32.totalorder %s33, 0
      %p79 = por %p77, %p78
      %p80 = scmp.ne.s32.totalorder %s69, %s72
      %p81 = scmp.eq.s32.totalorder %s38, 1
      %p82 = por %p80, %p81
      %p83 = scmp.ne.s32.totalorder %s72, %s73
      %p84 = scmp.eq.s32.totalorder %s38, 0
      %p85 = por %p83, %p84
      %p86 = scmp.ne.s32.totalorder %s72, %s73
      %p87 = scmp.eq.s32.totalorder %s39, 1
      %p88 = por %p86, %p87
      %p90 = scmp.ne.s32.totalorder %s73, %s89
      %p91 = scmp.eq.s32.totalorder %s39, 0
      %p92 = por %p90, %p91
      %s93 = ssub.s32 %s33, %s40
      %p94 = scmp.eq.s32.totalorder %s93, 0
      %s96 = sadd.s32 %s95, 1
      %s97 = scalar_select %p94, %s95, %s96
      %p100 = pneg %p94
      %p101 = scmp.eq.s32.totalorder %s33, 1
      %p102 = por %p100, %p101
      %p103 = scmp.ne.s32.totalorder %s95, %s98
      %p104 = scmp.eq.s32.totalorder %s33, 0
      %p105 = por %p103, %p104
      %p106 = scmp.ne.s32.totalorder %s95, %s98
      %p107 = scmp.eq.s32.totalorder %s38, 1
      %p108 = por %p106, %p107
      %p109 = scmp.ne.s32.totalorder %s98, %s99
      %p110 = scmp.eq.s32.totalorder %s38, 0
      %p111 = por %p109, %p110
      %p112 = scmp.ne.s32.totalorder %s98, %s99
      %p113 = scmp.eq.s32.totalorder %s39, 1
      %p114 = por %p112, %p113
      %p116 = scmp.ne.s32.totalorder %s99, %s115
      %p117 = scmp.eq.s32.totalorder %s39, 0
      %p118 = por %p116, %p117
      %s119 = ssub.s32 %s33, %s40
      %p120 = scmp.eq.s32.totalorder %s119, 0
      %s122 = sadd.s32 %s121, 1
      %s123 = scalar_select %p120, %s121, %s122
      %p126 = pneg %p120
      %p127 = scmp.eq.s32.totalorder %s33, 1
      %p128 = por %p126, %p127
      %p129 = scmp.ne.s32.totalorder %s121, %s124
      %p130 = scmp.eq.s32.totalorder %s33, 0
      %p131 = por %p129, %p130
      %p132 = scmp.ne.s32.totalorder %s121, %s124
      %p133 = scmp.eq.s32.totalorder %s38, 1
      %p134 = por %p132, %p133
      %p135 = scmp.ne.s32.totalorder %s124, %s125
      %p136 = scmp.eq.s32.totalorder %s38, 0
      %p137 = por %p135, %p136
      %p138 = scmp.ne.s32.totalorder %s124, %s125
      %p139 = scmp.eq.s32.totalorder %s39, 1
      %p140 = por %p138, %p139
      %p142 = scmp.ne.s32.totalorder %s125, %s141
      %p143 = scmp.eq.s32.totalorder %s39, 0
      %p144 = por %p142, %p143
      %s146 = sadd.s32 %s145, 1
      %p149 = scmp.eq.s32.totalorder %s33, 1
      %p150 = scmp.ne.s32.totalorder %s145, %s147
      %p151 = scmp.eq.s32.totalorder %s33, 0
      %p152 = por %p150, %p151
      %p153 = scmp.ne.s32.totalorder %s145, %s147
      %p154 = scmp.eq.s32.totalorder %s38, 1
      %p155 = por %p153, %p154
      %p156 = scmp.ne.s32.totalorder %s147, %s148
      %p157 = scmp.eq.s32.totalorder %s38, 0
      %p158 = por %p156, %p157
      %p159 = scmp.ne.s32.totalorder %s147, %s148
      %p160 = scmp.eq.s32.totalorder %s39, 1
      %p161 = por %p159, %p160
      %p163 = scmp.ne.s32.totalorder %s148, %s162
      %p164 = scmp.eq.s32.totalorder %s39, 0
      %p165 = por %p163, %p164
      %s167 = sadd.s32 %s166, 1
      %p170 = scmp.eq.s32.totalorder %s33, 1
      %p171 = scmp.ne.s32.totalorder %s166, %s168
      %p172 = scmp.eq.s32.totalorder %s33, 0
      %p173 = por %p171, %p172
      %p174 = scmp.ne.s32.totalorder %s166, %s168
      %p175 = scmp.eq.s32.totalorder %s38, 1
      %p176 = por %p174, %p175
      %p177 = scmp.ne.s32.totalorder %s168, %s169
      %p178 = scmp.eq.s32.totalorder %s38, 0
      %p179 = por %p177, %p178
      %p180 = scmp.ne.s32.totalorder %s168, %s169
      %p181 = scmp.eq.s32.totalorder %s39, 1
      %p182 = por %p180, %p181
      %p184 = scmp.ne.s32.totalorder %s169, %s183
      %p185 = scmp.eq.s32.totalorder %s39, 0
      %p186 = por %p184, %p185
      %s188 = sadd.s32 %s187, 1
      %p191 = scmp.eq.s32.totalorder %s33, 1
      %p192 = scmp.ne.s32.totalorder %s187, %s189
      %p193 = scmp.eq.s32.totalorder %s33, 0
      %p194 = por %p192, %p193
      %p195 = scmp.ne.s32.totalorder %s187, %s189
      %p196 = scmp.eq.s32.totalorder %s38, 1
      %p197 = por %p195, %p196
      %p198 = scmp.ne.s32.totalorder %s189, %s190
      %p199 = scmp.eq.s32.totalorder %s38, 0
      %p200 = por %p198, %p199
      %p201 = scmp.ne.s32.totalorder %s189, %s190
      %p202 = scmp.eq.s32.totalorder %s39, 1
      %p203 = por %p201, %p202
      %p205 = scmp.ne.s32.totalorder %s190, %s204
      %p206 = scmp.eq.s32.totalorder %s39, 0
      %p207 = por %p205, %p206
      %s209 = sadd.s32 %s208, 1
      %p212 = scmp.eq.s32.totalorder %s33, 1
      %p213 = scmp.ne.s32.totalorder %s208, %s210
      %p214 = scmp.eq.s32.totalorder %s33, 0
      %p215 = por %p213, %p214
      %p216 = scmp.ne.s32.totalorder %s208, %s210
      %p217 = scmp.eq.s32.totalorder %s38, 1
      %p218 = por %p216, %p217
      %p219 = scmp.ne.s32.totalorder %s210, %s211
      %p220 = scmp.eq.s32.totalorder %s38, 0
      %p221 = por %p219, %p220
      %p222 = scmp.ne.s32.totalorder %s210, %s211
      %p223 = scmp.eq.s32.totalorder %s39, 1
      %p224 = por %p222, %p223
      %p226 = scmp.ne.s32.totalorder %s211, %s225
      %p227 = scmp.eq.s32.totalorder %s39, 0
      %p228 = por %p226, %p227
      %s230 = sadd.s32 %s229, 1
      %p233 = scmp.eq.s32.totalorder %s33, 1
      %p234 = scmp.ne.s32.totalorder %s229, %s231
      %p235 = scmp.eq.s32.totalorder %s33, 0
      %p236 = por %p234, %p235
      %p237 = scmp.ne.s32.totalorder %s229, %s231
      %p238 = scmp.eq.s32.totalorder %s38, 1
      %p239 = por %p237, %p238
      %p240 = scmp.ne.s32.totalorder %s231, %s232
      %p241 = scmp.eq.s32.totalorder %s38, 0
      %p242 = por %p240, %p241
      %p243 = scmp.ne.s32.totalorder %s231, %s232
      %p244 = scmp.eq.s32.totalorder %s39, 1
      %p245 = por %p243, %p244
      %p247 = scmp.ne.s32.totalorder %s232, %s246
      %p248 = scmp.eq.s32.totalorder %s39, 0
      %p249 = por %p247, %p248
      %s251 = sadd.s32 %s250, 1
      %p254 = scmp.eq.s32.totalorder %s33, 1
      %p255 = scmp.ne.s32.totalorder %s250, %s252
      %p256 = scmp.eq.s32.totalorder %s33, 0
      %p257 = por %p255, %p256
      %p258 = scmp.ne.s32.totalorder %s250, %s252
      %p259 = scmp.eq.s32.totalorder %s38, 1
      %p260 = por %p258, %p259
      %p261 = scmp.ne.s32.totalorder %s252, %s253
      %p262 = scmp.eq.s32.totalorder %s38, 0
      %p263 = por %p261, %p262
      %p264 = scmp.ne.s32.totalorder %s252, %s253
      %p265 = scmp.eq.s32.totalorder %s39, 1
      %p266 = por %p264, %p265
      %p268 = scmp.ne.s32.totalorder %s253, %s267
      %p269 = scmp.eq.s32.totalorder %s39, 0
      %p270 = por %p268, %p269
      %s272 = sadd.s32 %s271, 1
      %p275 = scmp.eq.s32.totalorder %s33, 1
      %p276 = scmp.ne.s32.totalorder %s271, %s273
      %p277 = scmp.eq.s32.totalorder %s33, 0
      %p278 = por %p276, %p277
      %p279 = scmp.ne.s32.totalorder %s271, %s273
      %p280 = scmp.eq.s32.totalorder %s38, 1
      %p281 = por %p279, %p280
      %p282 = scmp.ne.s32.totalorder %s273, %s274
      %p283 = scmp.eq.s32.totalorder %s38, 0
      %p284 = por %p282, %p283
      %p285 = scmp.ne.s32.totalorder %s273, %s274
      %p286 = scmp.eq.s32.totalorder %s39, 1
      %p287 = por %p285, %p286
      %p289 = scmp.ne.s32.totalorder %s274, %s288
      %p290 = scmp.eq.s32.totalorder %s39, 0
      %p291 = por %p289, %p290
      %s293 = sadd.s32 %s292, 1
      %p296 = scmp.eq.s32.totalorder %s33, 1
      %p297 = scmp.ne.s32.totalorder %s292, %s294
      %p298 = scmp.eq.s32.totalorder %s33, 0
      %p299 = por %p297, %p298
      %p300 = scmp.ne.s32.totalorder %s292, %s294
      %p301 = scmp.eq.s32.totalorder %s38, 1
      %p302 = por %p300, %p301
      %p303 = scmp.ne.s32.totalorder %s294, %s295
      %p304 = scmp.eq.s32.totalorder %s38, 0
      %p305 = por %p303, %p304
      %p306 = scmp.ne.s32.totalorder %s294, %s295
      %p307 = scmp.eq.s32.totalorder %s39, 1
      %p308 = por %p306, %p307
      %p310 = scmp.ne.s32.totalorder %s295, %s309
      %p311 = scmp.eq.s32.totalorder %s39, 0
      %p312 = por %p310, %p311
      %s314 = sadd.s32 %s313, 1
      %p317 = scmp.eq.s32.totalorder %s33, 1
      %p318 = scmp.ne.s32.totalorder %s313, %s315
      %p319 = scmp.eq.s32.totalorder %s33, 0
      %p320 = por %p318, %p319
      %p321 = scmp.ne.s32.totalorder %s313, %s315
      %p322 = scmp.eq.s32.totalorder %s38, 1
      %p323 = por %p321, %p322
      %p324 = scmp.ne.s32.totalorder %s315, %s316
      %p325 = scmp.eq.s32.totalorder %s38, 0
      %p326 = por %p324, %p325
      %p327 = scmp.ne.s32.totalorder %s315, %s316
      %p328 = scmp.eq.s32.totalorder %s39, 1
      %p329 = por %p327, %p328
      %p331 = scmp.ne.s32.totalorder %s316, %s330
      %p332 = scmp.eq.s32.totalorder %s39, 0
      %p333 = por %p331, %p332
      %s335 = sadd.s32 %s334, 1
      %p338 = scmp.eq.s32.totalorder %s33, 1
      %p339 = scmp.ne.s32.totalorder %s334, %s336
      %p340 = scmp.eq.s32.totalorder %s33, 0
      %p341 = por %p339, %p340
      %p342 = scmp.ne.s32.totalorder %s334, %s336
      %p343 = scmp.eq.s32.totalorder %s38, 1
      %p344 = por %p342, %p343
      %p345 = scmp.ne.s32.totalorder %s336, %s337
      %p346 = scmp.eq.s32.totalorder %s38, 0
      %p347 = por %p345, %p346
      %p348 = scmp.ne.s32.totalorder %s336, %s337
      %p349 = scmp.eq.s32.totalorder %s39, 1
      %p350 = por %p348, %p349
      %p352 = scmp.ne.s32.totalorder %s337, %s351
      %p353 = scmp.eq.s32.totalorder %s39, 0
      %p354 = por %p352, %p353
      %s356 = sadd.s32 %s355, 1
      %p359 = scmp.eq.s32.totalorder %s33, 1
      %p360 = scmp.ne.s32.totalorder %s355, %s357
      %p361 = scmp.eq.s32.totalorder %s33, 0
      %p362 = por %p360, %p361
      %p363 = scmp.ne.s32.totalorder %s355, %s357
      %p364 = scmp.eq.s32.totalorder %s38, 1
      %p365 = por %p363, %p364
      %p366 = scmp.ne.s32.totalorder %s357, %s358
      %p367 = scmp.eq.s32.totalorder %s38, 0
      %p368 = por %p366, %p367
      %p369 = scmp.ne.s32.totalorder %s357, %s358
      %p370 = scmp.eq.s32.totalorder %s39, 1
      %p371 = por %p369, %p370
      %p373 = scmp.ne.s32.totalorder %s358, %s372
      %p374 = scmp.eq.s32.totalorder %s39, 0
      %p375 = por %p373, %p374
      %s377 = sadd.s32 %s376, 1
      %p380 = scmp.eq.s32.totalorder %s33, 1
      %p381 = scmp.ne.s32.totalorder %s376, %s378
      %p382 = scmp.eq.s32.totalorder %s33, 0
      %p383 = por %p381, %p382
      %p384 = scmp.ne.s32.totalorder %s376, %s378
      %p385 = scmp.eq.s32.totalorder %s38, 1
      %p386 = por %p384, %p385
      %p387 = scmp.ne.s32.totalorder %s378, %s379
      %p388 = scmp.eq.s32.totalorder %s38, 0
      %p389 = por %p387, %p388
      %p390 = scmp.ne.s32.totalorder %s378, %s379
      %p391 = scmp.eq.s32.totalorder %s39, 1
      %p392 = por %p390, %p391
      %p394 = scmp.ne.s32.totalorder %s379, %s393
      %p395 = scmp.eq.s32.totalorder %s39, 0
      %p396 = por %p394, %p395
      %s398 = sadd.s32 %s397, 1
      %p401 = scmp.eq.s32.totalorder %s33, 1
      %p402 = scmp.ne.s32.totalorder %s397, %s399
      %p403 = scmp.eq.s32.totalorder %s33, 0
      %p404 = por %p402, %p403
      %p405 = scmp.ne.s32.totalorder %s397, %s399
      %p406 = scmp.eq.s32.totalorder %s38, 1
      %p407 = por %p405, %p406
      %p408 = scmp.ne.s32.totalorder %s399, %s400
      %p409 = scmp.eq.s32.totalorder %s38, 0
      %p410 = por %p408, %p409
      %p411 = scmp.ne.s32.totalorder %s399, %s400
      %p412 = scmp.eq.s32.totalorder %s39, 1
      %p413 = por %p411, %p412
      %p415 = scmp.ne.s32.totalorder %s400, %s414
      %p416 = scmp.eq.s32.totalorder %s39, 0
      %p417 = por %p415, %p416
      %s419 = sadd.s32 %s418, 1
      %p422 = scmp.eq.s32.totalorder %s33, 1
      %p423 = scmp.ne.s32.totalorder %s418, %s420
      %p424 = scmp.eq.s32.totalorder %s33, 0
      %p425 = por %p423, %p424
      %p426 = scmp.ne.s32.totalorder %s418, %s420
      %p427 = scmp.eq.s32.totalorder %s38, 1
      %p428 = por %p426, %p427
      %p429 = scmp.ne.s32.totalorder %s420, %s421
      %p430 = scmp.eq.s32.totalorder %s38, 0
      %p431 = por %p429, %p430
      %p432 = scmp.ne.s32.totalorder %s420, %s421
      %p433 = scmp.eq.s32.totalorder %s39, 1
      %p434 = por %p432, %p433
      %p436 = scmp.ne.s32.totalorder %s421, %s435
      %p437 = scmp.eq.s32.totalorder %s39, 0
      %p438 = por %p436, %p437
      %s440 = sadd.s32 %s439, 1
      %p443 = scmp.eq.s32.totalorder %s33, 1
      %p444 = scmp.ne.s32.totalorder %s439, %s441
      %p445 = scmp.eq.s32.totalorder %s33, 0
      %p446 = por %p444, %p445
      %p447 = scmp.ne.s32.totalorder %s439, %s441
      %p448 = scmp.eq.s32.totalorder %s38, 1
      %p449 = por %p447, %p448
      %p450 = scmp.ne.s32.totalorder %s441, %s442
      %p451 = scmp.eq.s32.totalorder %s38, 0
      %p452 = por %p450, %p451
      %p453 = scmp.ne.s32.totalorder %s441, %s442
      %p454 = scmp.eq.s32.totalorder %s39, 1
      %p455 = por %p453, %p454
      %p457 = scmp.ne.s32.totalorder %s442, %s456
      %p458 = scmp.eq.s32.totalorder %s39, 0
      %p459 = por %p457, %p458
      %s461 = sadd.s32 %s460, 1
      %p464 = scmp.eq.s32.totalorder %s33, 1
      %p465 = scmp.ne.s32.totalorder %s460, %s462
      %p466 = scmp.eq.s32.totalorder %s33, 0
      %p467 = por %p465, %p466
      %p468 = scmp.ne.s32.totalorder %s460, %s462
      %p469 = scmp.eq.s32.totalorder %s38, 1
      %p470 = por %p468, %p469
      %p471 = scmp.ne.s32.totalorder %s462, %s463
      %p472 = scmp.eq.s32.totalorder %s38, 0
      %p473 = por %p471, %p472
      %p474 = scmp.ne.s32.totalorder %s462, %s463
      %p475 = scmp.eq.s32.totalorder %s39, 1
      %p476 = por %p474, %p475
      %p478 = scmp.ne.s32.totalorder %s463, %s477
      %p479 = scmp.eq.s32.totalorder %s39, 0
      %p480 = por %p478, %p479
      %s482 = sadd.s32 %s481, 1
      %p485 = scmp.eq.s32.totalorder %s33, 1
      %p486 = scmp.ne.s32.totalorder %s481, %s483
      %p487 = scmp.eq.s32.totalorder %s33, 0
      %p488 = por %p486, %p487
      %p489 = scmp.ne.s32.totalorder %s481, %s483
      %p490 = scmp.eq.s32.totalorder %s38, 1
      %p491 = por %p489, %p490
      %p492 = scmp.ne.s32.totalorder %s483, %s484
      %p493 = scmp.eq.s32.totalorder %s38, 0
      %p494 = por %p492, %p493
      %p495 = scmp.ne.s32.totalorder %s483, %s484
      %p496 = scmp.eq.s32.totalorder %s39, 1
      %p497 = por %p495, %p496
      %p499 = scmp.ne.s32.totalorder %s484, %s498
      %p500 = scmp.eq.s32.totalorder %s39, 0
      %p501 = por %p499, %p500
      %s503 = sadd.s32 %s502, 1
      %p506 = scmp.eq.s32.totalorder %s33, 1
      %p507 = scmp.ne.s32.totalorder %s502, %s504
      %p508 = scmp.eq.s32.totalorder %s33, 0
      %p509 = por %p507, %p508
      %p510 = scmp.ne.s32.totalorder %s502, %s504
      %p511 = scmp.eq.s32.totalorder %s38, 1
      %p512 = por %p510, %p511
      %p513 = scmp.ne.s32.totalorder %s504, %s505
      %p514 = scmp.eq.s32.totalorder %s38, 0
      %p515 = por %p513, %p514
      %p516 = scmp.ne.s32.totalorder %s504, %s505
      %p517 = scmp.eq.s32.totalorder %s39, 1
      %p518 = por %p516, %p517
      %p520 = scmp.ne.s32.totalorder %s505, %s519
      %p521 = scmp.eq.s32.totalorder %s39, 0
      %p522 = por %p520, %p521
      %s524 = sadd.s32 %s523, 1
      %p527 = scmp.eq.s32.totalorder %s33, 1
      %p528 = scmp.ne.s32.totalorder %s523, %s525
      %p529 = scmp.eq.s32.totalorder %s33, 0
      %p530 = por %p528, %p529
      %p531 = scmp.ne.s32.totalorder %s523, %s525
      %p532 = scmp.eq.s32.totalorder %s38, 1
      %p533 = por %p531, %p532
      %p534 = scmp.ne.s32.totalorder %s525, %s526
      %p535 = scmp.eq.s32.totalorder %s38, 0
      %p536 = por %p534, %p535
      %p537 = scmp.ne.s32.totalorder %s525, %s526
      %p538 = scmp.eq.s32.totalorder %s39, 1
      %p539 = por %p537, %p538
      %p541 = scmp.ne.s32.totalorder %s526, %s540
      %p542 = scmp.eq.s32.totalorder %s39, 0
      %p543 = por %p541, %p542
      %s545 = sadd.s32 %s544, 1
      %p548 = scmp.eq.s32.totalorder %s33, 1
      %p549 = scmp.ne.s32.totalorder %s544, %s546
      %p550 = scmp.eq.s32.totalorder %s33, 0
      %p551 = por %p549, %p550
      %p552 = scmp.ne.s32.totalorder %s544, %s546
      %p553 = scmp.eq.s32.totalorder %s38, 1
      %p554 = por %p552, %p553
      %p555 = scmp.ne.s32.totalorder %s546, %s547
      %p556 = scmp.eq.s32.totalorder %s38, 0
      %p557 = por %p555, %p556
      %p558 = scmp.ne.s32.totalorder %s546, %s547
      %p559 = scmp.eq.s32.totalorder %s39, 1
      %p560 = por %p558, %p559
      %p562 = scmp.ne.s32.totalorder %s547, %s561
      %p563 = scmp.eq.s32.totalorder %s39, 0
      %p564 = por %p562, %p563
      %s565 = ssub.s32 %s33, %s40
      %p566 = scmp.eq.s32.totalorder %s565, 0
      %s568 = sadd.s32 %s567, 1
      %s569 = scalar_select %p566, %s567, %s568
      %p572 = pneg %p566
      %p573 = scmp.eq.s32.totalorder %s33, 1
      %p574 = por %p572, %p573
      %p575 = scmp.ne.s32.totalorder %s567, %s570
      %p576 = scmp.eq.s32.totalorder %s33, 0
      %p577 = por %p575, %p576
      %p578 = scmp.ne.s32.totalorder %s567, %s570
      %p579 = scmp.eq.s32.totalorder %s38, 1
      %p580 = por %p578, %p579
      %p581 = scmp.ne.s32.totalorder %s570, %s571
      %p582 = scmp.eq.s32.totalorder %s38, 0
      %p583 = por %p581, %p582
      %p584 = scmp.ne.s32.totalorder %s570, %s571
      %p585 = scmp.eq.s32.totalorder %s39, 1
      %p586 = por %p584, %p585
      %p588 = scmp.ne.s32.totalorder %s571, %s587
      %p589 = scmp.eq.s32.totalorder %s39, 0
      %p590 = por %p588, %p589
      %p591 = scmp.le.s32.totalorder 1, %s33
      %p592 = scmp.lt.s32.totalorder %s33, 3
      %p593 = pnand %p591, %p592
      %p594 = pneg %p593
      // Predicated region
      $region9: #{tpu_custom_call.1} parent=5 // pred_check
        _
      $region10: #{tpu_custom_call.1} parent=5 // pred_check_branch
        %596 = sbr.rel (%p593) target = $region12
      $region11: #{tpu_custom_call.1} parent=5 // pred_region
        %s597 = ssub.s32 %s33, 1
        // Predicated region
        $region13: #{tpu_custom_call.1} parent=11 // pred_check
          %p598 = pneg %p158
        $region14: #{tpu_custom_call.1} parent=11 // pred_check_branch
          %600 = sbr.rel (%p598) target = $region16
        $region15: #{tpu_custom_call.1} parent=11 // pred_region
          _
        $region16: #{tpu_custom_call.1} parent=11 // pred_fallthru
          _
        // Predicated region
        $region17: #{tpu_custom_call.1} parent=11 // pred_check
          %p601 = pneg %p179
        $region18: #{tpu_custom_call.1} parent=11 // pred_check_branch
          %603 = sbr.rel (%p601) target = $region20
        $region19: #{tpu_custom_call.1} parent=11 // pred_region
          _
        $region20: #{tpu_custom_call.1} parent=11 // pred_fallthru
          _
        // Predicated region
        $region21: #{tpu_custom_call.1} parent=11 // pred_check
          %p604 = pneg %p200
        $region22: #{tpu_custom_call.1} parent=11 // pred_check_branch
          %606 = sbr.rel (%p604) target = $region24
        $region23: #{tpu_custom_call.1} parent=11 // pred_region
          _
        $region24: #{tpu_custom_call.1} parent=11 // pred_fallthru
          _
        // Predicated region
        $region25: #{tpu_custom_call.1} parent=11 // pred_check
          %p607 = pneg %p221
        $region26: #{tpu_custom_call.1} parent=11 // pred_check_branch
          %609 = sbr.rel (%p607) target = $region28
        $region27: #{tpu_custom_call.1} parent=11 // pred_region
          _
        $region28: #{tpu_custom_call.1} parent=11 // pred_fallthru
          _
        // Predicated region
        $region29: #{tpu_custom_call.1} parent=11 // pred_check
          %p610 = pneg %p242
        $region30: #{tpu_custom_call.1} parent=11 // pred_check_branch
          %612 = sbr.rel (%p610) target = $region32
        $region31: #{tpu_custom_call.1} parent=11 // pred_region
          _
        $region32: #{tpu_custom_call.1} parent=11 // pred_fallthru
          _
        // Predicated region
        $region33: #{tpu_custom_call.1} parent=11 // pred_check
          %p613 = pneg %p263
        $region34: #{tpu_custom_call.1} parent=11 // pred_check_branch
          %615 = sbr.rel (%p613) target = $region36
        $region35: #{tpu_custom_call.1} parent=11 // pred_region
          _
        $region36: #{tpu_custom_call.1} parent=11 // pred_fallthru
          _
        // Predicated region
        $region37: #{tpu_custom_call.1} parent=11 // pred_check
          %p616 = pneg %p284
        $region38: #{tpu_custom_call.1} parent=11 // pred_check_branch
          %618 = sbr.rel (%p616) target = $region40
        $region39: #{tpu_custom_call.1} parent=11 // pred_region
          _
        $region40: #{tpu_custom_call.1} parent=11 // pred_fallthru
          _
        // Predicated region
        $region41: #{tpu_custom_call.1} parent=11 // pred_check
          %p619 = pneg %p305
        $region42: #{tpu_custom_call.1} parent=11 // pred_check_branch
          %621 = sbr.rel (%p619) target = $region44
        $region43: #{tpu_custom_call.1} parent=11 // pred_region
          _
        $region44: #{tpu_custom_call.1} parent=11 // pred_fallthru
          _
        // Predicated region
        $region45: #{tpu_custom_call.1} parent=11 // pred_check
          %p622 = pneg %p326
        $region46: #{tpu_custom_call.1} parent=11 // pred_check_branch
          %624 = sbr.rel (%p622) target = $region48
        $region47: #{tpu_custom_call.1} parent=11 // pred_region
          _
        $region48: #{tpu_custom_call.1} parent=11 // pred_fallthru
          _
        // Predicated region
        $region49: #{tpu_custom_call.1} parent=11 // pred_check
          %p625 = pneg %p347
        $region50: #{tpu_custom_call.1} parent=11 // pred_check_branch
          %627 = sbr.rel (%p625) target = $region52
        $region51: #{tpu_custom_call.1} parent=11 // pred_region
          _
        $region52: #{tpu_custom_call.1} parent=11 // pred_fallthru
          _
        // Predicated region
        $region53: #{tpu_custom_call.1} parent=11 // pred_check
          %p628 = pneg %p368
        $region54: #{tpu_custom_call.1} parent=11 // pred_check_branch
          %630 = sbr.rel (%p628) target = $region56
        $region55: #{tpu_custom_call.1} parent=11 // pred_region
          _
        $region56: #{tpu_custom_call.1} parent=11 // pred_fallthru
          _
        // Predicated region
        $region57: #{tpu_custom_call.1} parent=11 // pred_check
          %p631 = pneg %p389
        $region58: #{tpu_custom_call.1} parent=11 // pred_check_branch
          %633 = sbr.rel (%p631) target = $region60
        $region59: #{tpu_custom_call.1} parent=11 // pred_region
          _
        $region60: #{tpu_custom_call.1} parent=11 // pred_fallthru
          _
        // Predicated region
        $region61: #{tpu_custom_call.1} parent=11 // pred_check
          %p634 = pneg %p410
        $region62: #{tpu_custom_call.1} parent=11 // pred_check_branch
          %636 = sbr.rel (%p634) target = $region64
        $region63: #{tpu_custom_call.1} parent=11 // pred_region
          _
        $region64: #{tpu_custom_call.1} parent=11 // pred_fallthru
          _
        // Predicated region
        $region65: #{tpu_custom_call.1} parent=11 // pred_check
          %p637 = pneg %p431
        $region66: #{tpu_custom_call.1} parent=11 // pred_check_branch
          %639 = sbr.rel (%p637) target = $region68
        $region67: #{tpu_custom_call.1} parent=11 // pred_region
          _
        $region68: #{tpu_custom_call.1} parent=11 // pred_fallthru
          _
        // Predicated region
        $region69: #{tpu_custom_call.1} parent=11 // pred_check
          %p640 = pneg %p452
        $region70: #{tpu_custom_call.1} parent=11 // pred_check_branch
          %642 = sbr.rel (%p640) target = $region72
        $region71: #{tpu_custom_call.1} parent=11 // pred_region
          _
        $region72: #{tpu_custom_call.1} parent=11 // pred_fallthru
          _
        // Predicated region
        $region73: #{tpu_custom_call.1} parent=11 // pred_check
          %p643 = pneg %p473
        $region74: #{tpu_custom_call.1} parent=11 // pred_check_branch
          %645 = sbr.rel (%p643) target = $region76
        $region75: #{tpu_custom_call.1} parent=11 // pred_region
          _
        $region76: #{tpu_custom_call.1} parent=11 // pred_fallthru
          _
        // Predicated region
        $region77: #{tpu_custom_call.1} parent=11 // pred_check
          %p646 = pneg %p494
        $region78: #{tpu_custom_call.1} parent=11 // pred_check_branch
          %648 = sbr.rel (%p646) target = $region80
        $region79: #{tpu_custom_call.1} parent=11 // pred_region
          _
        $region80: #{tpu_custom_call.1} parent=11 // pred_fallthru
          _
        // Predicated region
        $region81: #{tpu_custom_call.1} parent=11 // pred_check
          %p649 = pneg %p515
        $region82: #{tpu_custom_call.1} parent=11 // pred_check_branch
          %651 = sbr.rel (%p649) target = $region84
        $region83: #{tpu_custom_call.1} parent=11 // pred_region
          _
        $region84: #{tpu_custom_call.1} parent=11 // pred_fallthru
          _
        // Predicated region
        $region85: #{tpu_custom_call.1} parent=11 // pred_check
          %p652 = pneg %p536
        $region86: #{tpu_custom_call.1} parent=11 // pred_check_branch
          %654 = sbr.rel (%p652) target = $region88
        $region87: #{tpu_custom_call.1} parent=11 // pred_region
          _
        $region88: #{tpu_custom_call.1} parent=11 // pred_fallthru
          _
        // Predicated region
        $region89: #{tpu_custom_call.1} parent=11 // pred_check
          %p655 = pneg %p557
        $region90: #{tpu_custom_call.1} parent=11 // pred_check_branch
          %657 = sbr.rel (%p655) target = $region92
        $region91: #{tpu_custom_call.1} parent=11 // pred_region
          _
        $region92: #{tpu_custom_call.1} parent=11 // pred_fallthru
          _
      $region12: #{tpu_custom_call.1} parent=5 // pred_fallthru
        _
      %p658 = scmp.lt.s32.totalorder %s33, 2
      // Predicated region
      $region93: #{tpu_custom_call.1} parent=5 // pred_check
        %p659 = pneg %p658
      $region94: #{tpu_custom_call.1} parent=5 // pred_check_branch
        %661 = sbr.rel (%p659) target = $region96
      $region95: #{tpu_custom_call.1} parent=5 // pred_region
        // Predicated region
        $region97: #{tpu_custom_call.1} parent=95 // pred_check
          %p662 = pneg %p53
        $region98: #{tpu_custom_call.1} parent=95 // pred_check_branch
          %664 = sbr.rel (%p662) target = $region100
        $region99: #{tpu_custom_call.1} parent=95 // pred_region
          %p665 = scmp.lt.s32.totalorder %s33, 1
          %s666 = scalar_select %p665, %s33, 1
          %s667 = smul.addr %s666, 8
          %s668 = scalar_lea.vmem %s0, %s667
        $region100: #{tpu_custom_call.1} parent=95 // pred_fallthru
          _
        // Predicated region
        $region101: #{tpu_custom_call.1} parent=95 // pred_check
          %p669 = pneg %p79
        $region102: #{tpu_custom_call.1} parent=95 // pred_check_branch
          %671 = sbr.rel (%p669) target = $region104
        $region103: #{tpu_custom_call.1} parent=95 // pred_region
          %s672 = smul.u32 2, %s33
          %p673 = scmp.lt.s32.totalorder %s672, 3
          %s674 = scalar_select %p673, %s672, 3
          %s675 = smul.addr %s674, 8
          %s676 = scalar_lea.vmem %s1, %s675
          %s677 = smul.u32 2, %s33
        $region104: #{tpu_custom_call.1} parent=95 // pred_fallthru
          _
        // Predicated region
        $region105: #{tpu_custom_call.1} parent=95 // pred_check
          %p678 = pneg %p105
        $region106: #{tpu_custom_call.1} parent=95 // pred_check_branch
          %680 = sbr.rel (%p678) target = $region108
        $region107: #{tpu_custom_call.1} parent=95 // pred_region
          %p681 = scmp.lt.s32.totalorder %s33, 1
          %s682 = scalar_select %p681, %s33, 1
          %s683 = smul.addr %s682, 8
          %s684 = scalar_lea.vmem %s2, %s683
        $region108: #{tpu_custom_call.1} parent=95 // pred_fallthru
          _
        // Predicated region
        $region109: #{tpu_custom_call.1} parent=95 // pred_check
          %p685 = pneg %p131
        $region110: #{tpu_custom_call.1} parent=95 // pred_check_branch
          %687 = sbr.rel (%p685) target = $region112
        $region111: #{tpu_custom_call.1} parent=95 // pred_region
          %p688 = scmp.lt.s32.totalorder %s33, 1
          %s689 = scalar_select %p688, %s33, 1
          %s690 = scalar_lea.vmem %s3, %s689
        $region112: #{tpu_custom_call.1} parent=95 // pred_fallthru
          _
      $region96: #{tpu_custom_call.1} parent=5 // pred_fallthru
        _
      %p691 = scmp.le.s32.totalorder 1, %s33
      %p692 = scmp.lt.s32.totalorder %s33, 3
      %p693 = pnand %p691, %p692
      %p694 = pneg %p693
      // Predicated region
      $region113: #{tpu_custom_call.1} parent=5 // pred_check
        _
      $region114: #{tpu_custom_call.1} parent=5 // pred_check_branch
        %696 = sbr.rel (%p693) target = $region116
      $region115: #{tpu_custom_call.1} parent=5 // pred_region
        %s697 = ssub.s32 %s33, 1
        %p698 = scmp.lt.s32.totalorder %s38, 1
        %s699 = scalar_select %p698, %s38, 1
        %s700 = smul.addr %s699, 8
        %s701 = scalar_lea.vmem %s0, %s700
        %p702 = pneg %p59
        %p703 = pneg %p56
        %s704 = smul.u32 2, %s38
        %p705 = scmp.lt.s32.totalorder %s704, 3
        %s706 = scalar_select %p705, %s704, 3
        %s707 = smul.addr %s706, 8
        %s708 = scalar_lea.vmem %s1, %s707
        %p709 = pneg %p85
        %p710 = pneg %p82
        %p711 = scmp.lt.s32.totalorder %s38, 1
        %s712 = scalar_select %p711, %s38, 1
        %s713 = smul.addr %s712, 8
        %s714 = scalar_lea.vmem %s2, %s713
        %p715 = pneg %p111
        %p716 = pneg %p108
        %p717 = scmp.lt.s32.totalorder %s38, 1
        %s718 = scalar_select %p717, %s38, 1
        %s719 = scalar_lea.vmem %s3, %s718
        %p720 = pneg %p137
        %p721 = pneg %p134
        %p722 = pneg %p158
        %p723 = pneg %p155
        %p724 = pneg %p179
        %p725 = pneg %p176
        %p726 = pneg %p200
        %p727 = pneg %p197
        %p728 = pneg %p221
        %p729 = pneg %p218
        %p730 = pneg %p242
        %p731 = pneg %p239
        %p732 = pneg %p263
        %p733 = pneg %p260
        %p734 = pneg %p284
        %p735 = pneg %p281
        %p736 = pneg %p305
        %p737 = pneg %p302
        %p738 = pneg %p326
        %p739 = pneg %p323
        %p740 = pneg %p347
        %p741 = pneg %p344
        %p742 = pneg %p368
        %p743 = pneg %p365
        %p744 = pneg %p389
        %p745 = pneg %p386
        %p746 = pneg %p410
        %p747 = pneg %p407
        %p748 = pneg %p431
        %p749 = pneg %p428
        %p750 = pneg %p452
        %p751 = pneg %p449
        %p752 = pneg %p473
        %p753 = pneg %p470
        %p754 = pneg %p494
        %p755 = pneg %p491
        %p756 = pneg %p515
        %p757 = pneg %p512
        %p758 = pneg %p536
        %p759 = pneg %p533
        %p760 = pneg %p557
        %p761 = pneg %p554
        %p762 = pneg %p583
        %p763 = pneg %p580
        %s764 = sand.u32 %s570, 1
        %s765 = scalar_lea.sflag [#allocation3], %s764
        %s766 = sand.u32 %s570, 1
        %s767 = smul.addr %s766, 8
        %s768 = scalar_lea.vmem [#allocation2], %s767
        %p769 = scmp.lt.s32.totalorder %s38, 1
        %s770 = scalar_select %p769, %s38, 1
        %s771 = smul.addr %s770, 8
        %s772 = scalar_lea.vmem %s0, %s771
        %s773 = smul.u32 2, %s38
        %p774 = scmp.lt.s32.totalorder %s773, 3
        %s775 = scalar_select %p774, %s773, 3
        %s776 = smul.addr %s775, 8
        %s777 = scalar_lea.vmem %s1, %s776
        %s778 = smul.u32 2, %s38
        %p779 = scmp.lt.s32.totalorder %s38, 1
        %s780 = scalar_select %p779, %s38, 1
        %s781 = smul.addr %s780, 8
        %s782 = scalar_lea.vmem %s2, %s781
        %p783 = scmp.lt.s32.totalorder %s38, 1
        %s784 = scalar_select %p783, %s38, 1
        %s785 = scalar_lea.vmem %s3, %s784
        %v787 = vld [vmem:[%s772] sm:$0xff]
        %v788 = vld [vmem:[%s777] sm:$0xff]
        %v789 = vld [vmem:[%s777 + $0x8] sm:$0xff]
        %v790 = vld [vmem:[%s782] sm:$0xff]
        %vm791 = vcmp.eq.s32.totalorder %v790, 0
        %v792 = vsel %vm791, -1e+09, 0.0
        %v793 = vld [vmem:[%s785] sm:$0x1]
        %vm794 = vcmp.eq.s32.totalorder %v793, 0
        %v795 = vsel %vm794, -1e+09, 0.0
        %v796 = vld [vmem:[%s4] sm:$0x1]
        %v797 = vld [vmem:[%s5] sm:$0x1]
        %vm798 = vcmask 261120
        %v799 = vsel %vm798, %v787, 0.0
        %800 = vadd.xlane.f32.xlu0 %v799
        %v801 = vpop.xlane.xlu0 %800
        %v802 = vrcp.pop 32.0
        %v803 = vmul.f32 %v801, %v802
        %v804 = vsub.f32 %v787, %v803
        %v805 = vmul.f32 %v804, %v804
        %v806 = vsel %vm798, %v805, 0.0
        %807 = vadd.xlane.f32.xlu0 %v806
        %v808 = vpop.xlane.xlu0 %807
        %v809 = vmul.f32 %v808, 0.032258064
        %v810 = vrsqrt.pop %v809
        %v811 = vmul.f32 %v809, %v810
        %vm812 = vcmp.eq.f32.partialorder %v809, inf
        %v813 = vsel %vm812, %v809, %v811
        %vm814 = vcmp.eq.f32.partialorder %v809, 0.0
        %v815 = vand.u32 %v809, 2147483648
        %v816 = vsel %vm814, %v815, %v813
        %v817 = vadd.f32 %v816, 1e-06
        %v818 = vrcp.pop %v817
        %v820 = vlaneseq
        %v821 = vshrl.u32 %v820, 7
        %v822 = vsub.s32 0, %v821
        %v823 = vrot.slane %v796, %v822
        %v825 = vmul.f32 %v823, %v804
        %v826 = vmul.f32 %v825, %v818
        %v828 = vlaneseq
        %v829 = vshrl.u32 %v828, 7
        %v830 = vsub.s32 0, %v829
        %v831 = vrot.slane %v797, %v830
        %v833 = vadd.f32 %v826, %v831
        %v834 = vld [vmem:[%s10] sm:$0xff]
        %v835 = vld [vmem:[%s10 + $0x8] sm:$0xff]
        %v836 = vld [vmem:[%s10 + $0x10] sm:$0xff]
        %v837 = vld [vmem:[%s10 + $0x18] sm:$0xff]
        %v838 = vld [vmem:[%s11] sm:$0x1]
        %v840 = vlaneseq
        %v841 = vshrl.u32 %v840, 7
        %v842 = vsub.s32 0, %v841
        %v843 = vrot.slane %v838, %v842
        %v846 = vsel %vm798, %v833, 0
        %848 = vmatprep.subr.mxu0 0.0
        %849 = vmatpush1.msra.mxu0 0.0
        %850 = vmatprep.subr.mxu0 0.0
        %851 = vmatpush1.msra.mxu0 0.0
        %852 = vmatprep.subr.mxu0 0.0
        %853 = vmatpush1.msra.mxu0 0.0
        %854 = vmatprep.subr.mxu0 0.0
        %855 = vmatpush1.msra.mxu0 0.0
        %856 = vmatprep.subr.mxu0 0.0
        %857 = vmatpush1.msra.mxu0 0.0
        %858 = vmatprep.subr.mxu0 0.0
        %859 = vmatpush1.msra.mxu0 0.0
        %860 = vmatprep.subr.mxu0 0.0
        %861 = vmatpush1.msra.mxu0 0.0
        %862 = vmatprep.subr.mxu0 0.0
        %863 = vmatpush1.msra.mxu0 0.0
        %864 = vmatprep.subr.mxu0 0.0
        %865 = vmatpush1.msra.mxu0 0.0
        %866 = vmatprep.subr.mxu0 0.0
        %867 = vmatpush1.msra.mxu0 0.0
        %868 = vmatprep.subr.mxu0 0.0
        %869 = vmatpush1.msra.mxu0 0.0
        %870 = vmatprep.subr.mxu0 0.0
        %871 = vmatpush1.msra.mxu0 0.0
        %872 = vmatprep.subr.mxu0 0.0
        %873 = vmatpush1.msra.mxu0 %v837
        %874 = vmatprep.subr.mxu0 0.0
        %875 = vmatpush1.msra.mxu0 %v836
        %876 = vmatprep.subr.mxu0 0.0
        %877 = vmatpush1.msra.mxu0 %v835
        %878 = vmatprep.subr.mxu0 0.0
        %879 = vmatpush1.msra.mxu0 %v834
        %880 = vmatprep.subr.mxu0 0.0
        %881 = vmatpush2.msra.mxu0 0.0
        %882 = vmatprep.subr.mxu0 0.0
        %883 = vmatpush2.msra.mxu0 0.0
        %884 = vmatprep.subr.mxu0 0.0
        %885 = vmatpush2.msra.mxu0 0.0
        %886 = vmatprep.subr.mxu0 0.0
        %887 = vmatpush2.msra.mxu0 0.0
        %888 = vmatprep.subr.mxu0 0.0
        %889 = vmatpush2.msra.mxu0 0.0
        %890 = vmatprep.subr.mxu0 0.0
        %891 = vmatpush2.msra.mxu0 0.0
        %892 = vmatprep.subr.mxu0 0.0
        %893 = vmatpush2.msra.mxu0 0.0
        %894 = vmatprep.subr.mxu0 0.0
        %895 = vmatpush2.msra.mxu0 0.0
        %896 = vmatprep.subr.mxu0 0.0
        %897 = vmatpush2.msra.mxu0 0.0
        %898 = vmatprep.subr.mxu0 0.0
        %899 = vmatpush2.msra.mxu0 0.0
        %900 = vmatprep.subr.mxu0 0.0
        %901 = vmatpush2.msra.mxu0 0.0
        %902 = vmatprep.subr.mxu0 0.0
        %903 = vmatpush2.msra.mxu0 0.0
        %904 = vmatprep.subr.mxu0 0.0
        %905 = vmatpush2.msra.mxu0 0.0
        %906 = vmatprep.subr.mxu0 0.0
        %907 = vmatpush2.msra.mxu0 0.0
        %908 = vmatprep.subr.mxu0 0.0
        %909 = vmatpush2.msra.mxu0 0.0
        %910 = vmatprep.subr.mxu0 0.0
        %911 = vmatpush2.msra.mxu0 0.0
        %912 = vmatprep.mubr.f32.mxu0 0.0
        %913 = vmatmul.mubr.f32.gmra.mxu0 %v846
        %v914 = vpop.f32.mrf.mxu0
        %v915 = vadd.f32 %v843, %v914
        %v916 = vpop.f32.mrf.mxu0
        %917 = vdwg.mxu0
        %v918 = vld [vmem:[%s12] sm:$0xff]
        %v919 = vld [vmem:[%s12 + $0x8] sm:$0xff]
        %v920 = vld [vmem:[%s12 + $0x10] sm:$0xff]
        %v921 = vld [vmem:[%s12 + $0x18] sm:$0xff]
        %v922 = vld [vmem:[%s13] sm:$0x1]
        %924 = vrot.lane.b32.xlu0 %v915, 120
        %v925 = vpop.permute.xlu0 %924
        %926 = vrot.lane.b32.xlu0 %v915, 112
        %v927 = vpop.permute.xlu0 %926
        %928 = vrot.lane.b32.xlu0 %v915, 104
        %v929 = vpop.permute.xlu0 %928
        %930 = vrot.lane.b32.xlu0 %v915, 96
        %v931 = vpop.permute.xlu0 %930
        %vm932 = vcmask 64512
        %v933 = vsel %vm932, %v915, 0
        %v935 = vsel %vm932, %v931, 0
        %937 = vmatprep.subr.mxu0 0.0
        %938 = vmatpush1.xpose.msra.mxu0 0.0
        %939 = vmatprep.subr.mxu0 0.0
        %940 = vmatpush1.xpose.msra.mxu0 0.0
        %941 = vmatprep.subr.mxu0 0.0
        %942 = vmatpush1.xpose.msra.mxu0 0.0
        %943 = vmatprep.subr.mxu0 0.0
        %944 = vmatpush1.xpose.msra.mxu0 0.0
        %945 = vmatprep.subr.mxu0 0.0
        %946 = vmatpush1.xpose.msra.mxu0 0.0
        %947 = vmatprep.subr.mxu0 0.0
        %948 = vmatpush1.xpose.msra.mxu0 0.0
        %949 = vmatprep.subr.mxu0 0.0
        %950 = vmatpush1.xpose.msra.mxu0 0.0
        %951 = vmatprep.subr.mxu0 0.0
        %952 = vmatpush1.xpose.msra.mxu0 0.0
        %953 = vmatprep.subr.mxu0 0.0
        %954 = vmatpush1.xpose.msra.mxu0 0.0
        %955 = vmatprep.subr.mxu0 0.0
        %956 = vmatpush1.xpose.msra.mxu0 0.0
        %957 = vmatprep.subr.mxu0 0.0
        %958 = vmatpush1.xpose.msra.mxu0 0.0
        %959 = vmatprep.subr.mxu0 0.0
        %960 = vmatpush1.xpose.msra.mxu0 0.0
        %961 = vmatprep.subr.mxu0 0.0
        %962 = vmatpush1.xpose.msra.mxu0 0.0
        %963 = vmatprep.subr.mxu0 0.0
        %964 = vmatpush1.xpose.msra.mxu0 0.0
        %965 = vmatprep.subr.mxu0 0.0
        %966 = vmatpush1.xpose.msra.mxu0 0.0
        %967 = vmatprep.subr.mxu0 0.0
        %968 = vmatpush1.xpose.msra.mxu0 %v935
        %969 = vmatprep.subr.mxu0 0.0
        %970 = vmatpush2.xpose.msra.mxu0 0.0
        %971 = vmatprep.subr.mxu0 0.0
        %972 = vmatpush2.xpose.msra.mxu0 0.0
        %973 = vmatprep.subr.mxu0 0.0
        %974 = vmatpush2.xpose.msra.mxu0 0.0
        %975 = vmatprep.subr.mxu0 0.0
        %976 = vmatpush2.xpose.msra.mxu0 0.0
        %977 = vmatprep.subr.mxu0 0.0
        %978 = vmatpush2.xpose.msra.mxu0 0.0
        %979 = vmatprep.subr.mxu0 0.0
        %980 = vmatpush2.xpose.msra.mxu0 0.0
        %981 = vmatprep.subr.mxu0 0.0
        %982 = vmatpush2.xpose.msra.mxu0 0.0
        %983 = vmatprep.subr.mxu0 0.0
        %984 = vmatpush2.xpose.msra.mxu0 0.0
        %985 = vmatprep.subr.mxu0 0.0
        %986 = vmatpush2.xpose.msra.mxu0 0.0
        %987 = vmatprep.subr.mxu0 0.0
        %988 = vmatpush2.xpose.msra.mxu0 0.0
        %989 = vmatprep.subr.mxu0 0.0
        %990 = vmatpush2.xpose.msra.mxu0 0.0
        %991 = vmatprep.subr.mxu0 0.0
        %992 = vmatpush2.xpose.msra.mxu0 0.0
        %993 = vmatprep.subr.mxu0 0.0
        %994 = vmatpush2.xpose.msra.mxu0 0.0
        %995 = vmatprep.subr.mxu0 0.0
        %996 = vmatpush2.xpose.msra.mxu0 0.0
        %997 = vmatprep.subr.mxu0 0.0
        %998 = vmatpush2.xpose.msra.mxu0 0.0
        %999 = vmatprep.subr.mxu0 0.0
        %1000 = vmatpush2.xpose.msra.mxu0 0.0
        %1001 = vmatprep.mubr.f32.mxu0 0.0
        %1002 = vmatmul.mubr.f32.gmra.mxu0 %v933
        %v1003 = vpop.f32.mrf.mxu0
        %v1004 = vadd.f32 %v792, %v1003
        %v1005 = vpop.f32.mrf.mxu0
        %1006 = vdwg.mxu0
        %1007 = vrot.lane.b32.xlu0 %v925, 96
        %v1008 = vpop.permute.xlu0 %1007
        %v1009 = vsel %vm932, %v925, 0
        %v1011 = vsel %vm932, %v1008, 0
        %1013 = vmatprep.subr.mxu0 0.0
        %1014 = vmatpush1.xpose.msra.mxu0 0.0
        %1015 = vmatprep.subr.mxu0 0.0
        %1016 = vmatpush1.xpose.msra.mxu0 0.0
        %1017 = vmatprep.subr.mxu0 0.0
        %1018 = vmatpush1.xpose.msra.mxu0 0.0
        %1019 = vmatprep.subr.mxu0 0.0
        %1020 = vmatpush1.xpose.msra.mxu0 0.0
        %1021 = vmatprep.subr.mxu0 0.0
        %1022 = vmatpush1.xpose.msra.mxu0 0.0
        %1023 = vmatprep.subr.mxu0 0.0
        %1024 = vmatpush1.xpose.msra.mxu0 0.0
        %1025 = vmatprep.subr.mxu0 0.0
        %1026 = vmatpush1.xpose.msra.mxu0 0.0
        %1027 = vmatprep.subr.mxu0 0.0
        %1028 = vmatpush1.xpose.msra.mxu0 0.0
        %1029 = vmatprep.subr.mxu0 0.0
        %1030 = vmatpush1.xpose.msra.mxu0 0.0
        %1031 = vmatprep.subr.mxu0 0.0
        %1032 = vmatpush1.xpose.msra.mxu0 0.0
        %1033 = vmatprep.subr.mxu0 0.0
        %1034 = vmatpush1.xpose.msra.mxu0 0.0
        %1035 = vmatprep.subr.mxu0 0.0
        %1036 = vmatpush1.xpose.msra.mxu0 0.0
        %1037 = vmatprep.subr.mxu0 0.0
        %1038 = vmatpush1.xpose.msra.mxu0 0.0
        %1039 = vmatprep.subr.mxu0 0.0
        %1040 = vmatpush1.xpose.msra.mxu0 0.0
        %1041 = vmatprep.subr.mxu0 0.0
        %1042 = vmatpush1.xpose.msra.mxu0 0.0
        %1043 = vmatprep.subr.mxu0 0.0
        %1044 = vmatpush1.xpose.msra.mxu0 %v1011
        %1045 = vmatprep.subr.mxu0 0.0
        %1046 = vmatpush2.xpose.msra.mxu0 0.0
        %1047 = vmatprep.subr.mxu0 0.0
        %1048 = vmatpush2.xpose.msra.mxu0 0.0
        %1049 = vmatprep.subr.mxu0 0.0
        %1050 = vmatpush2.xpose.msra.mxu0 0.0
        %1051 = vmatprep.subr.mxu0 0.0
        %1052 = vmatpush2.xpose.msra.mxu0 0.0
        %1053 = vmatprep.subr.mxu0 0.0
        %1054 = vmatpush2.xpose.msra.mxu0 0.0
        %1055 = vmatprep.subr.mxu0 0.0
        %1056 = vmatpush2.xpose.msra.mxu0 0.0
        %1057 = vmatprep.subr.mxu0 0.0
        %1058 = vmatpush2.xpose.msra.mxu0 0.0
        %1059 = vmatprep.subr.mxu0 0.0
        %1060 = vmatpush2.xpose.msra.mxu0 0.0
        %1061 = vmatprep.subr.mxu0 0.0
        %1062 = vmatpush2.xpose.msra.mxu0 0.0
        %1063 = vmatprep.subr.mxu0 0.0
        %1064 = vmatpush2.xpose.msra.mxu0 0.0
        %1065 = vmatprep.subr.mxu0 0.0
        %1066 = vmatpush2.xpose.msra.mxu0 0.0
        %1067 = vmatprep.subr.mxu0 0.0
        %1068 = vmatpush2.xpose.msra.mxu0 0.0
        %1069 = vmatprep.subr.mxu0 0.0
        %1070 = vmatpush2.xpose.msra.mxu0 0.0
        %1071 = vmatprep.subr.mxu0 0.0
        %1072 = vmatpush2.xpose.msra.mxu0 0.0
        %1073 = vmatprep.subr.mxu0 0.0
        %1074 = vmatpush2.xpose.msra.mxu0 0.0
        %1075 = vmatprep.subr.mxu0 0.0
        %1076 = vmatpush2.xpose.msra.mxu0 0.0
        %1077 = vmatprep.mubr.f32.mxu0 0.0
        %1078 = vmatmul.mubr.f32.gmra.mxu0 %v1009
        %v1079 = vpop.f32.mrf.mxu0
        %v1080 = vadd.f32 %v792, %v1079
        %v1081 = vpop.f32.mrf.mxu0
        %1082 = vdwg.mxu0
        %1083 = vrot.lane.b32.xlu0 %v927, 96
        %v1084 = vpop.permute.xlu0 %1083
        %v1085 = vsel %vm932, %v927, 0
        %v1087 = vsel %vm932, %v1084, 0
        %1089 = vmatprep.subr.mxu0 0.0
        %1090 = vmatpush1.xpose.msra.mxu0 0.0
        %1091 = vmatprep.subr.mxu0 0.0
        %1092 = vmatpush1.xpose.msra.mxu0 0.0
        %1093 = vmatprep.subr.mxu0 0.0
        %1094 = vmatpush1.xpose.msra.mxu0 0.0
        %1095 = vmatprep.subr.mxu0 0.0
        %1096 = vmatpush1.xpose.msra.mxu0 0.0
        %1097 = vmatprep.subr.mxu0 0.0
        %1098 = vmatpush1.xpose.msra.mxu0 0.0
        %1099 = vmatprep.subr.mxu0 0.0
        %1100 = vmatpush1.xpose.msra.mxu0 0.0
        %1101 = vmatprep.subr.mxu0 0.0
        %1102 = vmatpush1.xpose.msra.mxu0 0.0
        %1103 = vmatprep.subr.mxu0 0.0
        %1104 = vmatpush1.xpose.msra.mxu0 0.0
        %1105 = vmatprep.subr.mxu0 0.0
        %1106 = vmatpush1.xpose.msra.mxu0 0.0
        %1107 = vmatprep.subr.mxu0 0.0
        %1108 = vmatpush1.xpose.msra.mxu0 0.0
        %1109 = vmatprep.subr.mxu0 0.0
        %1110 = vmatpush1.xpose.msra.mxu0 0.0
        %1111 = vmatprep.subr.mxu0 0.0
        %1112 = vmatpush1.xpose.msra.mxu0 0.0
        %1113 = vmatprep.subr.mxu0 0.0
        %1114 = vmatpush1.xpose.msra.mxu0 0.0
        %1115 = vmatprep.subr.mxu0 0.0
        %1116 = vmatpush1.xpose.msra.mxu0 0.0
        %1117 = vmatprep.subr.mxu0 0.0
        %1118 = vmatpush1.xpose.msra.mxu0 0.0
        %1119 = vmatprep.subr.mxu0 0.0
        %1120 = vmatpush1.xpose.msra.mxu0 %v1087
        %1121 = vmatprep.subr.mxu0 0.0
        %1122 = vmatpush2.xpose.msra.mxu0 0.0
        %1123 = vmatprep.subr.mxu0 0.0
        %1124 = vmatpush2.xpose.msra.mxu0 0.0
        %1125 = vmatprep.subr.mxu0 0.0
        %1126 = vmatpush2.xpose.msra.mxu0 0.0
        %1127 = vmatprep.subr.mxu0 0.0
        %1128 = vmatpush2.xpose.msra.mxu0 0.0
        %1129 = vmatprep.subr.mxu0 0.0
        %1130 = vmatpush2.xpose.msra.mxu0 0.0
        %1131 = vmatprep.subr.mxu0 0.0
        %1132 = vmatpush2.xpose.msra.mxu0 0.0
        %1133 = vmatprep.subr.mxu0 0.0
        %1134 = vmatpush2.xpose.msra.mxu0 0.0
        %1135 = vmatprep.subr.mxu0 0.0
        %1136 = vmatpush2.xpose.msra.mxu0 0.0
        %1137 = vmatprep.subr.mxu0 0.0
        %1138 = vmatpush2.xpose.msra.mxu0 0.0
        %1139 = vmatprep.subr.mxu0 0.0
        %1140 = vmatpush2.xpose.msra.mxu0 0.0
        %1141 = vmatprep.subr.mxu0 0.0
        %1142 = vmatpush2.xpose.msra.mxu0 0.0
        %1143 = vmatprep.subr.mxu0 0.0
        %1144 = vmatpush2.xpose.msra.mxu0 0.0
        %1145 = vmatprep.subr.mxu0 0.0
        %1146 = vmatpush2.xpose.msra.mxu0 0.0
        %1147 = vmatprep.subr.mxu0 0.0
        %1148 = vmatpush2.xpose.msra.mxu0 0.0
        %1149 = vmatprep.subr.mxu0 0.0
        %1150 = vmatpush2.xpose.msra.mxu0 0.0
        %1151 = vmatprep.subr.mxu0 0.0
        %1152 = vmatpush2.xpose.msra.mxu0 0.0
        %1153 = vmatprep.mubr.f32.mxu0 0.0
        %1154 = vmatmul.mubr.f32.gmra.mxu0 %v1085
        %v1155 = vpop.f32.mrf.mxu0
        %v1156 = vadd.f32 %v792, %v1155
        %v1157 = vpop.f32.mrf.mxu0
        %1158 = vdwg.mxu0
        %1159 = vrot.lane.b32.xlu0 %v929, 96
        %v1160 = vpop.permute.xlu0 %1159
        %v1161 = vsel %vm932, %v929, 0
        %v1163 = vsel %vm932, %v1160, 0
        %1165 = vmatprep.subr.mxu0 0.0
        %1166 = vmatpush1.xpose.msra.mxu0 0.0
        %1167 = vmatprep.subr.mxu0 0.0
        %1168 = vmatpush1.xpose.msra.mxu0 0.0
        %1169 = vmatprep.subr.mxu0 0.0
        %1170 = vmatpush1.xpose.msra.mxu0 0.0
        %1171 = vmatprep.subr.mxu0 0.0
        %1172 = vmatpush1.xpose.msra.mxu0 0.0
        %1173 = vmatprep.subr.mxu0 0.0
        %1174 = vmatpush1.xpose.msra.mxu0 0.0
        %1175 = vmatprep.subr.mxu0 0.0
        %1176 = vmatpush1.xpose.msra.mxu0 0.0
        %1177 = vmatprep.subr.mxu0 0.0
        %1178 = vmatpush1.xpose.msra.mxu0 0.0
        %1179 = vmatprep.subr.mxu0 0.0
        %1180 = vmatpush1.xpose.msra.mxu0 0.0
        %1181 = vmatprep.subr.mxu0 0.0
        %1182 = vmatpush1.xpose.msra.mxu0 0.0
        %1183 = vmatprep.subr.mxu0 0.0
        %1184 = vmatpush1.xpose.msra.mxu0 0.0
        %1185 = vmatprep.subr.mxu0 0.0
        %1186 = vmatpush1.xpose.msra.mxu0 0.0
        %1187 = vmatprep.subr.mxu0 0.0
        %1188 = vmatpush1.xpose.msra.mxu0 0.0
        %1189 = vmatprep.subr.mxu0 0.0
        %1190 = vmatpush1.xpose.msra.mxu0 0.0
        %1191 = vmatprep.subr.mxu0 0.0
        %1192 = vmatpush1.xpose.msra.mxu0 0.0
        %1193 = vmatprep.subr.mxu0 0.0
        %1194 = vmatpush1.xpose.msra.mxu0 0.0
        %1195 = vmatprep.subr.mxu0 0.0
        %1196 = vmatpush1.xpose.msra.mxu0 %v1163
        %1197 = vmatprep.subr.mxu0 0.0
        %1198 = vmatpush2.xpose.msra.mxu0 0.0
        %1199 = vmatprep.subr.mxu0 0.0
        %1200 = vmatpush2.xpose.msra.mxu0 0.0
        %1201 = vmatprep.subr.mxu0 0.0
        %1202 = vmatpush2.xpose.msra.mxu0 0.0
        %1203 = vmatprep.subr.mxu0 0.0
        %1204 = vmatpush2.xpose.msra.mxu0 0.0
        %1205 = vmatprep.subr.mxu0 0.0
        %1206 = vmatpush2.xpose.msra.mxu0 0.0
        %1207 = vmatprep.subr.mxu0 0.0
        %1208 = vmatpush2.xpose.msra.mxu0 0.0
        %1209 = vmatprep.subr.mxu0 0.0
        %1210 = vmatpush2.xpose.msra.mxu0 0.0
        %1211 = vmatprep.subr.mxu0 0.0
        %1212 = vmatpush2.xpose.msra.mxu0 0.0
        %1213 = vmatprep.subr.mxu0 0.0
        %1214 = vmatpush2.xpose.msra.mxu0 0.0
        %1215 = vmatprep.subr.mxu0 0.0
        %1216 = vmatpush2.xpose.msra.mxu0 0.0
        %1217 = vmatprep.subr.mxu0 0.0
        %1218 = vmatpush2.xpose.msra.mxu0 0.0
        %1219 = vmatprep.subr.mxu0 0.0
        %1220 = vmatpush2.xpose.msra.mxu0 0.0
        %1221 = vmatprep.subr.mxu0 0.0
        %1222 = vmatpush2.xpose.msra.mxu0 0.0
        %1223 = vmatprep.subr.mxu0 0.0
        %1224 = vmatpush2.xpose.msra.mxu0 0.0
        %1225 = vmatprep.subr.mxu0 0.0
        %1226 = vmatpush2.xpose.msra.mxu0 0.0
        %1227 = vmatprep.subr.mxu0 0.0
        %1228 = vmatpush2.xpose.msra.mxu0 0.0
        %1229 = vmatprep.mubr.f32.mxu0 0.0
        %1230 = vmatmul.mubr.f32.gmra.mxu0 %v1161
        %v1231 = vpop.f32.mrf.mxu0
        %v1232 = vadd.f32 %v792, %v1231
        %v1233 = vpop.f32.mrf.mxu0
        %1234 = vdwg.mxu0
        %v1235 = vsel %vm932, %v1004, -inf
        %1236 = vmax.xlane.f32.xlu0 %v1235
        %v1237 = vpop.xlane.xlu0 %1236
        %v1238 = vsel %vm932, %v1080, -inf
        %1239 = vmax.xlane.f32.xlu0 %v1238
        %v1240 = vpop.xlane.xlu0 %1239
        %v1241 = vsel %vm932, %v1156, -inf
        %1242 = vmax.xlane.f32.xlu0 %v1241
        %v1243 = vpop.xlane.xlu0 %1242
        %v1244 = vsel %vm932, %v1232, -inf
        %1245 = vmax.xlane.f32.xlu0 %v1244
        %v1246 = vpop.xlane.xlu0 %1245
        %v1247 = vsub.f32 %v1004, %v1237
        %v1248 = vsub.f32 %v1080, %v1240
        %v1249 = vsub.f32 %v1156, %v1243
        %v1250 = vsub.f32 %v1232, %v1246
        %v1251 = vmul.f32 %v1247, 1.442695
        %v1252 = vpow.pop %v1251
        %v1253 = vmul.f32 %v1248, 1.442695
        %v1254 = vpow.pop %v1253
        %v1255 = vmul.f32 %v1249, 1.442695
        %v1256 = vpow.pop %v1255
        %v1257 = vmul.f32 %v1250, 1.442695
        %v1258 = vpow.pop %v1257
        %v1259 = vsel %vm932, %v1252, 0.0
        %1260 = vadd.xlane.f32.xlu0 %v1259
        %v1261 = vpop.xlane.xlu0 %1260
        %v1262 = vsel %vm932, %v1254, 0.0
        %1263 = vadd.xlane.f32.xlu0 %v1262
        %v1264 = vpop.xlane.xlu0 %1263
        %v1265 = vsel %vm932, %v1256, 0.0
        %1266 = vadd.xlane.f32.xlu0 %v1265
        %v1267 = vpop.xlane.xlu0 %1266
        %v1268 = vsel %vm932, %v1258, 0.0
        %1269 = vadd.xlane.f32.xlu0 %v1268
        %v1270 = vpop.xlane.xlu0 %1269
        %v1271 = vrcp.pop %v1261
        %v1272 = vrcp.pop %v1264
        %v1273 = vrcp.pop %v1267
        %v1274 = vrcp.pop %v1270
        %v1275 = vmul.f32 %v1252, %v1271
        %v1276 = vmul.f32 %v1254, %v1272
        %v1277 = vmul.f32 %v1256, %v1273
        %v1278 = vmul.f32 %v1258, %v1274
        %1279 = vrot.lane.b32.xlu0 %v915, 64
        %v1280 = vpop.permute.xlu0 %1279
        %v1283 = vsel %vm932, %v1275, 0
        %1285 = vmatprep.subr.mxu0 0.0
        %1286 = vmatpush1.msra.mxu0 0.0
        %1287 = vmatprep.subr.mxu0 0.0
        %1288 = vmatpush1.msra.mxu0 0.0
        %1289 = vmatprep.subr.mxu0 0.0
        %1290 = vmatpush1.msra.mxu0 0.0
        %1291 = vmatprep.subr.mxu0 0.0
        %1292 = vmatpush1.msra.mxu0 0.0
        %1293 = vmatprep.subr.mxu0 0.0
        %1294 = vmatpush1.msra.mxu0 0.0
        %1295 = vmatprep.subr.mxu0 0.0
        %1296 = vmatpush1.msra.mxu0 0.0
        %1297 = vmatprep.subr.mxu0 0.0
        %1298 = vmatpush1.msra.mxu0 0.0
        %1299 = vmatprep.subr.mxu0 0.0
        %1300 = vmatpush1.msra.mxu0 0.0
        %1301 = vmatprep.subr.mxu0 0.0
        %1302 = vmatpush1.msra.mxu0 0.0
        %1303 = vmatprep.subr.mxu0 0.0
        %1304 = vmatpush1.msra.mxu0 0.0
        %1305 = vmatprep.subr.mxu0 0.0
        %1306 = vmatpush1.msra.mxu0 0.0
        %1307 = vmatprep.subr.mxu0 0.0
        %1308 = vmatpush1.msra.mxu0 0.0
        %1309 = vmatprep.subr.mxu0 0.0
        %1310 = vmatpush1.msra.mxu0 0.0
        %1311 = vmatprep.subr.mxu0 0.0
        %1312 = vmatpush1.msra.mxu0 0.0
        %1313 = vmatprep.subr.mxu0 0.0
        %1314 = vmatpush1.msra.mxu0 0.0
        %1315 = vmatprep.subr.mxu0 0.0
        %1316 = vmatpush1.msra.mxu0 %v1280
        %1317 = vmatprep.subr.mxu0 0.0
        %1318 = vmatpush2.msra.mxu0 0.0
        %1319 = vmatprep.subr.mxu0 0.0
        %1320 = vmatpush2.msra.mxu0 0.0
        %1321 = vmatprep.subr.mxu0 0.0
        %1322 = vmatpush2.msra.mxu0 0.0
        %1323 = vmatprep.subr.mxu0 0.0
        %1324 = vmatpush2.msra.mxu0 0.0
        %1325 = vmatprep.subr.mxu0 0.0
        %1326 = vmatpush2.msra.mxu0 0.0
        %1327 = vmatprep.subr.mxu0 0.0
        %1328 = vmatpush2.msra.mxu0 0.0
        %1329 = vmatprep.subr.mxu0 0.0
        %1330 = vmatpush2.msra.mxu0 0.0
        %1331 = vmatprep.subr.mxu0 0.0
        %1332 = vmatpush2.msra.mxu0 0.0
        %1333 = vmatprep.subr.mxu0 0.0
        %1334 = vmatpush2.msra.mxu0 0.0
        %1335 = vmatprep.subr.mxu0 0.0
        %1336 = vmatpush2.msra.mxu0 0.0
        %1337 = vmatprep.subr.mxu0 0.0
        %1338 = vmatpush2.msra.mxu0 0.0
        %1339 = vmatprep.subr.mxu0 0.0
        %1340 = vmatpush2.msra.mxu0 0.0
        %1341 = vmatprep.subr.mxu0 0.0
        %1342 = vmatpush2.msra.mxu0 0.0
        %1343 = vmatprep.subr.mxu0 0.0
        %1344 = vmatpush2.msra.mxu0 0.0
        %1345 = vmatprep.subr.mxu0 0.0
        %1346 = vmatpush2.msra.mxu0 0.0
        %1347 = vmatprep.subr.mxu0 0.0
        %1348 = vmatpush2.msra.mxu0 0.0
        %1349 = vmatprep.mubr.f32.mxu0 0.0
        %1350 = vmatmul.mubr.f32.gmra.mxu0 %v1283
        %v1351 = vpop.f32.mrf.mxu0
        %v1352 = vadd.f32 0.0, %v1351
        %v1353 = vpop.f32.mrf.mxu0
        %1354 = vdwg.mxu0
        %1355 = vrot.lane.b32.xlu0 %v925, 64
        %v1356 = vpop.permute.xlu0 %1355
        %v1359 = vsel %vm932, %v1276, 0
        %1361 = vmatprep.subr.mxu0 0.0
        %1362 = vmatpush1.msra.mxu0 0.0
        %1363 = vmatprep.subr.mxu0 0.0
        %1364 = vmatpush1.msra.mxu0 0.0
        %1365 = vmatprep.subr.mxu0 0.0
        %1366 = vmatpush1.msra.mxu0 0.0
        %1367 = vmatprep.subr.mxu0 0.0
        %1368 = vmatpush1.msra.mxu0 0.0
        %1369 = vmatprep.subr.mxu0 0.0
        %1370 = vmatpush1.msra.mxu0 0.0
        %1371 = vmatprep.subr.mxu0 0.0
        %1372 = vmatpush1.msra.mxu0 0.0
        %1373 = vmatprep.subr.mxu0 0.0
        %1374 = vmatpush1.msra.mxu0 0.0
        %1375 = vmatprep.subr.mxu0 0.0
        %1376 = vmatpush1.msra.mxu0 0.0
        %1377 = vmatprep.subr.mxu0 0.0
        %1378 = vmatpush1.msra.mxu0 0.0
        %1379 = vmatprep.subr.mxu0 0.0
        %1380 = vmatpush1.msra.mxu0 0.0
        %1381 = vmatprep.subr.mxu0 0.0
        %1382 = vmatpush1.msra.mxu0 0.0
        %1383 = vmatprep.subr.mxu0 0.0
        %1384 = vmatpush1.msra.mxu0 0.0
        %1385 = vmatprep.subr.mxu0 0.0
        %1386 = vmatpush1.msra.mxu0 0.0
        %1387 = vmatprep.subr.mxu0 0.0
        %1388 = vmatpush1.msra.mxu0 0.0
        %1389 = vmatprep.subr.mxu0 0.0
        %1390 = vmatpush1.msra.mxu0 0.0
        %1391 = vmatprep.subr.mxu0 0.0
        %1392 = vmatpush1.msra.mxu0 %v1356
        %1393 = vmatprep.subr.mxu0 0.0
        %1394 = vmatpush2.msra.mxu0 0.0
        %1395 = vmatprep.subr.mxu0 0.0
        %1396 = vmatpush2.msra.mxu0 0.0
        %1397 = vmatprep.subr.mxu0 0.0
        %1398 = vmatpush2.msra.mxu0 0.0
        %1399 = vmatprep.subr.mxu0 0.0
        %1400 = vmatpush2.msra.mxu0 0.0
        %1401 = vmatprep.subr.mxu0 0.0
        %1402 = vmatpush2.msra.mxu0 0.0
        %1403 = vmatprep.subr.mxu0 0.0
        %1404 = vmatpush2.msra.mxu0 0.0
        %1405 = vmatprep.subr.mxu0 0.0
        %1406 = vmatpush2.msra.mxu0 0.0
        %1407 = vmatprep.subr.mxu0 0.0
        %1408 = vmatpush2.msra.mxu0 0.0
        %1409 = vmatprep.subr.mxu0 0.0
        %1410 = vmatpush2.msra.mxu0 0.0
        %1411 = vmatprep.subr.mxu0 0.0
        %1412 = vmatpush2.msra.mxu0 0.0
        %1413 = vmatprep.subr.mxu0 0.0
        %1414 = vmatpush2.msra.mxu0 0.0
        %1415 = vmatprep.subr.mxu0 0.0
        %1416 = vmatpush2.msra.mxu0 0.0
        %1417 = vmatprep.subr.mxu0 0.0
        %1418 = vmatpush2.msra.mxu0 0.0
        %1419 = vmatprep.subr.mxu0 0.0
        %1420 = vmatpush2.msra.mxu0 0.0
        %1421 = vmatprep.subr.mxu0 0.0
        %1422 = vmatpush2.msra.mxu0 0.0
        %1423 = vmatprep.subr.mxu0 0.0
        %1424 = vmatpush2.msra.mxu0 0.0
        %1425 = vmatprep.mubr.f32.mxu0 0.0
        %1426 = vmatmul.mubr.f32.gmra.mxu0 %v1359
        %v1427 = vpop.f32.mrf.mxu0
        %v1428 = vadd.f32 0.0, %v1427
        %v1429 = vpop.f32.mrf.mxu0
        %1430 = vdwg.mxu0
        %1431 = vrot.lane.b32.xlu0 %v927, 64
        %v1432 = vpop.permute.xlu0 %1431
        %v1435 = vsel %vm932, %v1277, 0
        %1437 = vmatprep.subr.mxu0 0.0
        %1438 = vmatpush1.msra.mxu0 0.0
        %1439 = vmatprep.subr.mxu0 0.0
        %1440 = vmatpush1.msra.mxu0 0.0
        %1441 = vmatprep.subr.mxu0 0.0
        %1442 = vmatpush1.msra.mxu0 0.0
        %1443 = vmatprep.subr.mxu0 0.0
        %1444 = vmatpush1.msra.mxu0 0.0
        %1445 = vmatprep.subr.mxu0 0.0
        %1446 = vmatpush1.msra.mxu0 0.0
        %1447 = vmatprep.subr.mxu0 0.0
        %1448 = vmatpush1.msra.mxu0 0.0
        %1449 = vmatprep.subr.mxu0 0.0
        %1450 = vmatpush1.msra.mxu0 0.0
        %1451 = vmatprep.subr.mxu0 0.0
        %1452 = vmatpush1.msra.mxu0 0.0
        %1453 = vmatprep.subr.mxu0 0.0
        %1454 = vmatpush1.msra.mxu0 0.0
        %1455 = vmatprep.subr.mxu0 0.0
        %1456 = vmatpush1.msra.mxu0 0.0
        %1457 = vmatprep.subr.mxu0 0.0
        %1458 = vmatpush1.msra.mxu0 0.0
        %1459 = vmatprep.subr.mxu0 0.0
        %1460 = vmatpush1.msra.mxu0 0.0
        %1461 = vmatprep.subr.mxu0 0.0
        %1462 = vmatpush1.msra.mxu0 0.0
        %1463 = vmatprep.subr.mxu0 0.0
        %1464 = vmatpush1.msra.mxu0 0.0
        %1465 = vmatprep.subr.mxu0 0.0
        %1466 = vmatpush1.msra.mxu0 0.0
        %1467 = vmatprep.subr.mxu0 0.0
        %1468 = vmatpush1.msra.mxu0 %v1432
        %1469 = vmatprep.subr.mxu0 0.0
        %1470 = vmatpush2.msra.mxu0 0.0
        %1471 = vmatprep.subr.mxu0 0.0
        %1472 = vmatpush2.msra.mxu0 0.0
        %1473 = vmatprep.subr.mxu0 0.0
        %1474 = vmatpush2.msra.mxu0 0.0
        %1475 = vmatprep.subr.mxu0 0.0
        %1476 = vmatpush2.msra.mxu0 0.0
        %1477 = vmatprep.subr.mxu0 0.0
        %1478 = vmatpush2.msra.mxu0 0.0
        %1479 = vmatprep.subr.mxu0 0.0
        %1480 = vmatpush2.msra.mxu0 0.0
        %1481 = vmatprep.subr.mxu0 0.0
        %1482 = vmatpush2.msra.mxu0 0.0
        %1483 = vmatprep.subr.mxu0 0.0
        %1484 = vmatpush2.msra.mxu0 0.0
        %1485 = vmatprep.subr.mxu0 0.0
        %1486 = vmatpush2.msra.mxu0 0.0
        %1487 = vmatprep.subr.mxu0 0.0
        %1488 = vmatpush2.msra.mxu0 0.0
        %1489 = vmatprep.subr.mxu0 0.0
        %1490 = vmatpush2.msra.mxu0 0.0
        %1491 = vmatprep.subr.mxu0 0.0
        %1492 = vmatpush2.msra.mxu0 0.0
        %1493 = vmatprep.subr.mxu0 0.0
        %1494 = vmatpush2.msra.mxu0 0.0
        %1495 = vmatprep.subr.mxu0 0.0
        %1496 = vmatpush2.msra.mxu0 0.0
        %1497 = vmatprep.subr.mxu0 0.0
        %1498 = vmatpush2.msra.mxu0 0.0
        %1499 = vmatprep.subr.mxu0 0.0
        %1500 = vmatpush2.msra.mxu0 0.0
        %1501 = vmatprep.mubr.f32.mxu0 0.0
        %1502 = vmatmul.mubr.f32.gmra.mxu0 %v1435
        %v1503 = vpop.f32.mrf.mxu0
        %v1504 = vadd.f32 0.0, %v1503
        %v1505 = vpop.f32.mrf.mxu0
        %1506 = vdwg.mxu0
        %1507 = vrot.lane.b32.xlu0 %v929, 64
        %v1508 = vpop.permute.xlu0 %1507
        %v1511 = vsel %vm932, %v1278, 0
        %1513 = vmatprep.subr.mxu0 0.0
        %1514 = vmatpush1.msra.mxu0 0.0
        %1515 = vmatprep.subr.mxu0 0.0
        %1516 = vmatpush1.msra.mxu0 0.0
        %1517 = vmatprep.subr.mxu0 0.0
        %1518 = vmatpush1.msra.mxu0 0.0
        %1519 = vmatprep.subr.mxu0 0.0
        %1520 = vmatpush1.msra.mxu0 0.0
        %1521 = vmatprep.subr.mxu0 0.0
        %1522 = vmatpush1.msra.mxu0 0.0
        %1523 = vmatprep.subr.mxu0 0.0
        %1524 = vmatpush1.msra.mxu0 0.0
        %1525 = vmatprep.subr.mxu0 0.0
        %1526 = vmatpush1.msra.mxu0 0.0
        %1527 = vmatprep.subr.mxu0 0.0
        %1528 = vmatpush1.msra.mxu0 0.0
        %1529 = vmatprep.subr.mxu0 0.0
        %1530 = vmatpush1.msra.mxu0 0.0
        %1531 = vmatprep.subr.mxu0 0.0
        %1532 = vmatpush1.msra.mxu0 0.0
        %1533 = vmatprep.subr.mxu0 0.0
        %1534 = vmatpush1.msra.mxu0 0.0
        %1535 = vmatprep.subr.mxu0 0.0
        %1536 = vmatpush1.msra.mxu0 0.0
        %1537 = vmatprep.subr.mxu0 0.0
        %1538 = vmatpush1.msra.mxu0 0.0
        %1539 = vmatprep.subr.mxu0 0.0
        %1540 = vmatpush1.msra.mxu0 0.0
        %1541 = vmatprep.subr.mxu0 0.0
        %1542 = vmatpush1.msra.mxu0 0.0
        %1543 = vmatprep.subr.mxu0 0.0
        %1544 = vmatpush1.msra.mxu0 %v1508
        %1545 = vmatprep.subr.mxu0 0.0
        %1546 = vmatpush2.msra.mxu0 0.0
        %1547 = vmatprep.subr.mxu0 0.0
        %1548 = vmatpush2.msra.mxu0 0.0
        %1549 = vmatprep.subr.mxu0 0.0
        %1550 = vmatpush2.msra.mxu0 0.0
        %1551 = vmatprep.subr.mxu0 0.0
        %1552 = vmatpush2.msra.mxu0 0.0
        %1553 = vmatprep.subr.mxu0 0.0
        %1554 = vmatpush2.msra.mxu0 0.0
        %1555 = vmatprep.subr.mxu0 0.0
        %1556 = vmatpush2.msra.mxu0 0.0
        %1557 = vmatprep.subr.mxu0 0.0
        %1558 = vmatpush2.msra.mxu0 0.0
        %1559 = vmatprep.subr.mxu0 0.0
        %1560 = vmatpush2.msra.mxu0 0.0
        %1561 = vmatprep.subr.mxu0 0.0
        %1562 = vmatpush2.msra.mxu0 0.0
        %1563 = vmatprep.subr.mxu0 0.0
        %1564 = vmatpush2.msra.mxu0 0.0
        %1565 = vmatprep.subr.mxu0 0.0
        %1566 = vmatpush2.msra.mxu0 0.0
        %1567 = vmatprep.subr.mxu0 0.0
        %1568 = vmatpush2.msra.mxu0 0.0
        %1569 = vmatprep.subr.mxu0 0.0
        %1570 = vmatpush2.msra.mxu0 0.0
        %1571 = vmatprep.subr.mxu0 0.0
        %1572 = vmatpush2.msra.mxu0 0.0
        %1573 = vmatprep.subr.mxu0 0.0
        %1574 = vmatpush2.msra.mxu0 0.0
        %1575 = vmatprep.subr.mxu0 0.0
        %1576 = vmatpush2.msra.mxu0 0.0
        %1577 = vmatprep.mubr.f32.mxu0 0.0
        %1578 = vmatmul.mubr.f32.gmra.mxu0 %v1511
        %v1579 = vpop.f32.mrf.mxu0
        %v1580 = vadd.f32 0.0, %v1579
        %v1581 = vpop.f32.mrf.mxu0
        %1582 = vdwg.mxu0
        %1584 = vrot.lane.b32.xlu0 %v1428, 8
        %v1585 = vpop.permute.xlu0 %1584
        %1588 = vrot.lane.b32.xlu0 %v1504, 16
        %v1589 = vpop.permute.xlu0 %1588
        %1592 = vrot.lane.b32.xlu0 %v1580, 24
        %v1593 = vpop.permute.xlu0 %1592
        %v1595 = vsel %vm932, %v1352, %v1585
        %vm1596 = vcmask 130048
        %v1597 = vsel %vm1596, %v1595, %v1589
        %vm1598 = vcmask 195584
        %v1599 = vsel %vm1598, %v1597, %v1593
        %v1601 = vlaneseq
        %v1602 = vshrl.u32 %v1601, 7
        %v1603 = vsub.s32 0, %v1602
        %v1604 = vrot.slane %v922, %v1603
        %v1607 = vsel %vm798, %v1599, 0
        %1609 = vmatprep.subr.mxu0 0.0
        %1610 = vmatpush1.msra.mxu0 0.0
        %1611 = vmatprep.subr.mxu0 0.0
        %1612 = vmatpush1.msra.mxu0 0.0
        %1613 = vmatprep.subr.mxu0 0.0
        %1614 = vmatpush1.msra.mxu0 0.0
        %1615 = vmatprep.subr.mxu0 0.0
        %1616 = vmatpush1.msra.mxu0 0.0
        %1617 = vmatprep.subr.mxu0 0.0
        %1618 = vmatpush1.msra.mxu0 0.0
        %1619 = vmatprep.subr.mxu0 0.0
        %1620 = vmatpush1.msra.mxu0 0.0
        %1621 = vmatprep.subr.mxu0 0.0
        %1622 = vmatpush1.msra.mxu0 0.0
        %1623 = vmatprep.subr.mxu0 0.0
        %1624 = vmatpush1.msra.mxu0 0.0
        %1625 = vmatprep.subr.mxu0 0.0
        %1626 = vmatpush1.msra.mxu0 0.0
        %1627 = vmatprep.subr.mxu0 0.0
        %1628 = vmatpush1.msra.mxu0 0.0
        %1629 = vmatprep.subr.mxu0 0.0
        %1630 = vmatpush1.msra.mxu0 0.0
        %1631 = vmatprep.subr.mxu0 0.0
        %1632 = vmatpush1.msra.mxu0 0.0
        %1633 = vmatprep.subr.mxu0 0.0
        %1634 = vmatpush1.msra.mxu0 %v921
        %1635 = vmatprep.subr.mxu0 0.0
        %1636 = vmatpush1.msra.mxu0 %v920
        %1637 = vmatprep.subr.mxu0 0.0
        %1638 = vmatpush1.msra.mxu0 %v919
        %1639 = vmatprep.subr.mxu0 0.0
        %1640 = vmatpush1.msra.mxu0 %v918
        %1641 = vmatprep.subr.mxu0 0.0
        %1642 = vmatpush2.msra.mxu0 0.0
        %1643 = vmatprep.subr.mxu0 0.0
        %1644 = vmatpush2.msra.mxu0 0.0
        %1645 = vmatprep.subr.mxu0 0.0
        %1646 = vmatpush2.msra.mxu0 0.0
        %1647 = vmatprep.subr.mxu0 0.0
        %1648 = vmatpush2.msra.mxu0 0.0
        %1649 = vmatprep.subr.mxu0 0.0
        %1650 = vmatpush2.msra.mxu0 0.0
        %1651 = vmatprep.subr.mxu0 0.0
        %1652 = vmatpush2.msra.mxu0 0.0
        %1653 = vmatprep.subr.mxu0 0.0
        %1654 = vmatpush2.msra.mxu0 0.0
        %1655 = vmatprep.subr.mxu0 0.0
        %1656 = vmatpush2.msra.mxu0 0.0
        %1657 = vmatprep.subr.mxu0 0.0
        %1658 = vmatpush2.msra.mxu0 0.0
        %1659 = vmatprep.subr.mxu0 0.0
        %1660 = vmatpush2.msra.mxu0 0.0
        %1661 = vmatprep.subr.mxu0 0.0
        %1662 = vmatpush2.msra.mxu0 0.0
        %1663 = vmatprep.subr.mxu0 0.0
        %1664 = vmatpush2.msra.mxu0 0.0
        %1665 = vmatprep.subr.mxu0 0.0
        %1666 = vmatpush2.msra.mxu0 0.0
        %1667 = vmatprep.subr.mxu0 0.0
        %1668 = vmatpush2.msra.mxu0 0.0
        %1669 = vmatprep.subr.mxu0 0.0
        %1670 = vmatpush2.msra.mxu0 0.0
        %1671 = vmatprep.subr.mxu0 0.0
        %1672 = vmatpush2.msra.mxu0 0.0
        %1673 = vmatprep.mubr.f32.mxu0 0.0
        %1674 = vmatmul.mubr.f32.gmra.mxu0 %v1607
        %v1675 = vpop.f32.mrf.mxu0
        %v1676 = vadd.f32 %v1604, %v1675
        %v1677 = vpop.f32.mrf.mxu0
        %1678 = vdwg.mxu0
        %v1679 = vadd.f32 %v787, %v1676
        %v1680 = vld [vmem:[%s6] sm:$0x1]
        %v1681 = vld [vmem:[%s7] sm:$0x1]
        %v1682 = vsel %vm798, %v1679, 0.0
        %1683 = vadd.xlane.f32.xlu0 %v1682
        %v1684 = vpop.xlane.xlu0 %1683
        %v1685 = vmul.f32 %v1684, %v802
        %v1686 = vsub.f32 %v1679, %v1685
        %v1687 = vmul.f32 %v1686, %v1686
        %v1688 = vsel %vm798, %v1687, 0.0
        %1689 = vadd.xlane.f32.xlu0 %v1688
        %v1690 = vpop.xlane.xlu0 %1689
        %v1691 = vmul.f32 %v1690, 0.032258064
        %v1692 = vrsqrt.pop %v1691
        %v1693 = vmul.f32 %v1691, %v1692
        %vm1694 = vcmp.eq.f32.partialorder %v1691, inf
        %v1695 = vsel %vm1694, %v1691, %v1693
        %vm1696 = vcmp.eq.f32.partialorder %v1691, 0.0
        %v1697 = vand.u32 %v1691, 2147483648
        %v1698 = vsel %vm1696, %v1697, %v1695
        %v1699 = vadd.f32 %v1698, 1e-06
        %v1700 = vrcp.pop %v1699
        %v1702 = vlaneseq
        %v1703 = vshrl.u32 %v1702, 7
        %v1704 = vsub.s32 0, %v1703
        %v1705 = vrot.slane %v1680, %v1704
        %v1707 = vmul.f32 %v1705, %v1686
        %v1708 = vmul.f32 %v1707, %v1700
        %v1710 = vlaneseq
        %v1711 = vshrl.u32 %v1710, 7
        %v1712 = vsub.s32 0, %v1711
        %v1713 = vrot.slane %v1681, %v1712
        %v1715 = vadd.f32 %v1708, %v1713
        %v1716 = vld [vmem:[%s14] sm:$0xff]
        %v1717 = vld [vmem:[%s14 + $0x8] sm:$0xff]
        %v1718 = vld [vmem:[%s14 + $0x10] sm:$0xff]
        %v1719 = vld [vmem:[%s14 + $0x18] sm:$0xff]
        %v1720 = vld [vmem:[%s15] sm:$0x1]
        %v1722 = vlaneseq
        %v1723 = vshrl.u32 %v1722, 7
        %v1724 = vsub.s32 0, %v1723
        %v1725 = vrot.slane %v1720, %v1724
        %v1728 = vsel %vm798, %v1715, 0
        %1730 = vmatprep.subr.mxu0 0.0
        %1731 = vmatpush1.msra.mxu0 0.0
        %1732 = vmatprep.subr.mxu0 0.0
        %1733 = vmatpush1.msra.mxu0 0.0
        %1734 = vmatprep.subr.mxu0 0.0
        %1735 = vmatpush1.msra.mxu0 0.0
        %1736 = vmatprep.subr.mxu0 0.0
        %1737 = vmatpush1.msra.mxu0 0.0
        %1738 = vmatprep.subr.mxu0 0.0
        %1739 = vmatpush1.msra.mxu0 0.0
        %1740 = vmatprep.subr.mxu0 0.0
        %1741 = vmatpush1.msra.mxu0 0.0
        %1742 = vmatprep.subr.mxu0 0.0
        %1743 = vmatpush1.msra.mxu0 0.0
        %1744 = vmatprep.subr.mxu0 0.0
        %1745 = vmatpush1.msra.mxu0 0.0
        %1746 = vmatprep.subr.mxu0 0.0
        %1747 = vmatpush1.msra.mxu0 0.0
        %1748 = vmatprep.subr.mxu0 0.0
        %1749 = vmatpush1.msra.mxu0 0.0
        %1750 = vmatprep.subr.mxu0 0.0
        %1751 = vmatpush1.msra.mxu0 0.0
        %1752 = vmatprep.subr.mxu0 0.0
        %1753 = vmatpush1.msra.mxu0 0.0
        %1754 = vmatprep.subr.mxu0 0.0
        %1755 = vmatpush1.msra.mxu0 %v1719
        %1756 = vmatprep.subr.mxu0 0.0
        %1757 = vmatpush1.msra.mxu0 %v1718
        %1758 = vmatprep.subr.mxu0 0.0
        %1759 = vmatpush1.msra.mxu0 %v1717
        %1760 = vmatprep.subr.mxu0 0.0
        %1761 = vmatpush1.msra.mxu0 %v1716
        %1762 = vmatprep.subr.mxu0 0.0
        %1763 = vmatpush2.msra.mxu0 0.0
        %1764 = vmatprep.subr.mxu0 0.0
        %1765 = vmatpush2.msra.mxu0 0.0
        %1766 = vmatprep.subr.mxu0 0.0
        %1767 = vmatpush2.msra.mxu0 0.0
        %1768 = vmatprep.subr.mxu0 0.0
        %1769 = vmatpush2.msra.mxu0 0.0
        %1770 = vmatprep.subr.mxu0 0.0
        %1771 = vmatpush2.msra.mxu0 0.0
        %1772 = vmatprep.subr.mxu0 0.0
        %1773 = vmatpush2.msra.mxu0 0.0
        %1774 = vmatprep.subr.mxu0 0.0
        %1775 = vmatpush2.msra.mxu0 0.0
        %1776 = vmatprep.subr.mxu0 0.0
        %1777 = vmatpush2.msra.mxu0 0.0
        %1778 = vmatprep.subr.mxu0 0.0
        %1779 = vmatpush2.msra.mxu0 0.0
        %1780 = vmatprep.subr.mxu0 0.0
        %1781 = vmatpush2.msra.mxu0 0.0
        %1782 = vmatprep.subr.mxu0 0.0
        %1783 = vmatpush2.msra.mxu0 0.0
        %1784 = vmatprep.subr.mxu0 0.0
        %1785 = vmatpush2.msra.mxu0 0.0
        %1786 = vmatprep.subr.mxu0 0.0
        %1787 = vmatpush2.msra.mxu0 0.0
        %1788 = vmatprep.subr.mxu0 0.0
        %1789 = vmatpush2.msra.mxu0 0.0
        %1790 = vmatprep.subr.mxu0 0.0
        %1791 = vmatpush2.msra.mxu0 0.0
        %1792 = vmatprep.subr.mxu0 0.0
        %1793 = vmatpush2.msra.mxu0 0.0
        %1794 = vmatprep.mubr.f32.mxu0 0.0
        %1795 = vmatmul.mubr.f32.gmra.mxu0 %v1728
        %v1796 = vpop.f32.mrf.mxu0
        %v1797 = vadd.f32 %v1725, %v1796
        %v1798 = vpop.f32.mrf.mxu0
        %1799 = vdwg.mxu0
        %v1800 = vld [vmem:[%s16] sm:$0xff]
        %v1801 = vld [vmem:[%s16 + $0x8] sm:$0xff]
        %v1802 = vld [vmem:[%s16 + $0x10] sm:$0xff]
        %v1803 = vld [vmem:[%s16 + $0x18] sm:$0xff]
        %v1804 = vld [vmem:[%s17] sm:$0x1]
        %v1806 = vlaneseq
        %v1807 = vshrl.u32 %v1806, 7
        %v1808 = vsub.s32 0, %v1807
        %v1809 = vrot.slane %v1804, %v1808
        %v1812 = vsel %vm798, %v788, 0
        %v1815 = vsel %vm798, %v789, 0
        %1817 = vmatprep.subr.mxu0 0.0
        %1818 = vmatpush1.msra.mxu0 0.0
        %1819 = vmatprep.subr.mxu0 0.0
        %1820 = vmatpush1.msra.mxu0 0.0
        %1821 = vmatprep.subr.mxu0 0.0
        %1822 = vmatpush1.msra.mxu0 0.0
        %1823 = vmatprep.subr.mxu0 0.0
        %1824 = vmatpush1.msra.mxu0 0.0
        %1825 = vmatprep.subr.mxu0 0.0
        %1826 = vmatpush1.msra.mxu0 0.0
        %1827 = vmatprep.subr.mxu0 0.0
        %1828 = vmatpush1.msra.mxu0 0.0
        %1829 = vmatprep.subr.mxu0 0.0
        %1830 = vmatpush1.msra.mxu0 0.0
        %1831 = vmatprep.subr.mxu0 0.0
        %1832 = vmatpush1.msra.mxu0 0.0
        %1833 = vmatprep.subr.mxu0 0.0
        %1834 = vmatpush1.msra.mxu0 0.0
        %1835 = vmatprep.subr.mxu0 0.0
        %1836 = vmatpush1.msra.mxu0 0.0
        %1837 = vmatprep.subr.mxu0 0.0
        %1838 = vmatpush1.msra.mxu0 0.0
        %1839 = vmatprep.subr.mxu0 0.0
        %1840 = vmatpush1.msra.mxu0 0.0
        %1841 = vmatprep.subr.mxu0 0.0
        %1842 = vmatpush1.msra.mxu0 %v1803
        %1843 = vmatprep.subr.mxu0 0.0
        %1844 = vmatpush1.msra.mxu0 %v1802
        %1845 = vmatprep.subr.mxu0 0.0
        %1846 = vmatpush1.msra.mxu0 %v1801
        %1847 = vmatprep.subr.mxu0 0.0
        %1848 = vmatpush1.msra.mxu0 %v1800
        %1849 = vmatprep.subr.mxu0 0.0
        %1850 = vmatpush2.msra.mxu0 0.0
        %1851 = vmatprep.subr.mxu0 0.0
        %1852 = vmatpush2.msra.mxu0 0.0
        %1853 = vmatprep.subr.mxu0 0.0
        %1854 = vmatpush2.msra.mxu0 0.0
        %1855 = vmatprep.subr.mxu0 0.0
        %1856 = vmatpush2.msra.mxu0 0.0
        %1857 = vmatprep.subr.mxu0 0.0
        %1858 = vmatpush2.msra.mxu0 0.0
        %1859 = vmatprep.subr.mxu0 0.0
        %1860 = vmatpush2.msra.mxu0 0.0
        %1861 = vmatprep.subr.mxu0 0.0
        %1862 = vmatpush2.msra.mxu0 0.0
        %1863 = vmatprep.subr.mxu0 0.0
        %1864 = vmatpush2.msra.mxu0 0.0
        %1865 = vmatprep.subr.mxu0 0.0
        %1866 = vmatpush2.msra.mxu0 0.0
        %1867 = vmatprep.subr.mxu0 0.0
        %1868 = vmatpush2.msra.mxu0 0.0
        %1869 = vmatprep.subr.mxu0 0.0
        %1870 = vmatpush2.msra.mxu0 0.0
        %1871 = vmatprep.subr.mxu0 0.0
        %1872 = vmatpush2.msra.mxu0 0.0
        %1873 = vmatprep.subr.mxu0 0.0
        %1874 = vmatpush2.msra.mxu0 0.0
        %1875 = vmatprep.subr.mxu0 0.0
        %1876 = vmatpush2.msra.mxu0 0.0
        %1877 = vmatprep.subr.mxu0 0.0
        %1878 = vmatpush2.msra.mxu0 0.0
        %1879 = vmatprep.subr.mxu0 0.0
        %1880 = vmatpush2.msra.mxu0 0.0
        %1881 = vmatprep.mubr.f32.mxu0 0.0
        %1882 = vmatmul.mubr.f32.gmra.mxu0 %v1812
        %v1883 = vpop.f32.mrf.mxu0
        %v1884 = vadd.f32 %v1809, %v1883
        %v1885 = vpop.f32.mrf.mxu0
        %1886 = vmatprep.mubr.f32.mxu0 0.0
        %1887 = vmatmul.mubr.f32.gmra.mxu0 %v1815
        %v1888 = vpop.f32.mrf.mxu0
        %v1889 = vadd.f32 %v1809, %v1888
        %v1890 = vpop.f32.mrf.mxu0
        %1891 = vdwg.mxu0
        %v1892 = vld [vmem:[%s18] sm:$0xff]
        %v1893 = vld [vmem:[%s18 + $0x8] sm:$0xff]
        %v1894 = vld [vmem:[%s18 + $0x10] sm:$0xff]
        %v1895 = vld [vmem:[%s18 + $0x18] sm:$0xff]
        %v1896 = vld [vmem:[%s19] sm:$0x1]
        %1898 = vrot.lane.b32.xlu0 %v1797, 120
        %v1899 = vpop.permute.xlu0 %1898
        %1900 = vrot.lane.b32.xlu0 %v1797, 112
        %v1901 = vpop.permute.xlu0 %1900
        %1902 = vrot.lane.b32.xlu0 %v1797, 104
        %v1903 = vpop.permute.xlu0 %1902
        %1906 = vrot.lane.b32.xlu0 %v1884, 120
        %v1907 = vpop.permute.xlu0 %1906
        %1908 = vrot.lane.b32.xlu0 %v1889, 120
        %v1909 = vpop.permute.xlu0 %1908
        %1910 = vrot.lane.b32.xlu0 %v1884, 112
        %v1911 = vpop.permute.xlu0 %1910
        %1912 = vrot.lane.b32.xlu0 %v1889, 112
        %v1913 = vpop.permute.xlu0 %1912
        %1914 = vrot.lane.b32.xlu0 %v1884, 104
        %v1915 = vpop.permute.xlu0 %1914
        %1916 = vrot.lane.b32.xlu0 %v1889, 104
        %v1917 = vpop.permute.xlu0 %1916
        %v1919 = vlaneseq
        %v1920 = vshrl.u32 %v1919, 7
        %v1921 = vsub.s32 0, %v1920
        %v1922 = vrot.slane %v795, %v1921
        %v1924 = vsel %vm932, %v1797, 0
        %v1926 = vsel %vm932, %v1884, 0
        %v1928 = vsel %vm932, %v1889, 0
        %1930 = vmatprep.subr.mxu0 0.0
        %1931 = vmatpush1.xpose.msra.mxu0 0.0
        %1932 = vmatprep.subr.mxu0 0.0
        %1933 = vmatpush1.xpose.msra.mxu0 0.0
        %1934 = vmatprep.subr.mxu0 0.0
        %1935 = vmatpush1.xpose.msra.mxu0 0.0
        %1936 = vmatprep.subr.mxu0 0.0
        %1937 = vmatpush1.xpose.msra.mxu0 0.0
        %1938 = vmatprep.subr.mxu0 0.0
        %1939 = vmatpush1.xpose.msra.mxu0 0.0
        %1940 = vmatprep.subr.mxu0 0.0
        %1941 = vmatpush1.xpose.msra.mxu0 0.0
        %1942 = vmatprep.subr.mxu0 0.0
        %1943 = vmatpush1.xpose.msra.mxu0 0.0
        %1944 = vmatprep.subr.mxu0 0.0
        %1945 = vmatpush1.xpose.msra.mxu0 0.0
        %1946 = vmatprep.subr.mxu0 0.0
        %1947 = vmatpush1.xpose.msra.mxu0 0.0
        %1948 = vmatprep.subr.mxu0 0.0
        %1949 = vmatpush1.xpose.msra.mxu0 0.0
        %1950 = vmatprep.subr.mxu0 0.0
        %1951 = vmatpush1.xpose.msra.mxu0 0.0
        %1952 = vmatprep.subr.mxu0 0.0
        %1953 = vmatpush1.xpose.msra.mxu0 0.0
        %1954 = vmatprep.subr.mxu0 0.0
        %1955 = vmatpush1.xpose.msra.mxu0 0.0
        %1956 = vmatprep.subr.mxu0 0.0
        %1957 = vmatpush1.xpose.msra.mxu0 0.0
        %1958 = vmatprep.subr.mxu0 0.0
        %1959 = vmatpush1.xpose.msra.mxu0 %v1928
        %1960 = vmatprep.subr.mxu0 0.0
        %1961 = vmatpush1.xpose.msra.mxu0 %v1926
        %1962 = vmatprep.subr.mxu0 0.0
        %1963 = vmatpush2.xpose.msra.mxu0 0.0
        %1964 = vmatprep.subr.mxu0 0.0
        %1965 = vmatpush2.xpose.msra.mxu0 0.0
        %1966 = vmatprep.subr.mxu0 0.0
        %1967 = vmatpush2.xpose.msra.mxu0 0.0
        %1968 = vmatprep.subr.mxu0 0.0
        %1969 = vmatpush2.xpose.msra.mxu0 0.0
        %1970 = vmatprep.subr.mxu0 0.0
        %1971 = vmatpush2.xpose.msra.mxu0 0.0
        %1972 = vmatprep.subr.mxu0 0.0
        %1973 = vmatpush2.xpose.msra.mxu0 0.0
        %1974 = vmatprep.subr.mxu0 0.0
        %1975 = vmatpush2.xpose.msra.mxu0 0.0
        %1976 = vmatprep.subr.mxu0 0.0
        %1977 = vmatpush2.xpose.msra.mxu0 0.0
        %1978 = vmatprep.subr.mxu0 0.0
        %1979 = vmatpush2.xpose.msra.mxu0 0.0
        %1980 = vmatprep.subr.mxu0 0.0
        %1981 = vmatpush2.xpose.msra.mxu0 0.0
        %1982 = vmatprep.subr.mxu0 0.0
        %1983 = vmatpush2.xpose.msra.mxu0 0.0
        %1984 = vmatprep.subr.mxu0 0.0
        %1985 = vmatpush2.xpose.msra.mxu0 0.0
        %1986 = vmatprep.subr.mxu0 0.0
        %1987 = vmatpush2.xpose.msra.mxu0 0.0
        %1988 = vmatprep.subr.mxu0 0.0
        %1989 = vmatpush2.xpose.msra.mxu0 0.0
        %1990 = vmatprep.subr.mxu0 0.0
        %1991 = vmatpush2.xpose.msra.mxu0 0.0
        %1992 = vmatprep.subr.mxu0 0.0
        %1993 = vmatpush2.xpose.msra.mxu0 0.0
        %1994 = vmatprep.mubr.f32.mxu0 0.0
        %1995 = vmatmul.mubr.f32.gmra.mxu0 %v1924
        %v1996 = vpop.f32.mrf.mxu0
        %v1997 = vadd.f32 %v1922, %v1996
        %v1998 = vpop.f32.mrf.mxu0
        %1999 = vdwg.mxu0
        %v2000 = vsel %vm932, %v1899, 0
        %v2002 = vsel %vm932, %v1907, 0
        %v2004 = vsel %vm932, %v1909, 0
        %2006 = vmatprep.subr.mxu0 0.0
        %2007 = vmatpush1.xpose.msra.mxu0 0.0
        %2008 = vmatprep.subr.mxu0 0.0
        %2009 = vmatpush1.xpose.msra.mxu0 0.0
        %2010 = vmatprep.subr.mxu0 0.0
        %2011 = vmatpush1.xpose.msra.mxu0 0.0
        %2012 = vmatprep.subr.mxu0 0.0
        %2013 = vmatpush1.xpose.msra.mxu0 0.0
        %2014 = vmatprep.subr.mxu0 0.0
        %2015 = vmatpush1.xpose.msra.mxu0 0.0
        %2016 = vmatprep.subr.mxu0 0.0
        %2017 = vmatpush1.xpose.msra.mxu0 0.0
        %2018 = vmatprep.subr.mxu0 0.0
        %2019 = vmatpush1.xpose.msra.mxu0 0.0
        %2020 = vmatprep.subr.mxu0 0.0
        %2021 = vmatpush1.xpose.msra.mxu0 0.0
        %2022 = vmatprep.subr.mxu0 0.0
        %2023 = vmatpush1.xpose.msra.mxu0 0.0
        %2024 = vmatprep.subr.mxu0 0.0
        %2025 = vmatpush1.xpose.msra.mxu0 0.0
        %2026 = vmatprep.subr.mxu0 0.0
        %2027 = vmatpush1.xpose.msra.mxu0 0.0
        %2028 = vmatprep.subr.mxu0 0.0
        %2029 = vmatpush1.xpose.msra.mxu0 0.0
        %2030 = vmatprep.subr.mxu0 0.0
        %2031 = vmatpush1.xpose.msra.mxu0 0.0
        %2032 = vmatprep.subr.mxu0 0.0
        %2033 = vmatpush1.xpose.msra.mxu0 0.0
        %2034 = vmatprep.subr.mxu0 0.0
        %2035 = vmatpush1.xpose.msra.mxu0 %v2004
        %2036 = vmatprep.subr.mxu0 0.0
        %2037 = vmatpush1.xpose.msra.mxu0 %v2002
        %2038 = vmatprep.subr.mxu0 0.0
        %2039 = vmatpush2.xpose.msra.mxu0 0.0
        %2040 = vmatprep.subr.mxu0 0.0
        %2041 = vmatpush2.xpose.msra.mxu0 0.0
        %2042 = vmatprep.subr.mxu0 0.0
        %2043 = vmatpush2.xpose.msra.mxu0 0.0
        %2044 = vmatprep.subr.mxu0 0.0
        %2045 = vmatpush2.xpose.msra.mxu0 0.0
        %2046 = vmatprep.subr.mxu0 0.0
        %2047 = vmatpush2.xpose.msra.mxu0 0.0
        %2048 = vmatprep.subr.mxu0 0.0
        %2049 = vmatpush2.xpose.msra.mxu0 0.0
        %2050 = vmatprep.subr.mxu0 0.0
        %2051 = vmatpush2.xpose.msra.mxu0 0.0
        %2052 = vmatprep.subr.mxu0 0.0
        %2053 = vmatpush2.xpose.msra.mxu0 0.0
        %2054 = vmatprep.subr.mxu0 0.0
        %2055 = vmatpush2.xpose.msra.mxu0 0.0
        %2056 = vmatprep.subr.mxu0 0.0
        %2057 = vmatpush2.xpose.msra.mxu0 0.0
        %2058 = vmatprep.subr.mxu0 0.0
        %2059 = vmatpush2.xpose.msra.mxu0 0.0
        %2060 = vmatprep.subr.mxu0 0.0
        %2061 = vmatpush2.xpose.msra.mxu0 0.0
        %2062 = vmatprep.subr.mxu0 0.0
        %2063 = vmatpush2.xpose.msra.mxu0 0.0
        %2064 = vmatprep.subr.mxu0 0.0
        %2065 = vmatpush2.xpose.msra.mxu0 0.0
        %2066 = vmatprep.subr.mxu0 0.0
        %2067 = vmatpush2.xpose.msra.mxu0 0.0
        %2068 = vmatprep.subr.mxu0 0.0
        %2069 = vmatpush2.xpose.msra.mxu0 0.0
        %2070 = vmatprep.mubr.f32.mxu0 0.0
        %2071 = vmatmul.mubr.f32.gmra.mxu0 %v2000
        %v2072 = vpop.f32.mrf.mxu0
        %v2073 = vadd.f32 %v1922, %v2072
        %v2074 = vpop.f32.mrf.mxu0
        %2075 = vdwg.mxu0
        %v2076 = vsel %vm932, %v1901, 0
        %v2078 = vsel %vm932, %v1911, 0
        %v2080 = vsel %vm932, %v1913, 0
        %2082 = vmatprep.subr.mxu0 0.0
        %2083 = vmatpush1.xpose.msra.mxu0 0.0
        %2084 = vmatprep.subr.mxu0 0.0
        %2085 = vmatpush1.xpose.msra.mxu0 0.0
        %2086 = vmatprep.subr.mxu0 0.0
        %2087 = vmatpush1.xpose.msra.mxu0 0.0
        %2088 = vmatprep.subr.mxu0 0.0
        %2089 = vmatpush1.xpose.msra.mxu0 0.0
        %2090 = vmatprep.subr.mxu0 0.0
        %2091 = vmatpush1.xpose.msra.mxu0 0.0
        %2092 = vmatprep.subr.mxu0 0.0
        %2093 = vmatpush1.xpose.msra.mxu0 0.0
        %2094 = vmatprep.subr.mxu0 0.0
        %2095 = vmatpush1.xpose.msra.mxu0 0.0
        %2096 = vmatprep.subr.mxu0 0.0
        %2097 = vmatpush1.xpose.msra.mxu0 0.0
        %2098 = vmatprep.subr.mxu0 0.0
        %2099 = vmatpush1.xpose.msra.mxu0 0.0
        %2100 = vmatprep.subr.mxu0 0.0
        %2101 = vmatpush1.xpose.msra.mxu0 0.0
        %2102 = vmatprep.subr.mxu0 0.0
        %2103 = vmatpush1.xpose.msra.mxu0 0.0
        %2104 = vmatprep.subr.mxu0 0.0
        %2105 = vmatpush1.xpose.msra.mxu0 0.0
        %2106 = vmatprep.subr.mxu0 0.0
        %2107 = vmatpush1.xpose.msra.mxu0 0.0
        %2108 = vmatprep.subr.mxu0 0.0
        %2109 = vmatpush1.xpose.msra.mxu0 0.0
        %2110 = vmatprep.subr.mxu0 0.0
        %2111 = vmatpush1.xpose.msra.mxu0 %v2080
        %2112 = vmatprep.subr.mxu0 0.0
        %2113 = vmatpush1.xpose.msra.mxu0 %v2078
        %2114 = vmatprep.subr.mxu0 0.0
        %2115 = vmatpush2.xpose.msra.mxu0 0.0
        %2116 = vmatprep.subr.mxu0 0.0
        %2117 = vmatpush2.xpose.msra.mxu0 0.0
        %2118 = vmatprep.subr.mxu0 0.0
        %2119 = vmatpush2.xpose.msra.mxu0 0.0
        %2120 = vmatprep.subr.mxu0 0.0
        %2121 = vmatpush2.xpose.msra.mxu0 0.0
        %2122 = vmatprep.subr.mxu0 0.0
        %2123 = vmatpush2.xpose.msra.mxu0 0.0
        %2124 = vmatprep.subr.mxu0 0.0
        %2125 = vmatpush2.xpose.msra.mxu0 0.0
        %2126 = vmatprep.subr.mxu0 0.0
        %2127 = vmatpush2.xpose.msra.mxu0 0.0
        %2128 = vmatprep.subr.mxu0 0.0
        %2129 = vmatpush2.xpose.msra.mxu0 0.0
        %2130 = vmatprep.subr.mxu0 0.0
        %2131 = vmatpush2.xpose.msra.mxu0 0.0
        %2132 = vmatprep.subr.mxu0 0.0
        %2133 = vmatpush2.xpose.msra.mxu0 0.0
        %2134 = vmatprep.subr.mxu0 0.0
        %2135 = vmatpush2.xpose.msra.mxu0 0.0
        %2136 = vmatprep.subr.mxu0 0.0
        %2137 = vmatpush2.xpose.msra.mxu0 0.0
        %2138 = vmatprep.subr.mxu0 0.0
        %2139 = vmatpush2.xpose.msra.mxu0 0.0
        %2140 = vmatprep.subr.mxu0 0.0
        %2141 = vmatpush2.xpose.msra.mxu0 0.0
        %2142 = vmatprep.subr.mxu0 0.0
        %2143 = vmatpush2.xpose.msra.mxu0 0.0
        %2144 = vmatprep.subr.mxu0 0.0
        %2145 = vmatpush2.xpose.msra.mxu0 0.0
        %2146 = vmatprep.mubr.f32.mxu0 0.0
        %2147 = vmatmul.mubr.f32.gmra.mxu0 %v2076
        %v2148 = vpop.f32.mrf.mxu0
        %v2149 = vadd.f32 %v1922, %v2148
        %v2150 = vpop.f32.mrf.mxu0
        %2151 = vdwg.mxu0
        %v2152 = vsel %vm932, %v1903, 0
        %v2154 = vsel %vm932, %v1915, 0
        %v2156 = vsel %vm932, %v1917, 0
        %2158 = vmatprep.subr.mxu0 0.0
        %2159 = vmatpush1.xpose.msra.mxu0 0.0
        %2160 = vmatprep.subr.mxu0 0.0
        %2161 = vmatpush1.xpose.msra.mxu0 0.0
        %2162 = vmatprep.subr.mxu0 0.0
        %2163 = vmatpush1.xpose.msra.mxu0 0.0
        %2164 = vmatprep.subr.mxu0 0.0
        %2165 = vmatpush1.xpose.msra.mxu0 0.0
        %2166 = vmatprep.subr.mxu0 0.0
        %2167 = vmatpush1.xpose.msra.mxu0 0.0
        %2168 = vmatprep.subr.mxu0 0.0
        %2169 = vmatpush1.xpose.msra.mxu0 0.0
        %2170 = vmatprep.subr.mxu0 0.0
        %2171 = vmatpush1.xpose.msra.mxu0 0.0
        %2172 = vmatprep.subr.mxu0 0.0
        %2173 = vmatpush1.xpose.msra.mxu0 0.0
        %2174 = vmatprep.subr.mxu0 0.0
        %2175 = vmatpush1.xpose.msra.mxu0 0.0
        %2176 = vmatprep.subr.mxu0 0.0
        %2177 = vmatpush1.xpose.msra.mxu0 0.0
        %2178 = vmatprep.subr.mxu0 0.0
        %2179 = vmatpush1.xpose.msra.mxu0 0.0
        %2180 = vmatprep.subr.mxu0 0.0
        %2181 = vmatpush1.xpose.msra.mxu0 0.0
        %2182 = vmatprep.subr.mxu0 0.0
        %2183 = vmatpush1.xpose.msra.mxu0 0.0
        %2184 = vmatprep.subr.mxu0 0.0
        %2185 = vmatpush1.xpose.msra.mxu0 0.0
        %2186 = vmatprep.subr.mxu0 0.0
        %2187 = vmatpush1.xpose.msra.mxu0 %v2156
        %2188 = vmatprep.subr.mxu0 0.0
        %2189 = vmatpush1.xpose.msra.mxu0 %v2154
        %2190 = vmatprep.subr.mxu0 0.0
        %2191 = vmatpush2.xpose.msra.mxu0 0.0
        %2192 = vmatprep.subr.mxu0 0.0
        %2193 = vmatpush2.xpose.msra.mxu0 0.0
        %2194 = vmatprep.subr.mxu0 0.0
        %2195 = vmatpush2.xpose.msra.mxu0 0.0
        %2196 = vmatprep.subr.mxu0 0.0
        %2197 = vmatpush2.xpose.msra.mxu0 0.0
        %2198 = vmatprep.subr.mxu0 0.0
        %2199 = vmatpush2.xpose.msra.mxu0 0.0
        %2200 = vmatprep.subr.mxu0 0.0
        %2201 = vmatpush2.xpose.msra.mxu0 0.0
        %2202 = vmatprep.subr.mxu0 0.0
        %2203 = vmatpush2.xpose.msra.mxu0 0.0
        %2204 = vmatprep.subr.mxu0 0.0
        %2205 = vmatpush2.xpose.msra.mxu0 0.0
        %2206 = vmatprep.subr.mxu0 0.0
        %2207 = vmatpush2.xpose.msra.mxu0 0.0
        %2208 = vmatprep.subr.mxu0 0.0
        %2209 = vmatpush2.xpose.msra.mxu0 0.0
        %2210 = vmatprep.subr.mxu0 0.0
        %2211 = vmatpush2.xpose.msra.mxu0 0.0
        %2212 = vmatprep.subr.mxu0 0.0
        %2213 = vmatpush2.xpose.msra.mxu0 0.0
        %2214 = vmatprep.subr.mxu0 0.0
        %2215 = vmatpush2.xpose.msra.mxu0 0.0
        %2216 = vmatprep.subr.mxu0 0.0
        %2217 = vmatpush2.xpose.msra.mxu0 0.0
        %2218 = vmatprep.subr.mxu0 0.0
        %2219 = vmatpush2.xpose.msra.mxu0 0.0
        %2220 = vmatprep.subr.mxu0 0.0
        %2221 = vmatpush2.xpose.msra.mxu0 0.0
        %2222 = vmatprep.mubr.f32.mxu0 0.0
        %2223 = vmatmul.mubr.f32.gmra.mxu0 %v2152
        %v2224 = vpop.f32.mrf.mxu0
        %v2225 = vadd.f32 %v1922, %v2224
        %v2226 = vpop.f32.mrf.mxu0
        %2227 = vdwg.mxu0
        %v2228 = vsel %vm1596, %v1997, -inf
        %2229 = vmax.xlane.f32.xlu0 %v2228
        %v2230 = vpop.xlane.xlu0 %2229
        %v2231 = vsel %vm1596, %v2073, -inf
        %2232 = vmax.xlane.f32.xlu0 %v2231
        %v2233 = vpop.xlane.xlu0 %2232
        %v2234 = vsel %vm1596, %v2149, -inf
        %2235 = vmax.xlane.f32.xlu0 %v2234
        %v2236 = vpop.xlane.xlu0 %2235
        %v2237 = vsel %vm1596, %v2225, -inf
        %2238 = vmax.xlane.f32.xlu0 %v2237
        %v2239 = vpop.xlane.xlu0 %2238
        %v2240 = vsub.f32 %v1997, %v2230
        %v2241 = vsub.f32 %v2073, %v2233
        %v2242 = vsub.f32 %v2149, %v2236
        %v2243 = vsub.f32 %v2225, %v2239
        %v2244 = vmul.f32 %v2240, 1.442695
        %v2245 = vpow.pop %v2244
        %v2246 = vmul.f32 %v2241, 1.442695
        %v2247 = vpow.pop %v2246
        %v2248 = vmul.f32 %v2242, 1.442695
        %v2249 = vpow.pop %v2248
        %v2250 = vmul.f32 %v2243, 1.442695
        %v2251 = vpow.pop %v2250
        %v2252 = vsel %vm1596, %v2245, 0.0
        %2253 = vadd.xlane.f32.xlu0 %v2252
        %v2254 = vpop.xlane.xlu0 %2253
        %v2255 = vsel %vm1596, %v2247, 0.0
        %2256 = vadd.xlane.f32.xlu0 %v2255
        %v2257 = vpop.xlane.xlu0 %2256
        %v2258 = vsel %vm1596, %v2249, 0.0
        %2259 = vadd.xlane.f32.xlu0 %v2258
        %v2260 = vpop.xlane.xlu0 %2259
        %v2261 = vsel %vm1596, %v2251, 0.0
        %2262 = vadd.xlane.f32.xlu0 %v2261
        %v2263 = vpop.xlane.xlu0 %2262
        %v2264 = vrcp.pop %v2254
        %v2265 = vrcp.pop %v2257
        %v2266 = vrcp.pop %v2260
        %v2267 = vrcp.pop %v2263
        %v2268 = vmul.f32 %v2245, %v2264
        %v2269 = vmul.f32 %v2247, %v2265
        %v2270 = vmul.f32 %v2249, %v2266
        %v2271 = vmul.f32 %v2251, %v2267
        %2272 = vrot.lane.b32.xlu0 %v1884, 96
        %v2273 = vpop.permute.xlu0 %2272
        %2274 = vrot.lane.b32.xlu0 %v1889, 96
        %v2275 = vpop.permute.xlu0 %2274
        %v2279 = vsel %vm1596, %v2268, 0
        %2281 = vmatprep.subr.mxu0 0.0
        %2282 = vmatpush1.msra.mxu0 0.0
        %2283 = vmatprep.subr.mxu0 0.0
        %2284 = vmatpush1.msra.mxu0 0.0
        %2285 = vmatprep.subr.mxu0 0.0
        %2286 = vmatpush1.msra.mxu0 0.0
        %2287 = vmatprep.subr.mxu0 0.0
        %2288 = vmatpush1.msra.mxu0 0.0
        %2289 = vmatprep.subr.mxu0 0.0
        %2290 = vmatpush1.msra.mxu0 0.0
        %2291 = vmatprep.subr.mxu0 0.0
        %2292 = vmatpush1.msra.mxu0 0.0
        %2293 = vmatprep.subr.mxu0 0.0
        %2294 = vmatpush1.msra.mxu0 0.0
        %2295 = vmatprep.subr.mxu0 0.0
        %2296 = vmatpush1.msra.mxu0 0.0
        %2297 = vmatprep.subr.mxu0 0.0
        %2298 = vmatpush1.msra.mxu0 0.0
        %2299 = vmatprep.subr.mxu0 0.0
        %2300 = vmatpush1.msra.mxu0 0.0
        %2301 = vmatprep.subr.mxu0 0.0
        %2302 = vmatpush1.msra.mxu0 0.0
        %2303 = vmatprep.subr.mxu0 0.0
        %2304 = vmatpush1.msra.mxu0 0.0
        %2305 = vmatprep.subr.mxu0 0.0
        %2306 = vmatpush1.msra.mxu0 0.0
        %2307 = vmatprep.subr.mxu0 0.0
        %2308 = vmatpush1.msra.mxu0 0.0
        %2309 = vmatprep.subr.mxu0 0.0
        %2310 = vmatpush1.msra.mxu0 %v2275
        %2311 = vmatprep.subr.mxu0 0.0
        %2312 = vmatpush1.msra.mxu0 %v2273
        %2313 = vmatprep.subr.mxu0 0.0
        %2314 = vmatpush2.msra.mxu0 0.0
        %2315 = vmatprep.subr.mxu0 0.0
        %2316 = vmatpush2.msra.mxu0 0.0
        %2317 = vmatprep.subr.mxu0 0.0
        %2318 = vmatpush2.msra.mxu0 0.0
        %2319 = vmatprep.subr.mxu0 0.0
        %2320 = vmatpush2.msra.mxu0 0.0
        %2321 = vmatprep.subr.mxu0 0.0
        %2322 = vmatpush2.msra.mxu0 0.0
        %2323 = vmatprep.subr.mxu0 0.0
        %2324 = vmatpush2.msra.mxu0 0.0
        %2325 = vmatprep.subr.mxu0 0.0
        %2326 = vmatpush2.msra.mxu0 0.0
        %2327 = vmatprep.subr.mxu0 0.0
        %2328 = vmatpush2.msra.mxu0 0.0
        %2329 = vmatprep.subr.mxu0 0.0
        %2330 = vmatpush2.msra.mxu0 0.0
        %2331 = vmatprep.subr.mxu0 0.0
        %2332 = vmatpush2.msra.mxu0 0.0
        %2333 = vmatprep.subr.mxu0 0.0
        %2334 = vmatpush2.msra.mxu0 0.0
        %2335 = vmatprep.subr.mxu0 0.0
        %2336 = vmatpush2.msra.mxu0 0.0
        %2337 = vmatprep.subr.mxu0 0.0
        %2338 = vmatpush2.msra.mxu0 0.0
        %2339 = vmatprep.subr.mxu0 0.0
        %2340 = vmatpush2.msra.mxu0 0.0
        %2341 = vmatprep.subr.mxu0 0.0
        %2342 = vmatpush2.msra.mxu0 0.0
        %2343 = vmatprep.subr.mxu0 0.0
        %2344 = vmatpush2.msra.mxu0 0.0
        %2345 = vmatprep.mubr.f32.mxu0 0.0
        %2346 = vmatmul.mubr.f32.gmra.mxu0 %v2279
        %v2347 = vpop.f32.mrf.mxu0
        %v2348 = vadd.f32 0.0, %v2347
        %v2349 = vpop.f32.mrf.mxu0
        %2350 = vdwg.mxu0
        %2351 = vrot.lane.b32.xlu0 %v1907, 96
        %v2352 = vpop.permute.xlu0 %2351
        %2353 = vrot.lane.b32.xlu0 %v1909, 96
        %v2354 = vpop.permute.xlu0 %2353
        %v2358 = vsel %vm1596, %v2269, 0
        %2360 = vmatprep.subr.mxu0 0.0
        %2361 = vmatpush1.msra.mxu0 0.0
        %2362 = vmatprep.subr.mxu0 0.0
        %2363 = vmatpush1.msra.mxu0 0.0
        %2364 = vmatprep.subr.mxu0 0.0
        %2365 = vmatpush1.msra.mxu0 0.0
        %2366 = vmatprep.subr.mxu0 0.0
        %2367 = vmatpush1.msra.mxu0 0.0
        %2368 = vmatprep.subr.mxu0 0.0
        %2369 = vmatpush1.msra.mxu0 0.0
        %2370 = vmatprep.subr.mxu0 0.0
        %2371 = vmatpush1.msra.mxu0 0.0
        %2372 = vmatprep.subr.mxu0 0.0
        %2373 = vmatpush1.msra.mxu0 0.0
        %2374 = vmatprep.subr.mxu0 0.0
        %2375 = vmatpush1.msra.mxu0 0.0
        %2376 = vmatprep.subr.mxu0 0.0
        %2377 = vmatpush1.msra.mxu0 0.0
        %2378 = vmatprep.subr.mxu0 0.0
        %2379 = vmatpush1.msra.mxu0 0.0
        %2380 = vmatprep.subr.mxu0 0.0
        %2381 = vmatpush1.msra.mxu0 0.0
        %2382 = vmatprep.subr.mxu0 0.0
        %2383 = vmatpush1.msra.mxu0 0.0
        %2384 = vmatprep.subr.mxu0 0.0
        %2385 = vmatpush1.msra.mxu0 0.0
        %2386 = vmatprep.subr.mxu0 0.0
        %2387 = vmatpush1.msra.mxu0 0.0
        %2388 = vmatprep.subr.mxu0 0.0
        %2389 = vmatpush1.msra.mxu0 %v2354
        %2390 = vmatprep.subr.mxu0 0.0
        %2391 = vmatpush1.msra.mxu0 %v2352
        %2392 = vmatprep.subr.mxu0 0.0
        %2393 = vmatpush2.msra.mxu0 0.0
        %2394 = vmatprep.subr.mxu0 0.0
        %2395 = vmatpush2.msra.mxu0 0.0
        %2396 = vmatprep.subr.mxu0 0.0
        %2397 = vmatpush2.msra.mxu0 0.0
        %2398 = vmatprep.subr.mxu0 0.0
        %2399 = vmatpush2.msra.mxu0 0.0
        %2400 = vmatprep.subr.mxu0 0.0
        %2401 = vmatpush2.msra.mxu0 0.0
        %2402 = vmatprep.subr.mxu0 0.0
        %2403 = vmatpush2.msra.mxu0 0.0
        %2404 = vmatprep.subr.mxu0 0.0
        %2405 = vmatpush2.msra.mxu0 0.0
        %2406 = vmatprep.subr.mxu0 0.0
        %2407 = vmatpush2.msra.mxu0 0.0
        %2408 = vmatprep.subr.mxu0 0.0
        %2409 = vmatpush2.msra.mxu0 0.0
        %2410 = vmatprep.subr.mxu0 0.0
        %2411 = vmatpush2.msra.mxu0 0.0
        %2412 = vmatprep.subr.mxu0 0.0
        %2413 = vmatpush2.msra.mxu0 0.0
        %2414 = vmatprep.subr.mxu0 0.0
        %2415 = vmatpush2.msra.mxu0 0.0
        %2416 = vmatprep.subr.mxu0 0.0
        %2417 = vmatpush2.msra.mxu0 0.0
        %2418 = vmatprep.subr.mxu0 0.0
        %2419 = vmatpush2.msra.mxu0 0.0
        %2420 = vmatprep.subr.mxu0 0.0
        %2421 = vmatpush2.msra.mxu0 0.0
        %2422 = vmatprep.subr.mxu0 0.0
        %2423 = vmatpush2.msra.mxu0 0.0
        %2424 = vmatprep.mubr.f32.mxu0 0.0
        %2425 = vmatmul.mubr.f32.gmra.mxu0 %v2358
        %v2426 = vpop.f32.mrf.mxu0
        %v2427 = vadd.f32 0.0, %v2426
        %v2428 = vpop.f32.mrf.mxu0
        %2429 = vdwg.mxu0
        %2430 = vrot.lane.b32.xlu0 %v1911, 96
        %v2431 = vpop.permute.xlu0 %2430
        %2432 = vrot.lane.b32.xlu0 %v1913, 96
        %v2433 = vpop.permute.xlu0 %2432
        %v2437 = vsel %vm1596, %v2270, 0
        %2439 = vmatprep.subr.mxu0 0.0
        %2440 = vmatpush1.msra.mxu0 0.0
        %2441 = vmatprep.subr.mxu0 0.0
        %2442 = vmatpush1.msra.mxu0 0.0
        %2443 = vmatprep.subr.mxu0 0.0
        %2444 = vmatpush1.msra.mxu0 0.0
        %2445 = vmatprep.subr.mxu0 0.0
        %2446 = vmatpush1.msra.mxu0 0.0
        %2447 = vmatprep.subr.mxu0 0.0
        %2448 = vmatpush1.msra.mxu0 0.0
        %2449 = vmatprep.subr.mxu0 0.0
        %2450 = vmatpush1.msra.mxu0 0.0
        %2451 = vmatprep.subr.mxu0 0.0
        %2452 = vmatpush1.msra.mxu0 0.0
        %2453 = vmatprep.subr.mxu0 0.0
        %2454 = vmatpush1.msra.mxu0 0.0
        %2455 = vmatprep.subr.mxu0 0.0
        %2456 = vmatpush1.msra.mxu0 0.0
        %2457 = vmatprep.subr.mxu0 0.0
        %2458 = vmatpush1.msra.mxu0 0.0
        %2459 = vmatprep.subr.mxu0 0.0
        %2460 = vmatpush1.msra.mxu0 0.0
        %2461 = vmatprep.subr.mxu0 0.0
        %2462 = vmatpush1.msra.mxu0 0.0
        %2463 = vmatprep.subr.mxu0 0.0
        %2464 = vmatpush1.msra.mxu0 0.0
        %2465 = vmatprep.subr.mxu0 0.0
        %2466 = vmatpush1.msra.mxu0 0.0
        %2467 = vmatprep.subr.mxu0 0.0
        %2468 = vmatpush1.msra.mxu0 %v2433
        %2469 = vmatprep.subr.mxu0 0.0
        %2470 = vmatpush1.msra.mxu0 %v2431
        %2471 = vmatprep.subr.mxu0 0.0
        %2472 = vmatpush2.msra.mxu0 0.0
        %2473 = vmatprep.subr.mxu0 0.0
        %2474 = vmatpush2.msra.mxu0 0.0
        %2475 = vmatprep.subr.mxu0 0.0
        %2476 = vmatpush2.msra.mxu0 0.0
        %2477 = vmatprep.subr.mxu0 0.0
        %2478 = vmatpush2.msra.mxu0 0.0
        %2479 = vmatprep.subr.mxu0 0.0
        %2480 = vmatpush2.msra.mxu0 0.0
        %2481 = vmatprep.subr.mxu0 0.0
        %2482 = vmatpush2.msra.mxu0 0.0
        %2483 = vmatprep.subr.mxu0 0.0
        %2484 = vmatpush2.msra.mxu0 0.0
        %2485 = vmatprep.subr.mxu0 0.0
        %2486 = vmatpush2.msra.mxu0 0.0
        %2487 = vmatprep.subr.mxu0 0.0
        %2488 = vmatpush2.msra.mxu0 0.0
        %2489 = vmatprep.subr.mxu0 0.0
        %2490 = vmatpush2.msra.mxu0 0.0
        %2491 = vmatprep.subr.mxu0 0.0
        %2492 = vmatpush2.msra.mxu0 0.0
        %2493 = vmatprep.subr.mxu0 0.0
        %2494 = vmatpush2.msra.mxu0 0.0
        %2495 = vmatprep.subr.mxu0 0.0
        %2496 = vmatpush2.msra.mxu0 0.0
        %2497 = vmatprep.subr.mxu0 0.0
        %2498 = vmatpush2.msra.mxu0 0.0
        %2499 = vmatprep.subr.mxu0 0.0
        %2500 = vmatpush2.msra.mxu0 0.0
        %2501 = vmatprep.subr.mxu0 0.0
        %2502 = vmatpush2.msra.mxu0 0.0
        %2503 = vmatprep.mubr.f32.mxu0 0.0
        %2504 = vmatmul.mubr.f32.gmra.mxu0 %v2437
        %v2505 = vpop.f32.mrf.mxu0
        %v2506 = vadd.f32 0.0, %v2505
        %v2507 = vpop.f32.mrf.mxu0
        %2508 = vdwg.mxu0
        %2509 = vrot.lane.b32.xlu0 %v1915, 96
        %v2510 = vpop.permute.xlu0 %2509
        %2511 = vrot.lane.b32.xlu0 %v1917, 96
        %v2512 = vpop.permute.xlu0 %2511
        %v2516 = vsel %vm1596, %v2271, 0
        %2518 = vmatprep.subr.mxu0 0.0
        %2519 = vmatpush1.msra.mxu0 0.0
        %2520 = vmatprep.subr.mxu0 0.0
        %2521 = vmatpush1.msra.mxu0 0.0
        %2522 = vmatprep.subr.mxu0 0.0
        %2523 = vmatpush1.msra.mxu0 0.0
        %2524 = vmatprep.subr.mxu0 0.0
        %2525 = vmatpush1.msra.mxu0 0.0
        %2526 = vmatprep.subr.mxu0 0.0
        %2527 = vmatpush1.msra.mxu0 0.0
        %2528 = vmatprep.subr.mxu0 0.0
        %2529 = vmatpush1.msra.mxu0 0.0
        %2530 = vmatprep.subr.mxu0 0.0
        %2531 = vmatpush1.msra.mxu0 0.0
        %2532 = vmatprep.subr.mxu0 0.0
        %2533 = vmatpush1.msra.mxu0 0.0
        %2534 = vmatprep.subr.mxu0 0.0
        %2535 = vmatpush1.msra.mxu0 0.0
        %2536 = vmatprep.subr.mxu0 0.0
        %2537 = vmatpush1.msra.mxu0 0.0
        %2538 = vmatprep.subr.mxu0 0.0
        %2539 = vmatpush1.msra.mxu0 0.0
        %2540 = vmatprep.subr.mxu0 0.0
        %2541 = vmatpush1.msra.mxu0 0.0
        %2542 = vmatprep.subr.mxu0 0.0
        %2543 = vmatpush1.msra.mxu0 0.0
        %2544 = vmatprep.subr.mxu0 0.0
        %2545 = vmatpush1.msra.mxu0 0.0
        %2546 = vmatprep.subr.mxu0 0.0
        %2547 = vmatpush1.msra.mxu0 %v2512
        %2548 = vmatprep.subr.mxu0 0.0
        %2549 = vmatpush1.msra.mxu0 %v2510
        %2550 = vmatprep.subr.mxu0 0.0
        %2551 = vmatpush2.msra.mxu0 0.0
        %2552 = vmatprep.subr.mxu0 0.0
        %2553 = vmatpush2.msra.mxu0 0.0
        %2554 = vmatprep.subr.mxu0 0.0
        %2555 = vmatpush2.msra.mxu0 0.0
        %2556 = vmatprep.subr.mxu0 0.0
        %2557 = vmatpush2.msra.mxu0 0.0
        %2558 = vmatprep.subr.mxu0 0.0
        %2559 = vmatpush2.msra.mxu0 0.0
        %2560 = vmatprep.subr.mxu0 0.0
        %2561 = vmatpush2.msra.mxu0 0.0
        %2562 = vmatprep.subr.mxu0 0.0
        %2563 = vmatpush2.msra.mxu0 0.0
        %2564 = vmatprep.subr.mxu0 0.0
        %2565 = vmatpush2.msra.mxu0 0.0
        %2566 = vmatprep.subr.mxu0 0.0
        %2567 = vmatpush2.msra.mxu0 0.0
        %2568 = vmatprep.subr.mxu0 0.0
        %2569 = vmatpush2.msra.mxu0 0.0
        %2570 = vmatprep.subr.mxu0 0.0
        %2571 = vmatpush2.msra.mxu0 0.0
        %2572 = vmatprep.subr.mxu0 0.0
        %2573 = vmatpush2.msra.mxu0 0.0
        %2574 = vmatprep.subr.mxu0 0.0
        %2575 = vmatpush2.msra.mxu0 0.0
        %2576 = vmatprep.subr.mxu0 0.0
        %2577 = vmatpush2.msra.mxu0 0.0
        %2578 = vmatprep.subr.mxu0 0.0
        %2579 = vmatpush2.msra.mxu0 0.0
        %2580 = vmatprep.subr.mxu0 0.0
        %2581 = vmatpush2.msra.mxu0 0.0
        %2582 = vmatprep.mubr.f32.mxu0 0.0
        %2583 = vmatmul.mubr.f32.gmra.mxu0 %v2516
        %v2584 = vpop.f32.mrf.mxu0
        %v2585 = vadd.f32 0.0, %v2584
        %v2586 = vpop.f32.mrf.mxu0
        %2587 = vdwg.mxu0
        %2589 = vrot.lane.b32.xlu0 %v2427, 8
        %v2590 = vpop.permute.xlu0 %2589
        %2593 = vrot.lane.b32.xlu0 %v2506, 16
        %v2594 = vpop.permute.xlu0 %2593
        %2597 = vrot.lane.b32.xlu0 %v2585, 24
        %v2598 = vpop.permute.xlu0 %2597
        %v2600 = vsel %vm932, %v2348, %v2590
        %v2601 = vsel %vm1596, %v2600, %v2594
        %v2602 = vsel %vm1598, %v2601, %v2598
        %v2604 = vlaneseq
        %v2605 = vshrl.u32 %v2604, 7
        %v2606 = vsub.s32 0, %v2605
        %v2607 = vrot.slane %v1896, %v2606
        %v2610 = vsel %vm798, %v2602, 0
        %2612 = vmatprep.subr.mxu0 0.0
        %2613 = vmatpush1.msra.mxu0 0.0
        %2614 = vmatprep.subr.mxu0 0.0
        %2615 = vmatpush1.msra.mxu0 0.0
        %2616 = vmatprep.subr.mxu0 0.0
        %2617 = vmatpush1.msra.mxu0 0.0
        %2618 = vmatprep.subr.mxu0 0.0
        %2619 = vmatpush1.msra.mxu0 0.0
        %2620 = vmatprep.subr.mxu0 0.0
        %2621 = vmatpush1.msra.mxu0 0.0
        %2622 = vmatprep.subr.mxu0 0.0
        %2623 = vmatpush1.msra.mxu0 0.0
        %2624 = vmatprep.subr.mxu0 0.0
        %2625 = vmatpush1.msra.mxu0 0.0
        %2626 = vmatprep.subr.mxu0 0.0
        %2627 = vmatpush1.msra.mxu0 0.0
        %2628 = vmatprep.subr.mxu0 0.0
        %2629 = vmatpush1.msra.mxu0 0.0
        %2630 = vmatprep.subr.mxu0 0.0
        %2631 = vmatpush1.msra.mxu0 0.0
        %2632 = vmatprep.subr.mxu0 0.0
        %2633 = vmatpush1.msra.mxu0 0.0
        %2634 = vmatprep.subr.mxu0 0.0
        %2635 = vmatpush1.msra.mxu0 0.0
        %2636 = vmatprep.subr.mxu0 0.0
        %2637 = vmatpush1.msra.mxu0 %v1895
        %2638 = vmatprep.subr.mxu0 0.0
        %2639 = vmatpush1.msra.mxu0 %v1894
        %2640 = vmatprep.subr.mxu0 0.0
        %2641 = vmatpush1.msra.mxu0 %v1893
        %2642 = vmatprep.subr.mxu0 0.0
        %2643 = vmatpush1.msra.mxu0 %v1892
        %2644 = vmatprep.subr.mxu0 0.0
        %2645 = vmatpush2.msra.mxu0 0.0
        %2646 = vmatprep.subr.mxu0 0.0
        %2647 = vmatpush2.msra.mxu0 0.0
        %2648 = vmatprep.subr.mxu0 0.0
        %2649 = vmatpush2.msra.mxu0 0.0
        %2650 = vmatprep.subr.mxu0 0.0
        %2651 = vmatpush2.msra.mxu0 0.0
        %2652 = vmatprep.subr.mxu0 0.0
        %2653 = vmatpush2.msra.mxu0 0.0
        %2654 = vmatprep.subr.mxu0 0.0
        %2655 = vmatpush2.msra.mxu0 0.0
        %2656 = vmatprep.subr.mxu0 0.0
        %2657 = vmatpush2.msra.mxu0 0.0
        %2658 = vmatprep.subr.mxu0 0.0
        %2659 = vmatpush2.msra.mxu0 0.0
        %2660 = vmatprep.subr.mxu0 0.0
        %2661 = vmatpush2.msra.mxu0 0.0
        %2662 = vmatprep.subr.mxu0 0.0
        %2663 = vmatpush2.msra.mxu0 0.0
        %2664 = vmatprep.subr.mxu0 0.0
        %2665 = vmatpush2.msra.mxu0 0.0
        %2666 = vmatprep.subr.mxu0 0.0
        %2667 = vmatpush2.msra.mxu0 0.0
        %2668 = vmatprep.subr.mxu0 0.0
        %2669 = vmatpush2.msra.mxu0 0.0
        %2670 = vmatprep.subr.mxu0 0.0
        %2671 = vmatpush2.msra.mxu0 0.0
        %2672 = vmatprep.subr.mxu0 0.0
        %2673 = vmatpush2.msra.mxu0 0.0
        %2674 = vmatprep.subr.mxu0 0.0
        %2675 = vmatpush2.msra.mxu0 0.0
        %2676 = vmatprep.mubr.f32.mxu0 0.0
        %2677 = vmatmul.mubr.f32.gmra.mxu0 %v2610
        %v2678 = vpop.f32.mrf.mxu0
        %v2679 = vadd.f32 %v2607, %v2678
        %v2680 = vpop.f32.mrf.mxu0
        %2681 = vdwg.mxu0
        %v2682 = vadd.f32 %v1679, %v2679
        %v2683 = vld [vmem:[%s8] sm:$0x1]
        %v2684 = vld [vmem:[%s9] sm:$0x1]
        %v2685 = vsel %vm798, %v2682, 0.0
        %2686 = vadd.xlane.f32.xlu0 %v2685
        %v2687 = vpop.xlane.xlu0 %2686
        %v2688 = vmul.f32 %v2687, %v802
        %v2689 = vsub.f32 %v2682, %v2688
        %v2690 = vmul.f32 %v2689, %v2689
        %v2691 = vsel %vm798, %v2690, 0.0
        %2692 = vadd.xlane.f32.xlu0 %v2691
        %v2693 = vpop.xlane.xlu0 %2692
        %v2694 = vmul.f32 %v2693, 0.032258064
        %v2695 = vrsqrt.pop %v2694
        %v2696 = vmul.f32 %v2694, %v2695
        %vm2697 = vcmp.eq.f32.partialorder %v2694, inf
        %v2698 = vsel %vm2697, %v2694, %v2696
        %vm2699 = vcmp.eq.f32.partialorder %v2694, 0.0
        %v2700 = vand.u32 %v2694, 2147483648
        %v2701 = vsel %vm2699, %v2700, %v2698
        %v2702 = vadd.f32 %v2701, 1e-06
        %v2703 = vrcp.pop %v2702
        %v2705 = vlaneseq
        %v2706 = vshrl.u32 %v2705, 7
        %v2707 = vsub.s32 0, %v2706
        %v2708 = vrot.slane %v2683, %v2707
        %v2710 = vmul.f32 %v2708, %v2689
        %v2711 = vmul.f32 %v2710, %v2703
        %v2713 = vlaneseq
        %v2714 = vshrl.u32 %v2713, 7
        %v2715 = vsub.s32 0, %v2714
        %v2716 = vrot.slane %v2684, %v2715
        %v2718 = vadd.f32 %v2711, %v2716
        %v2719 = vpack.c.bf16 %v2718, %v2718
        %v2720 = vld [vmem:[%s20] sm:$0xff]
        %v2721 = vld [vmem:[%s20 + $0x8] sm:$0xff]
        %v2722 = vld [vmem:[%s20 + $0x10] sm:$0xff]
        %v2723 = vld [vmem:[%s20 + $0x18] sm:$0xff]
        %v2724 = vld [vmem:[%s20 + $0x20] sm:$0xff]
        %v2725 = vld [vmem:[%s20 + $0x28] sm:$0xff]
        %v2726 = vld [vmem:[%s20 + $0x30] sm:$0xff]
        %v2727 = vld [vmem:[%s20 + $0x38] sm:$0xff]
        %v2728 = vld [vmem:[%s20 + $0x40] sm:$0xff]
        %v2729 = vld [vmem:[%s20 + $0x48] sm:$0xff]
        %v2730 = vld [vmem:[%s20 + $0x50] sm:$0xff]
        %v2731 = vld [vmem:[%s20 + $0x58] sm:$0xff]
        %v2732 = vld [vmem:[%s20 + $0x60] sm:$0xff]
        %v2733 = vld [vmem:[%s20 + $0x68] sm:$0xff]
        %v2734 = vld [vmem:[%s20 + $0x70] sm:$0xff]
        %v2735 = vld [vmem:[%s20 + $0x78] sm:$0xff]
        %v2736 = vld [vmem:[%s20 + $0x80] sm:$0xff]
        %v2737 = vld [vmem:[%s20 + $0x88] sm:$0xff]
        %v2738 = vld [vmem:[%s20 + $0x90] sm:$0xff]
        %v2739 = vld [vmem:[%s20 + $0x98] sm:$0xff]
        %v2740 = vld [vmem:[%s20 + $0xa0] sm:$0xff]
        %v2741 = vld [vmem:[%s20 + $0xa8] sm:$0xff]
        %v2742 = vld [vmem:[%s20 + $0xb0] sm:$0xff]
        %v2743 = vld [vmem:[%s20 + $0xb8] sm:$0xff]
        %v2744 = vld [vmem:[%s20 + $0xc0] sm:$0xff]
        %v2745 = vld [vmem:[%s20 + $0xc8] sm:$0xff]
        %v2746 = vld [vmem:[%s20 + $0xd0] sm:$0xff]
        %v2747 = vld [vmem:[%s20 + $0xd8] sm:$0xff]
        %v2748 = vld [vmem:[%s20 + $0xe0] sm:$0xff]
        %v2749 = vld [vmem:[%s20 + $0xe8] sm:$0xff]
        %v2750 = vld [vmem:[%s20 + $0xf0] sm:$0xff]
        %v2751 = vld [vmem:[%s20 + $0xf8] sm:$0xff]
        %v2752 = vld [vmem:[%s21] sm:$0xff]
        %v2753 = vld [vmem:[%s21 + $0x8] sm:$0xff]
        %v2756 = vlaneseq
        %v2757 = vshrl.u32 %v2756, 7
        %v2758 = vsub.s32 0, %v2757
        %v2759 = vrot.slane %v2752, %v2758
        %v2760 = vlaneseq
        %v2761 = vshrl.u32 %v2760, 7
        %v2762 = vsub.s32 1, %v2761
        %v2763 = vrot.slane %v2752, %v2762
        %v2764 = vlaneseq
        %v2765 = vshrl.u32 %v2764, 7
        %v2766 = vsub.s32 2, %v2765
        %v2767 = vrot.slane %v2752, %v2766
        %v2768 = vlaneseq
        %v2769 = vshrl.u32 %v2768, 7
        %v2770 = vsub.s32 3, %v2769
        %v2771 = vrot.slane %v2752, %v2770
        %v2772 = vlaneseq
        %v2773 = vshrl.u32 %v2772, 7
        %v2774 = vsub.s32 4, %v2773
        %v2775 = vrot.slane %v2752, %v2774
        %v2776 = vlaneseq
        %v2777 = vshrl.u32 %v2776, 7
        %v2778 = vsub.s32 5, %v2777
        %v2779 = vrot.slane %v2752, %v2778
        %v2780 = vlaneseq
        %v2781 = vshrl.u32 %v2780, 7
        %v2782 = vsub.s32 6, %v2781
        %v2783 = vrot.slane %v2752, %v2782
        %v2784 = vlaneseq
        %v2785 = vshrl.u32 %v2784, 7
        %v2786 = vsub.s32 7, %v2785
        %v2787 = vrot.slane %v2752, %v2786
        %v2788 = vlaneseq
        %v2789 = vshrl.u32 %v2788, 7
        %v2790 = vsub.s32 0, %v2789
        %v2791 = vrot.slane %v2753, %v2790
        %v2792 = vlaneseq
        %v2793 = vshrl.u32 %v2792, 7
        %v2794 = vsub.s32 1, %v2793
        %v2795 = vrot.slane %v2753, %v2794
        %v2796 = vlaneseq
        %v2797 = vshrl.u32 %v2796, 7
        %v2798 = vsub.s32 2, %v2797
        %v2799 = vrot.slane %v2753, %v2798
        %v2800 = vlaneseq
        %v2801 = vshrl.u32 %v2800, 7
        %v2802 = vsub.s32 3, %v2801
        %v2803 = vrot.slane %v2753, %v2802
        %v2804 = vlaneseq
        %v2805 = vshrl.u32 %v2804, 7
        %v2806 = vsub.s32 4, %v2805
        %v2807 = vrot.slane %v2753, %v2806
        %v2808 = vlaneseq
        %v2809 = vshrl.u32 %v2808, 7
        %v2810 = vsub.s32 5, %v2809
        %v2811 = vrot.slane %v2753, %v2810
        %v2812 = vlaneseq
        %v2813 = vshrl.u32 %v2812, 7
        %v2814 = vsub.s32 6, %v2813
        %v2815 = vrot.slane %v2753, %v2814
        %v2816 = vlaneseq
        %v2817 = vshrl.u32 %v2816, 7
        %v2818 = vsub.s32 7, %v2817
        %v2819 = vrot.slane %v2753, %v2818
        %v2868 = vunpack.c.l.b16 %v2720
        %v2869 = vunpack.c.h.b16 %v2720
        %v2870 = vunpack.c.l.b16 %v2721
        %v2871 = vunpack.c.h.b16 %v2721
        %v2872 = vunpack.c.l.b16 %v2722
        %v2873 = vunpack.c.h.b16 %v2722
        %v2874 = vunpack.c.l.b16 %v2723
        %v2875 = vunpack.c.h.b16 %v2723
        %v2876 = vunpack.c.l.b16 %v2724
        %v2877 = vunpack.c.h.b16 %v2724
        %v2878 = vunpack.c.l.b16 %v2725
        %v2879 = vunpack.c.h.b16 %v2725
        %v2880 = vunpack.c.l.b16 %v2726
        %v2881 = vunpack.c.h.b16 %v2726
        %v2882 = vunpack.c.l.b16 %v2727
        %v2883 = vunpack.c.h.b16 %v2727
        %v2884 = vunpack.c.l.b16 %v2728
        %v2885 = vunpack.c.h.b16 %v2728
        %v2886 = vunpack.c.l.b16 %v2729
        %v2887 = vunpack.c.h.b16 %v2729
        %v2888 = vunpack.c.l.b16 %v2730
        %v2889 = vunpack.c.h.b16 %v2730
        %v2890 = vunpack.c.l.b16 %v2731
        %v2891 = vunpack.c.h.b16 %v2731
        %v2892 = vunpack.c.l.b16 %v2732
        %v2893 = vunpack.c.h.b16 %v2732
        %v2894 = vunpack.c.l.b16 %v2733
        %v2895 = vunpack.c.h.b16 %v2733
        %v2896 = vunpack.c.l.b16 %v2734
        %v2897 = vunpack.c.h.b16 %v2734
        %v2898 = vunpack.c.l.b16 %v2735
        %v2899 = vunpack.c.h.b16 %v2735
        %v2900 = vunpack.c.l.b16 %v2736
        %v2901 = vunpack.c.h.b16 %v2736
        %v2902 = vunpack.c.l.b16 %v2737
        %v2903 = vunpack.c.h.b16 %v2737
        %v2904 = vunpack.c.l.b16 %v2738
        %v2905 = vunpack.c.h.b16 %v2738
        %v2906 = vunpack.c.l.b16 %v2739
        %v2907 = vunpack.c.h.b16 %v2739
        %v2908 = vunpack.c.l.b16 %v2740
        %v2909 = vunpack.c.h.b16 %v2740
        %v2910 = vunpack.c.l.b16 %v2741
        %v2911 = vunpack.c.h.b16 %v2741
        %v2912 = vunpack.c.l.b16 %v2742
        %v2913 = vunpack.c.h.b16 %v2742
        %v2914 = vunpack.c.l.b16 %v2743
        %v2915 = vunpack.c.h.b16 %v2743
        %v2916 = vunpack.c.l.b16 %v2744
        %v2917 = vunpack.c.h.b16 %v2744
        %v2918 = vunpack.c.l.b16 %v2745
        %v2919 = vunpack.c.h.b16 %v2745
        %v2920 = vunpack.c.l.b16 %v2746
        %v2921 = vunpack.c.h.b16 %v2746
        %v2922 = vunpack.c.l.b16 %v2747
        %v2923 = vunpack.c.h.b16 %v2747
        %v2924 = vunpack.c.l.b16 %v2748
        %v2925 = vunpack.c.h.b16 %v2748
        %v2926 = vunpack.c.l.b16 %v2749
        %v2927 = vunpack.c.h.b16 %v2749
        %v2928 = vunpack.c.l.b16 %v2750
        %v2929 = vunpack.c.h.b16 %v2750
        %v2930 = vunpack.c.l.b16 %v2751
        %v2931 = vunpack.c.h.b16 %v2751
        %v2932 = vpack.c.b16 %v2884, %v2868
        %v2933 = vpack.c.b16 %v2885, %v2869
        %v2934 = vpack.c.b16 %v2886, %v2870
        %v2935 = vpack.c.b16 %v2887, %v2871
        %v2936 = vpack.c.b16 %v2888, %v2872
        %v2937 = vpack.c.b16 %v2889, %v2873
        %v2938 = vpack.c.b16 %v2890, %v2874
        %v2939 = vpack.c.b16 %v2891, %v2875
        %v2940 = vpack.c.b16 %v2892, %v2876
        %v2941 = vpack.c.b16 %v2893, %v2877
        %v2942 = vpack.c.b16 %v2894, %v2878
        %v2943 = vpack.c.b16 %v2895, %v2879
        %v2944 = vpack.c.b16 %v2896, %v2880
        %v2945 = vpack.c.b16 %v2897, %v2881
        %v2946 = vpack.c.b16 %v2898, %v2882
        %v2947 = vpack.c.b16 %v2899, %v2883
        %v2948 = vpack.c.b16 %v2916, %v2900
        %v2949 = vpack.c.b16 %v2917, %v2901
        %v2950 = vpack.c.b16 %v2918, %v2902
        %v2951 = vpack.c.b16 %v2919, %v2903
        %v2952 = vpack.c.b16 %v2920, %v2904
        %v2953 = vpack.c.b16 %v2921, %v2905
        %v2954 = vpack.c.b16 %v2922, %v2906
        %v2955 = vpack.c.b16 %v2923, %v2907
        %v2956 = vpack.c.b16 %v2924, %v2908
        %v2957 = vpack.c.b16 %v2925, %v2909
        %v2958 = vpack.c.b16 %v2926, %v2910
        %v2959 = vpack.c.b16 %v2927, %v2911
        %v2960 = vpack.c.b16 %v2928, %v2912
        %v2961 = vpack.c.b16 %v2929, %v2913
        %v2962 = vpack.c.b16 %v2930, %v2914
        %v2963 = vpack.c.b16 %v2931, %v2915
        %v2997 = vsel %vm798, %v2719, 0
        %2999 = vmatprep.subr.bf16.mxu0 0
        %3000 = vmatpush1.bf16.msra.mxu0 0
        %3001 = vmatprep.subr.bf16.mxu0 0
        %3002 = vmatpush1.bf16.msra.mxu0 0
        %3003 = vmatprep.subr.bf16.mxu0 0
        %3004 = vmatpush1.bf16.msra.mxu0 0
        %3005 = vmatprep.subr.bf16.mxu0 0
        %3006 = vmatpush1.bf16.msra.mxu0 0
        %3007 = vmatprep.subr.bf16.mxu0 0
        %3008 = vmatpush1.bf16.msra.mxu0 0
        %3009 = vmatprep.subr.bf16.mxu0 0
        %3010 = vmatpush1.bf16.msra.mxu0 0
        %3011 = vmatprep.subr.bf16.mxu0 %v2949
        %3012 = vmatpush1.bf16.msra.mxu0 %v2948
        %3013 = vmatprep.subr.bf16.mxu0 %v2933
        %3014 = vmatpush1.bf16.msra.mxu0 %v2932
        %3015 = vmatprep.subr.bf16.mxu0 0
        %3016 = vmatpush2.bf16.msra.mxu0 0
        %3017 = vmatprep.subr.bf16.mxu0 0
        %3018 = vmatpush2.bf16.msra.mxu0 0
        %3019 = vmatprep.subr.bf16.mxu0 0
        %3020 = vmatpush2.bf16.msra.mxu0 0
        %3021 = vmatprep.subr.bf16.mxu0 0
        %3022 = vmatpush2.bf16.msra.mxu0 0
        %3023 = vmatprep.subr.bf16.mxu0 0
        %3024 = vmatpush2.bf16.msra.mxu0 0
        %3025 = vmatprep.subr.bf16.mxu0 0
        %3026 = vmatpush2.bf16.msra.mxu0 0
        %3027 = vmatprep.subr.bf16.mxu0 0
        %3028 = vmatpush2.bf16.msra.mxu0 0
        %3029 = vmatprep.subr.bf16.mxu0 0
        %3030 = vmatpush2.bf16.msra.mxu0 0
        %3031 = vmatprep.mubr.bf16.mxu0 0
        %3032 = vmatmul.mubr.bf16.gmra.mxu0 %v2997
        %v3033 = vpop.f32.mrf.mxu0
        %v3034 = vadd.f32 %v2759, %v3033
        %v3035 = vpop.f32.mrf.mxu0
        %v3036 = vadd.f32 %v2763, %v3035
        %v3037 = vpop.f32.mrf.mxu0
        %v3038 = vpop.f32.mrf.mxu0
        %3039 = vdwg.mxu0
        %3040 = vmatprep.subr.bf16.mxu0 0
        %3041 = vmatpush1.bf16.msra.mxu0 0
        %3042 = vmatprep.subr.bf16.mxu0 0
        %3043 = vmatpush1.bf16.msra.mxu0 0
        %3044 = vmatprep.subr.bf16.mxu0 0
        %3045 = vmatpush1.bf16.msra.mxu0 0
        %3046 = vmatprep.subr.bf16.mxu0 0
        %3047 = vmatpush1.bf16.msra.mxu0 0
        %3048 = vmatprep.subr.bf16.mxu0 0
        %3049 = vmatpush1.bf16.msra.mxu0 0
        %3050 = vmatprep.subr.bf16.mxu0 0
        %3051 = vmatpush1.bf16.msra.mxu0 0
        %3052 = vmatprep.subr.bf16.mxu0 %v2951
        %3053 = vmatpush1.bf16.msra.mxu0 %v2950
        %3054 = vmatprep.subr.bf16.mxu0 %v2935
        %3055 = vmatpush1.bf16.msra.mxu0 %v2934
        %3056 = vmatprep.subr.bf16.mxu0 0
        %3057 = vmatpush2.bf16.msra.mxu0 0
        %3058 = vmatprep.subr.bf16.mxu0 0
        %3059 = vmatpush2.bf16.msra.mxu0 0
        %3060 = vmatprep.subr.bf16.mxu0 0
        %3061 = vmatpush2.bf16.msra.mxu0 0
        %3062 = vmatprep.subr.bf16.mxu0 0
        %3063 = vmatpush2.bf16.msra.mxu0 0
        %3064 = vmatprep.subr.bf16.mxu0 0
        %3065 = vmatpush2.bf16.msra.mxu0 0
        %3066 = vmatprep.subr.bf16.mxu0 0
        %3067 = vmatpush2.bf16.msra.mxu0 0
        %3068 = vmatprep.subr.bf16.mxu0 0
        %3069 = vmatpush2.bf16.msra.mxu0 0
        %3070 = vmatprep.subr.bf16.mxu0 0
        %3071 = vmatpush2.bf16.msra.mxu0 0
        %3072 = vmatprep.mubr.bf16.mxu0 0
        %3073 = vmatmul.mubr.bf16.gmra.mxu0 %v2997
        %v3074 = vpop.f32.mrf.mxu0
        %v3075 = vadd.f32 %v2767, %v3074
        %v3076 = vpop.f32.mrf.mxu0
        %v3077 = vadd.f32 %v2771, %v3076
        %v3078 = vpop.f32.mrf.mxu0
        %v3079 = vpop.f32.mrf.mxu0
        %3080 = vdwg.mxu0
        %3081 = vmatprep.subr.bf16.mxu0 0
        %3082 = vmatpush1.bf16.msra.mxu0 0
        %3083 = vmatprep.subr.bf16.mxu0 0
        %3084 = vmatpush1.bf16.msra.mxu0 0
        %3085 = vmatprep.subr.bf16.mxu0 0
        %3086 = vmatpush1.bf16.msra.mxu0 0
        %3087 = vmatprep.subr.bf16.mxu0 0
        %3088 = vmatpush1.bf16.msra.mxu0 0
        %3089 = vmatprep.subr.bf16.mxu0 0
        %3090 = vmatpush1.bf16.msra.mxu0 0
        %3091 = vmatprep.subr.bf16.mxu0 0
        %3092 = vmatpush1.bf16.msra.mxu0 0
        %3093 = vmatprep.subr.bf16.mxu0 %v2953
        %3094 = vmatpush1.bf16.msra.mxu0 %v2952
        %3095 = vmatprep.subr.bf16.mxu0 %v2937
        %3096 = vmatpush1.bf16.msra.mxu0 %v2936
        %3097 = vmatprep.subr.bf16.mxu0 0
        %3098 = vmatpush2.bf16.msra.mxu0 0
        %3099 = vmatprep.subr.bf16.mxu0 0
        %3100 = vmatpush2.bf16.msra.mxu0 0
        %3101 = vmatprep.subr.bf16.mxu0 0
        %3102 = vmatpush2.bf16.msra.mxu0 0
        %3103 = vmatprep.subr.bf16.mxu0 0
        %3104 = vmatpush2.bf16.msra.mxu0 0
        %3105 = vmatprep.subr.bf16.mxu0 0
        %3106 = vmatpush2.bf16.msra.mxu0 0
        %3107 = vmatprep.subr.bf16.mxu0 0
        %3108 = vmatpush2.bf16.msra.mxu0 0
        %3109 = vmatprep.subr.bf16.mxu0 0
        %3110 = vmatpush2.bf16.msra.mxu0 0
        %3111 = vmatprep.subr.bf16.mxu0 0
        %3112 = vmatpush2.bf16.msra.mxu0 0
        %3113 = vmatprep.mubr.bf16.mxu0 0
        %3114 = vmatmul.mubr.bf16.gmra.mxu0 %v2997
        %v3115 = vpop.f32.mrf.mxu0
        %v3116 = vadd.f32 %v2775, %v3115
        %v3117 = vpop.f32.mrf.mxu0
        %v3118 = vadd.f32 %v2779, %v3117
        %v3119 = vpop.f32.mrf.mxu0
        %v3120 = vpop.f32.mrf.mxu0
        %3121 = vdwg.mxu0
        %3122 = vmatprep.subr.bf16.mxu0 0
        %3123 = vmatpush1.bf16.msra.mxu0 0
        %3124 = vmatprep.subr.bf16.mxu0 0
        %3125 = vmatpush1.bf16.msra.mxu0 0
        %3126 = vmatprep.subr.bf16.mxu0 0
        %3127 = vmatpush1.bf16.msra.mxu0 0
        %3128 = vmatprep.subr.bf16.mxu0 0
        %3129 = vmatpush1.bf16.msra.mxu0 0
        %3130 = vmatprep.subr.bf16.mxu0 0
        %3131 = vmatpush1.bf16.msra.mxu0 0
        %3132 = vmatprep.subr.bf16.mxu0 0
        %3133 = vmatpush1.bf16.msra.mxu0 0
        %3134 = vmatprep.subr.bf16.mxu0 %v2955
        %3135 = vmatpush1.bf16.msra.mxu0 %v2954
        %3136 = vmatprep.subr.bf16.mxu0 %v2939
        %3137 = vmatpush1.bf16.msra.mxu0 %v2938
        %3138 = vmatprep.subr.bf16.mxu0 0
        %3139 = vmatpush2.bf16.msra.mxu0 0
        %3140 = vmatprep.subr.bf16.mxu0 0
        %3141 = vmatpush2.bf16.msra.mxu0 0
        %3142 = vmatprep.subr.bf16.mxu0 0
        %3143 = vmatpush2.bf16.msra.mxu0 0
        %3144 = vmatprep.subr.bf16.mxu0 0
        %3145 = vmatpush2.bf16.msra.mxu0 0
        %3146 = vmatprep.subr.bf16.mxu0 0
        %3147 = vmatpush2.bf16.msra.mxu0 0
        %3148 = vmatprep.subr.bf16.mxu0 0
        %3149 = vmatpush2.bf16.msra.mxu0 0
        %3150 = vmatprep.subr.bf16.mxu0 0
        %3151 = vmatpush2.bf16.msra.mxu0 0
        %3152 = vmatprep.subr.bf16.mxu0 0
        %3153 = vmatpush2.bf16.msra.mxu0 0
        %3154 = vmatprep.mubr.bf16.mxu0 0
        %3155 = vmatmul.mubr.bf16.gmra.mxu0 %v2997
        %v3156 = vpop.f32.mrf.mxu0
        %v3157 = vadd.f32 %v2783, %v3156
        %v3158 = vpop.f32.mrf.mxu0
        %v3159 = vadd.f32 %v2787, %v3158
        %v3160 = vpop.f32.mrf.mxu0
        %v3161 = vpop.f32.mrf.mxu0
        %3162 = vdwg.mxu0
        %3163 = vmatprep.subr.bf16.mxu0 0
        %3164 = vmatpush1.bf16.msra.mxu0 0
        %3165 = vmatprep.subr.bf16.mxu0 0
        %3166 = vmatpush1.bf16.msra.mxu0 0
        %3167 = vmatprep.subr.bf16.mxu0 0
        %3168 = vmatpush1.bf16.msra.mxu0 0
        %3169 = vmatprep.subr.bf16.mxu0 0
        %3170 = vmatpush1.bf16.msra.mxu0 0
        %3171 = vmatprep.subr.bf16.mxu0 0
        %3172 = vmatpush1.bf16.msra.mxu0 0
        %3173 = vmatprep.subr.bf16.mxu0 0
        %3174 = vmatpush1.bf16.msra.mxu0 0
        %3175 = vmatprep.subr.bf16.mxu0 %v2957
        %3176 = vmatpush1.bf16.msra.mxu0 %v2956
        %3177 = vmatprep.subr.bf16.mxu0 %v2941
        %3178 = vmatpush1.bf16.msra.mxu0 %v2940
        %3179 = vmatprep.subr.bf16.mxu0 0
        %3180 = vmatpush2.bf16.msra.mxu0 0
        %3181 = vmatprep.subr.bf16.mxu0 0
        %3182 = vmatpush2.bf16.msra.mxu0 0
        %3183 = vmatprep.subr.bf16.mxu0 0
        %3184 = vmatpush2.bf16.msra.mxu0 0
        %3185 = vmatprep.subr.bf16.mxu0 0
        %3186 = vmatpush2.bf16.msra.mxu0 0
        %3187 = vmatprep.subr.bf16.mxu0 0
        %3188 = vmatpush2.bf16.msra.mxu0 0
        %3189 = vmatprep.subr.bf16.mxu0 0
        %3190 = vmatpush2.bf16.msra.mxu0 0
        %3191 = vmatprep.subr.bf16.mxu0 0
        %3192 = vmatpush2.bf16.msra.mxu0 0
        %3193 = vmatprep.subr.bf16.mxu0 0
        %3194 = vmatpush2.bf16.msra.mxu0 0
        %3195 = vmatprep.mubr.bf16.mxu0 0
        %3196 = vmatmul.mubr.bf16.gmra.mxu0 %v2997
        %v3197 = vpop.f32.mrf.mxu0
        %v3198 = vadd.f32 %v2791, %v3197
        %v3199 = vpop.f32.mrf.mxu0
        %v3200 = vadd.f32 %v2795, %v3199
        %v3201 = vpop.f32.mrf.mxu0
        %v3202 = vpop.f32.mrf.mxu0
        %3203 = vdwg.mxu0
        %3204 = vmatprep.subr.bf16.mxu0 0
        %3205 = vmatpush1.bf16.msra.mxu0 0
        %3206 = vmatprep.subr.bf16.mxu0 0
        %3207 = vmatpush1.bf16.msra.mxu0 0
        %3208 = vmatprep.subr.bf16.mxu0 0
        %3209 = vmatpush1.bf16.msra.mxu0 0
        %3210 = vmatprep.subr.bf16.mxu0 0
        %3211 = vmatpush1.bf16.msra.mxu0 0
        %3212 = vmatprep.subr.bf16.mxu0 0
        %3213 = vmatpush1.bf16.msra.mxu0 0
        %3214 = vmatprep.subr.bf16.mxu0 0
        %3215 = vmatpush1.bf16.msra.mxu0 0
        %3216 = vmatprep.subr.bf16.mxu0 %v2959
        %3217 = vmatpush1.bf16.msra.mxu0 %v2958
        %3218 = vmatprep.subr.bf16.mxu0 %v2943
        %3219 = vmatpush1.bf16.msra.mxu0 %v2942
        %3220 = vmatprep.subr.bf16.mxu0 0
        %3221 = vmatpush2.bf16.msra.mxu0 0
        %3222 = vmatprep.subr.bf16.mxu0 0
        %3223 = vmatpush2.bf16.msra.mxu0 0
        %3224 = vmatprep.subr.bf16.mxu0 0
        %3225 = vmatpush2.bf16.msra.mxu0 0
        %3226 = vmatprep.subr.bf16.mxu0 0
        %3227 = vmatpush2.bf16.msra.mxu0 0
        %3228 = vmatprep.subr.bf16.mxu0 0
        %3229 = vmatpush2.bf16.msra.mxu0 0
        %3230 = vmatprep.subr.bf16.mxu0 0
        %3231 = vmatpush2.bf16.msra.mxu0 0
        %3232 = vmatprep.subr.bf16.mxu0 0
        %3233 = vmatpush2.bf16.msra.mxu0 0
        %3234 = vmatprep.subr.bf16.mxu0 0
        %3235 = vmatpush2.bf16.msra.mxu0 0
        %3236 = vmatprep.mubr.bf16.mxu0 0
        %3237 = vmatmul.mubr.bf16.gmra.mxu0 %v2997
        %v3238 = vpop.f32.mrf.mxu0
        %v3239 = vadd.f32 %v2799, %v3238
        %v3240 = vpop.f32.mrf.mxu0
        %v3241 = vadd.f32 %v2803, %v3240
        %v3242 = vpop.f32.mrf.mxu0
        %v3243 = vpop.f32.mrf.mxu0
        %3244 = vdwg.mxu0
        %3245 = vmatprep.subr.bf16.mxu0 0
        %3246 = vmatpush1.bf16.msra.mxu0 0
        %3247 = vmatprep.subr.bf16.mxu0 0
        %3248 = vmatpush1.bf16.msra.mxu0 0
        %3249 = vmatprep.subr.bf16.mxu0 0
        %3250 = vmatpush1.bf16.msra.mxu0 0
        %3251 = vmatprep.subr.bf16.mxu0 0
        %3252 = vmatpush1.bf16.msra.mxu0 0
        %3253 = vmatprep.subr.bf16.mxu0 0
        %3254 = vmatpush1.bf16.msra.mxu0 0
        %3255 = vmatprep.subr.bf16.mxu0 0
        %3256 = vmatpush1.bf16.msra.mxu0 0
        %3257 = vmatprep.subr.bf16.mxu0 %v2961
        %3258 = vmatpush1.bf16.msra.mxu0 %v2960
        %3259 = vmatprep.subr.bf16.mxu0 %v2945
        %3260 = vmatpush1.bf16.msra.mxu0 %v2944
        %3261 = vmatprep.subr.bf16.mxu0 0
        %3262 = vmatpush2.bf16.msra.mxu0 0
        %3263 = vmatprep.subr.bf16.mxu0 0
        %3264 = vmatpush2.bf16.msra.mxu0 0
        %3265 = vmatprep.subr.bf16.mxu0 0
        %3266 = vmatpush2.bf16.msra.mxu0 0
        %3267 = vmatprep.subr.bf16.mxu0 0
        %3268 = vmatpush2.bf16.msra.mxu0 0
        %3269 = vmatprep.subr.bf16.mxu0 0
        %3270 = vmatpush2.bf16.msra.mxu0 0
        %3271 = vmatprep.subr.bf16.mxu0 0
        %3272 = vmatpush2.bf16.msra.mxu0 0
        %3273 = vmatprep.subr.bf16.mxu0 0
        %3274 = vmatpush2.bf16.msra.mxu0 0
        %3275 = vmatprep.subr.bf16.mxu0 0
        %3276 = vmatpush2.bf16.msra.mxu0 0
        %3277 = vmatprep.mubr.bf16.mxu0 0
        %3278 = vmatmul.mubr.bf16.gmra.mxu0 %v2997
        %v3279 = vpop.f32.mrf.mxu0
        %v3280 = vadd.f32 %v2807, %v3279
        %v3281 = vpop.f32.mrf.mxu0
        %v3282 = vadd.f32 %v2811, %v3281
        %v3283 = vpop.f32.mrf.mxu0
        %v3284 = vpop.f32.mrf.mxu0
        %3285 = vdwg.mxu0
        %3286 = vmatprep.subr.bf16.mxu0 0
        %3287 = vmatpush1.bf16.msra.mxu0 0
        %3288 = vmatprep.subr.bf16.mxu0 0
        %3289 = vmatpush1.bf16.msra.mxu0 0
        %3290 = vmatprep.subr.bf16.mxu0 0
        %3291 = vmatpush1.bf16.msra.mxu0 0
        %3292 = vmatprep.subr.bf16.mxu0 0
        %3293 = vmatpush1.bf16.msra.mxu0 0
        %3294 = vmatprep.subr.bf16.mxu0 0
        %3295 = vmatpush1.bf16.msra.mxu0 0
        %3296 = vmatprep.subr.bf16.mxu0 0
        %3297 = vmatpush1.bf16.msra.mxu0 0
        %3298 = vmatprep.subr.bf16.mxu0 %v2963
        %3299 = vmatpush1.bf16.msra.mxu0 %v2962
        %3300 = vmatprep.subr.bf16.mxu0 %v2947
        %3301 = vmatpush1.bf16.msra.mxu0 %v2946
        %3302 = vmatprep.subr.bf16.mxu0 0
        %3303 = vmatpush2.bf16.msra.mxu0 0
        %3304 = vmatprep.subr.bf16.mxu0 0
        %3305 = vmatpush2.bf16.msra.mxu0 0
        %3306 = vmatprep.subr.bf16.mxu0 0
        %3307 = vmatpush2.bf16.msra.mxu0 0
        %3308 = vmatprep.subr.bf16.mxu0 0
        %3309 = vmatpush2.bf16.msra.mxu0 0
        %3310 = vmatprep.subr.bf16.mxu0 0
        %3311 = vmatpush2.bf16.msra.mxu0 0
        %3312 = vmatprep.subr.bf16.mxu0 0
        %3313 = vmatpush2.bf16.msra.mxu0 0
        %3314 = vmatprep.subr.bf16.mxu0 0
        %3315 = vmatpush2.bf16.msra.mxu0 0
        %3316 = vmatprep.subr.bf16.mxu0 0
        %3317 = vmatpush2.bf16.msra.mxu0 0
        %3318 = vmatprep.mubr.bf16.mxu0 0
        %3319 = vmatmul.mubr.bf16.gmra.mxu0 %v2997
        %v3320 = vpop.f32.mrf.mxu0
        %v3321 = vadd.f32 %v2815, %v3320
        %v3322 = vpop.f32.mrf.mxu0
        %v3323 = vadd.f32 %v2819, %v3322
        %v3324 = vpop.f32.mrf.mxu0
        %v3325 = vpop.f32.mrf.mxu0
        %3326 = vdwg.mxu0
        %v3327 = vmax.f32 %v3034, 0.0
        %v3328 = vmax.f32 %v3036, 0.0
        %v3329 = vmax.f32 %v3075, 0.0
        %v3330 = vmax.f32 %v3077, 0.0
        %v3331 = vmax.f32 %v3116, 0.0
        %v3332 = vmax.f32 %v3118, 0.0
        %v3333 = vmax.f32 %v3157, 0.0
        %v3334 = vmax.f32 %v3159, 0.0
        %v3335 = vmax.f32 %v3198, 0.0
        %v3336 = vmax.f32 %v3200, 0.0
        %v3337 = vmax.f32 %v3239, 0.0
        %v3338 = vmax.f32 %v3241, 0.0
        %v3339 = vmax.f32 %v3280, 0.0
        %v3340 = vmax.f32 %v3282, 0.0
        %v3341 = vmax.f32 %v3321, 0.0
        %v3342 = vmax.f32 %v3323, 0.0
        %v3343 = vpack.c.bf16 %v3327, %v3327
        %v3344 = vpack.c.bf16 %v3328, %v3328
        %v3345 = vpack.c.bf16 %v3329, %v3329
        %v3346 = vpack.c.bf16 %v3330, %v3330
        %v3347 = vpack.c.bf16 %v3331, %v3331
        %v3348 = vpack.c.bf16 %v3332, %v3332
        %v3349 = vpack.c.bf16 %v3333, %v3333
        %v3350 = vpack.c.bf16 %v3334, %v3334
        %v3351 = vpack.c.bf16 %v3335, %v3335
        %v3352 = vpack.c.bf16 %v3336, %v3336
        %v3353 = vpack.c.bf16 %v3337, %v3337
        %v3354 = vpack.c.bf16 %v3338, %v3338
        %v3355 = vpack.c.bf16 %v3339, %v3339
        %v3356 = vpack.c.bf16 %v3340, %v3340
        %v3357 = vpack.c.bf16 %v3341, %v3341
        %v3358 = vpack.c.bf16 %v3342, %v3342
        %v3359 = vld [vmem:[%s22] sm:$0xf]
        %v3360 = vld [vmem:[%s22 + $0x4] sm:$0xf]
        %v3361 = vld [vmem:[%s22 + $0x8] sm:$0xf]
        %v3362 = vld [vmem:[%s22 + $0xc] sm:$0xf]
        %v3363 = vld [vmem:[%s22 + $0x10] sm:$0xf]
        %v3364 = vld [vmem:[%s22 + $0x14] sm:$0xf]
        %v3365 = vld [vmem:[%s22 + $0x18] sm:$0xf]
        %v3366 = vld [vmem:[%s22 + $0x1c] sm:$0xf]
        %v3367 = vld [vmem:[%s22 + $0x20] sm:$0xf]
        %v3368 = vld [vmem:[%s22 + $0x24] sm:$0xf]
        %v3369 = vld [vmem:[%s22 + $0x28] sm:$0xf]
        %v3370 = vld [vmem:[%s22 + $0x2c] sm:$0xf]
        %v3371 = vld [vmem:[%s22 + $0x30] sm:$0xf]
        %v3372 = vld [vmem:[%s22 + $0x34] sm:$0xf]
        %v3373 = vld [vmem:[%s22 + $0x38] sm:$0xf]
        %v3374 = vld [vmem:[%s22 + $0x3c] sm:$0xf]
        %v3375 = vld [vmem:[%s22 + $0x40] sm:$0xf]
        %v3376 = vld [vmem:[%s22 + $0x44] sm:$0xf]
        %v3377 = vld [vmem:[%s22 + $0x48] sm:$0xf]
        %v3378 = vld [vmem:[%s22 + $0x4c] sm:$0xf]
        %v3379 = vld [vmem:[%s22 + $0x50] sm:$0xf]
        %v3380 = vld [vmem:[%s22 + $0x54] sm:$0xf]
        %v3381 = vld [vmem:[%s22 + $0x58] sm:$0xf]
        %v3382 = vld [vmem:[%s22 + $0x5c] sm:$0xf]
        %v3383 = vld [vmem:[%s22 + $0x60] sm:$0xf]
        %v3384 = vld [vmem:[%s22 + $0x64] sm:$0xf]
        %v3385 = vld [vmem:[%s22 + $0x68] sm:$0xf]
        %v3386 = vld [vmem:[%s22 + $0x6c] sm:$0xf]
        %v3387 = vld [vmem:[%s22 + $0x70] sm:$0xf]
        %v3388 = vld [vmem:[%s22 + $0x74] sm:$0xf]
        %v3389 = vld [vmem:[%s22 + $0x78] sm:$0xf]
        %v3390 = vld [vmem:[%s22 + $0x7c] sm:$0xf]
        %v3391 = vld [vmem:[%s22 + $0x80] sm:$0xf]
        %v3392 = vld [vmem:[%s22 + $0x84] sm:$0xf]
        %v3393 = vld [vmem:[%s22 + $0x88] sm:$0xf]
        %v3394 = vld [vmem:[%s22 + $0x8c] sm:$0xf]
        %v3395 = vld [vmem:[%s22 + $0x90] sm:$0xf]
        %v3396 = vld [vmem:[%s22 + $0x94] sm:$0xf]
        %v3397 = vld [vmem:[%s22 + $0x98] sm:$0xf]
        %v3398 = vld [vmem:[%s22 + $0x9c] sm:$0xf]
        %v3399 = vld [vmem:[%s22 + $0xa0] sm:$0xf]
        %v3400 = vld [vmem:[%s22 + $0xa4] sm:$0xf]
        %v3401 = vld [vmem:[%s22 + $0xa8] sm:$0xf]
        %v3402 = vld [vmem:[%s22 + $0xac] sm:$0xf]
        %v3403 = vld [vmem:[%s22 + $0xb0] sm:$0xf]
        %v3404 = vld [vmem:[%s22 + $0xb4] sm:$0xf]
        %v3405 = vld [vmem:[%s22 + $0xb8] sm:$0xf]
        %v3406 = vld [vmem:[%s22 + $0xbc] sm:$0xf]
        %v3407 = vld [vmem:[%s22 + $0xc0] sm:$0xf]
        %v3408 = vld [vmem:[%s22 + $0xc4] sm:$0xf]
        %v3409 = vld [vmem:[%s22 + $0xc8] sm:$0xf]
        %v3410 = vld [vmem:[%s22 + $0xcc] sm:$0xf]
        %v3411 = vld [vmem:[%s22 + $0xd0] sm:$0xf]
        %v3412 = vld [vmem:[%s22 + $0xd4] sm:$0xf]
        %v3413 = vld [vmem:[%s22 + $0xd8] sm:$0xf]
        %v3414 = vld [vmem:[%s22 + $0xdc] sm:$0xf]
        %v3415 = vld [vmem:[%s22 + $0xe0] sm:$0xf]
        %v3416 = vld [vmem:[%s22 + $0xe4] sm:$0xf]
        %v3417 = vld [vmem:[%s22 + $0xe8] sm:$0xf]
        %v3418 = vld [vmem:[%s22 + $0xec] sm:$0xf]
        %v3419 = vld [vmem:[%s22 + $0xf0] sm:$0xf]
        %v3420 = vld [vmem:[%s22 + $0xf4] sm:$0xf]
        %v3421 = vld [vmem:[%s22 + $0xf8] sm:$0xf]
        %v3422 = vld [vmem:[%s22 + $0xfc] sm:$0xf]
        %v3423 = vld [vmem:[%s22 + $0x100] sm:$0xf]
        %v3424 = vld [vmem:[%s22 + $0x104] sm:$0xf]
        %v3425 = vld [vmem:[%s22 + $0x108] sm:$0xf]
        %v3426 = vld [vmem:[%s22 + $0x10c] sm:$0xf]
        %v3427 = vld [vmem:[%s22 + $0x110] sm:$0xf]
        %v3428 = vld [vmem:[%s22 + $0x114] sm:$0xf]
        %v3429 = vld [vmem:[%s22 + $0x118] sm:$0xf]
        %v3430 = vld [vmem:[%s22 + $0x11c] sm:$0xf]
        %v3431 = vld [vmem:[%s22 + $0x120] sm:$0xf]
        %v3432 = vld [vmem:[%s22 + $0x124] sm:$0xf]
        %v3433 = vld [vmem:[%s22 + $0x128] sm:$0xf]
        %v3434 = vld [vmem:[%s22 + $0x12c] sm:$0xf]
        %v3435 = vld [vmem:[%s22 + $0x130] sm:$0xf]
        %v3436 = vld [vmem:[%s22 + $0x134] sm:$0xf]
        %v3437 = vld [vmem:[%s22 + $0x138] sm:$0xf]
        %v3438 = vld [vmem:[%s22 + $0x13c] sm:$0xf]
        %v3439 = vld [vmem:[%s22 + $0x140] sm:$0xf]
        %v3440 = vld [vmem:[%s22 + $0x144] sm:$0xf]
        %v3441 = vld [vmem:[%s22 + $0x148] sm:$0xf]
        %v3442 = vld [vmem:[%s22 + $0x14c] sm:$0xf]
        %v3443 = vld [vmem:[%s22 + $0x150] sm:$0xf]
        %v3444 = vld [vmem:[%s22 + $0x154] sm:$0xf]
        %v3445 = vld [vmem:[%s22 + $0x158] sm:$0xf]
        %v3446 = vld [vmem:[%s22 + $0x15c] sm:$0xf]
        %v3447 = vld [vmem:[%s22 + $0x160] sm:$0xf]
        %v3448 = vld [vmem:[%s22 + $0x164] sm:$0xf]
        %v3449 = vld [vmem:[%s22 + $0x168] sm:$0xf]
        %v3450 = vld [vmem:[%s22 + $0x16c] sm:$0xf]
        %v3451 = vld [vmem:[%s22 + $0x170] sm:$0xf]
        %v3452 = vld [vmem:[%s22 + $0x174] sm:$0xf]
        %v3453 = vld [vmem:[%s22 + $0x178] sm:$0xf]
        %v3454 = vld [vmem:[%s22 + $0x17c] sm:$0xf]
        %v3455 = vld [vmem:[%s22 + $0x180] sm:$0xf]
        %v3456 = vld [vmem:[%s22 + $0x184] sm:$0xf]
        %v3457 = vld [vmem:[%s22 + $0x188] sm:$0xf]
        %v3458 = vld [vmem:[%s22 + $0x18c] sm:$0xf]
        %v3459 = vld [vmem:[%s22 + $0x190] sm:$0xf]
        %v3460 = vld [vmem:[%s22 + $0x194] sm:$0xf]
        %v3461 = vld [vmem:[%s22 + $0x198] sm:$0xf]
        %v3462 = vld [vmem:[%s22 + $0x19c] sm:$0xf]
        %v3463 = vld [vmem:[%s22 + $0x1a0] sm:$0xf]
        %v3464 = vld [vmem:[%s22 + $0x1a4] sm:$0xf]
        %v3465 = vld [vmem:[%s22 + $0x1a8] sm:$0xf]
        %v3466 = vld [vmem:[%s22 + $0x1ac] sm:$0xf]
        %v3467 = vld [vmem:[%s22 + $0x1b0] sm:$0xf]
        %v3468 = vld [vmem:[%s22 + $0x1b4] sm:$0xf]
        %v3469 = vld [vmem:[%s22 + $0x1b8] sm:$0xf]
        %v3470 = vld [vmem:[%s22 + $0x1bc] sm:$0xf]
        %v3471 = vld [vmem:[%s22 + $0x1c0] sm:$0xf]
        %v3472 = vld [vmem:[%s22 + $0x1c4] sm:$0xf]
        %v3473 = vld [vmem:[%s22 + $0x1c8] sm:$0xf]
        %v3474 = vld [vmem:[%s22 + $0x1cc] sm:$0xf]
        %v3475 = vld [vmem:[%s22 + $0x1d0] sm:$0xf]
        %v3476 = vld [vmem:[%s22 + $0x1d4] sm:$0xf]
        %v3477 = vld [vmem:[%s22 + $0x1d8] sm:$0xf]
        %v3478 = vld [vmem:[%s22 + $0x1dc] sm:$0xf]
        %v3479 = vld [vmem:[%s22 + $0x1e0] sm:$0xf]
        %v3480 = vld [vmem:[%s22 + $0x1e4] sm:$0xf]
        %v3481 = vld [vmem:[%s22 + $0x1e8] sm:$0xf]
        %v3482 = vld [vmem:[%s22 + $0x1ec] sm:$0xf]
        %v3483 = vld [vmem:[%s22 + $0x1f0] sm:$0xf]
        %v3484 = vld [vmem:[%s22 + $0x1f4] sm:$0xf]
        %v3485 = vld [vmem:[%s22 + $0x1f8] sm:$0xf]
        %v3486 = vld [vmem:[%s22 + $0x1fc] sm:$0xf]
        %v3487 = vld [vmem:[%s22 + $0x200] sm:$0xf]
        %v3488 = vld [vmem:[%s22 + $0x204] sm:$0xf]
        %v3489 = vld [vmem:[%s22 + $0x208] sm:$0xf]
        %v3490 = vld [vmem:[%s22 + $0x20c] sm:$0xf]
        %v3491 = vld [vmem:[%s22 + $0x210] sm:$0xf]
        %v3492 = vld [vmem:[%s22 + $0x214] sm:$0xf]
        %v3493 = vld [vmem:[%s22 + $0x218] sm:$0xf]
        %v3494 = vld [vmem:[%s22 + $0x21c] sm:$0xf]
        %v3495 = vld [vmem:[%s22 + $0x220] sm:$0xf]
        %v3496 = vld [vmem:[%s22 + $0x224] sm:$0xf]
        %v3497 = vld [vmem:[%s22 + $0x228] sm:$0xf]
        %v3498 = vld [vmem:[%s22 + $0x22c] sm:$0xf]
        %v3499 = vld [vmem:[%s22 + $0x230] sm:$0xf]
        %v3500 = vld [vmem:[%s22 + $0x234] sm:$0xf]
        %v3501 = vld [vmem:[%s22 + $0x238] sm:$0xf]
        %v3502 = vld [vmem:[%s22 + $0x23c] sm:$0xf]
        %v3503 = vld [vmem:[%s22 + $0x240] sm:$0xf]
        %v3504 = vld [vmem:[%s22 + $0x244] sm:$0xf]
        %v3505 = vld [vmem:[%s22 + $0x248] sm:$0xf]
        %v3506 = vld [vmem:[%s22 + $0x24c] sm:$0xf]
        %v3507 = vld [vmem:[%s22 + $0x250] sm:$0xf]
        %v3508 = vld [vmem:[%s22 + $0x254] sm:$0xf]
        %v3509 = vld [vmem:[%s22 + $0x258] sm:$0xf]
        %v3510 = vld [vmem:[%s22 + $0x25c] sm:$0xf]
        %v3511 = vld [vmem:[%s22 + $0x260] sm:$0xf]
        %v3512 = vld [vmem:[%s22 + $0x264] sm:$0xf]
        %v3513 = vld [vmem:[%s22 + $0x268] sm:$0xf]
        %v3514 = vld [vmem:[%s22 + $0x26c] sm:$0xf]
        %v3515 = vld [vmem:[%s22 + $0x270] sm:$0xf]
        %v3516 = vld [vmem:[%s22 + $0x274] sm:$0xf]
        %v3517 = vld [vmem:[%s22 + $0x278] sm:$0xf]
        %v3518 = vld [vmem:[%s22 + $0x27c] sm:$0xf]
        %v3519 = vld [vmem:[%s22 + $0x280] sm:$0xf]
        %v3520 = vld [vmem:[%s22 + $0x284] sm:$0xf]
        %v3521 = vld [vmem:[%s22 + $0x288] sm:$0xf]
        %v3522 = vld [vmem:[%s22 + $0x28c] sm:$0xf]
        %v3523 = vld [vmem:[%s22 + $0x290] sm:$0xf]
        %v3524 = vld [vmem:[%s22 + $0x294] sm:$0xf]
        %v3525 = vld [vmem:[%s22 + $0x298] sm:$0xf]
        %v3526 = vld [vmem:[%s22 + $0x29c] sm:$0xf]
        %v3527 = vld [vmem:[%s22 + $0x2a0] sm:$0xf]
        %v3528 = vld [vmem:[%s22 + $0x2a4] sm:$0xf]
        %v3529 = vld [vmem:[%s22 + $0x2a8] sm:$0xf]
        %v3530 = vld [vmem:[%s22 + $0x2ac] sm:$0xf]
        %v3531 = vld [vmem:[%s22 + $0x2b0] sm:$0xf]
        %v3532 = vld [vmem:[%s22 + $0x2b4] sm:$0xf]
        %v3533 = vld [vmem:[%s22 + $0x2b8] sm:$0xf]
        %v3534 = vld [vmem:[%s22 + $0x2bc] sm:$0xf]
        %v3535 = vld [vmem:[%s22 + $0x2c0] sm:$0xf]
        %v3536 = vld [vmem:[%s22 + $0x2c4] sm:$0xf]
        %v3537 = vld [vmem:[%s22 + $0x2c8] sm:$0xf]
        %v3538 = vld [vmem:[%s22 + $0x2cc] sm:$0xf]
        %v3539 = vld [vmem:[%s22 + $0x2d0] sm:$0xf]
        %v3540 = vld [vmem:[%s22 + $0x2d4] sm:$0xf]
        %v3541 = vld [vmem:[%s22 + $0x2d8] sm:$0xf]
        %v3542 = vld [vmem:[%s22 + $0x2dc] sm:$0xf]
        %v3543 = vld [vmem:[%s22 + $0x2e0] sm:$0xf]
        %v3544 = vld [vmem:[%s22 + $0x2e4] sm:$0xf]
        %v3545 = vld [vmem:[%s22 + $0x2e8] sm:$0xf]
        %v3546 = vld [vmem:[%s22 + $0x2ec] sm:$0xf]
        %v3547 = vld [vmem:[%s22 + $0x2f0] sm:$0xf]
        %v3548 = vld [vmem:[%s22 + $0x2f4] sm:$0xf]
        %v3549 = vld [vmem:[%s22 + $0x2f8] sm:$0xf]
        %v3550 = vld [vmem:[%s22 + $0x2fc] sm:$0xf]
        %v3551 = vld [vmem:[%s22 + $0x300] sm:$0xf]
        %v3552 = vld [vmem:[%s22 + $0x304] sm:$0xf]
        %v3553 = vld [vmem:[%s22 + $0x308] sm:$0xf]
        %v3554 = vld [vmem:[%s22 + $0x30c] sm:$0xf]
        %v3555 = vld [vmem:[%s22 + $0x310] sm:$0xf]
        %v3556 = vld [vmem:[%s22 + $0x314] sm:$0xf]
        %v3557 = vld [vmem:[%s22 + $0x318] sm:$0xf]
        %v3558 = vld [vmem:[%s22 + $0x31c] sm:$0xf]
        %v3559 = vld [vmem:[%s22 + $0x320] sm:$0xf]
        %v3560 = vld [vmem:[%s22 + $0x324] sm:$0xf]
        %v3561 = vld [vmem:[%s22 + $0x328] sm:$0xf]
        %v3562 = vld [vmem:[%s22 + $0x32c] sm:$0xf]
        %v3563 = vld [vmem:[%s22 + $0x330] sm:$0xf]
        %v3564 = vld [vmem:[%s22 + $0x334] sm:$0xf]
        %v3565 = vld [vmem:[%s22 + $0x338] sm:$0xf]
        %v3566 = vld [vmem:[%s22 + $0x33c] sm:$0xf]
        %v3567 = vld [vmem:[%s22 + $0x340] sm:$0xf]
        %v3568 = vld [vmem:[%s22 + $0x344] sm:$0xf]
        %v3569 = vld [vmem:[%s22 + $0x348] sm:$0xf]
        %v3570 = vld [vmem:[%s22 + $0x34c] sm:$0xf]
        %v3571 = vld [vmem:[%s22 + $0x350] sm:$0xf]
        %v3572 = vld [vmem:[%s22 + $0x354] sm:$0xf]
        %v3573 = vld [vmem:[%s22 + $0x358] sm:$0xf]
        %v3574 = vld [vmem:[%s22 + $0x35c] sm:$0xf]
        %v3575 = vld [vmem:[%s22 + $0x360] sm:$0xf]
        %v3576 = vld [vmem:[%s22 + $0x364] sm:$0xf]
        %v3577 = vld [vmem:[%s22 + $0x368] sm:$0xf]
        %v3578 = vld [vmem:[%s22 + $0x36c] sm:$0xf]
        %v3579 = vld [vmem:[%s22 + $0x370] sm:$0xf]
        %v3580 = vld [vmem:[%s22 + $0x374] sm:$0xf]
        %v3581 = vld [vmem:[%s22 + $0x378] sm:$0xf]
        %v3582 = vld [vmem:[%s22 + $0x37c] sm:$0xf]
        %v3583 = vld [vmem:[%s22 + $0x380] sm:$0xf]
        %v3584 = vld [vmem:[%s22 + $0x384] sm:$0xf]
        %v3585 = vld [vmem:[%s22 + $0x388] sm:$0xf]
        %v3586 = vld [vmem:[%s22 + $0x38c] sm:$0xf]
        %v3587 = vld [vmem:[%s22 + $0x390] sm:$0xf]
        %v3588 = vld [vmem:[%s22 + $0x394] sm:$0xf]
        %v3589 = vld [vmem:[%s22 + $0x398] sm:$0xf]
        %v3590 = vld [vmem:[%s22 + $0x39c] sm:$0xf]
        %v3591 = vld [vmem:[%s22 + $0x3a0] sm:$0xf]
        %v3592 = vld [vmem:[%s22 + $0x3a4] sm:$0xf]
        %v3593 = vld [vmem:[%s22 + $0x3a8] sm:$0xf]
        %v3594 = vld [vmem:[%s22 + $0x3ac] sm:$0xf]
        %v3595 = vld [vmem:[%s22 + $0x3b0] sm:$0xf]
        %v3596 = vld [vmem:[%s22 + $0x3b4] sm:$0xf]
        %v3597 = vld [vmem:[%s22 + $0x3b8] sm:$0xf]
        %v3598 = vld [vmem:[%s22 + $0x3bc] sm:$0xf]
        %v3599 = vld [vmem:[%s22 + $0x3c0] sm:$0xf]
        %v3600 = vld [vmem:[%s22 + $0x3c4] sm:$0xf]
        %v3601 = vld [vmem:[%s22 + $0x3c8] sm:$0xf]
        %v3602 = vld [vmem:[%s22 + $0x3cc] sm:$0xf]
        %v3603 = vld [vmem:[%s22 + $0x3d0] sm:$0xf]
        %v3604 = vld [vmem:[%s22 + $0x3d4] sm:$0xf]
        %v3605 = vld [vmem:[%s22 + $0x3d8] sm:$0xf]
        %v3606 = vld [vmem:[%s22 + $0x3dc] sm:$0xf]
        %v3607 = vld [vmem:[%s22 + $0x3e0] sm:$0xf]
        %v3608 = vld [vmem:[%s22 + $0x3e4] sm:$0xf]
        %v3609 = vld [vmem:[%s22 + $0x3e8] sm:$0xf]
        %v3610 = vld [vmem:[%s22 + $0x3ec] sm:$0xf]
        %v3611 = vld [vmem:[%s22 + $0x3f0] sm:$0xf]
        %v3612 = vld [vmem:[%s22 + $0x3f4] sm:$0xf]
        %v3613 = vld [vmem:[%s22 + $0x3f8] sm:$0xf]
        %v3614 = vld [vmem:[%s22 + $0x3fc] sm:$0xf]
        %v3871 = vunpack.c.l.b16 %v3359
        %v3872 = vunpack.c.l.b16 %v3360
        %v3873 = vunpack.c.l.b16 %v3361
        %v3874 = vunpack.c.l.b16 %v3362
        %v3875 = vunpack.c.l.b16 %v3363
        %v3876 = vunpack.c.l.b16 %v3364
        %v3877 = vunpack.c.l.b16 %v3365
        %v3878 = vunpack.c.l.b16 %v3366
        %v3879 = vunpack.c.l.b16 %v3367
        %v3880 = vunpack.c.l.b16 %v3368
        %v3881 = vunpack.c.l.b16 %v3369
        %v3882 = vunpack.c.l.b16 %v3370
        %v3883 = vunpack.c.l.b16 %v3371
        %v3884 = vunpack.c.l.b16 %v3372
        %v3885 = vunpack.c.l.b16 %v3373
        %v3886 = vunpack.c.l.b16 %v3374
        %v3887 = vunpack.c.l.b16 %v3375
        %v3888 = vunpack.c.l.b16 %v3376
        %v3889 = vunpack.c.l.b16 %v3377
        %v3890 = vunpack.c.l.b16 %v3378
        %v3891 = vunpack.c.l.b16 %v3379
        %v3892 = vunpack.c.l.b16 %v3380
        %v3893 = vunpack.c.l.b16 %v3381
        %v3894 = vunpack.c.l.b16 %v3382
        %v3895 = vunpack.c.l.b16 %v3383
        %v3896 = vunpack.c.l.b16 %v3384
        %v3897 = vunpack.c.l.b16 %v3385
        %v3898 = vunpack.c.l.b16 %v3386
        %v3899 = vunpack.c.l.b16 %v3387
        %v3900 = vunpack.c.l.b16 %v3388
        %v3901 = vunpack.c.l.b16 %v3389
        %v3902 = vunpack.c.l.b16 %v3390
        %v3903 = vunpack.c.l.b16 %v3391
        %v3904 = vunpack.c.l.b16 %v3392
        %v3905 = vunpack.c.l.b16 %v3393
        %v3906 = vunpack.c.l.b16 %v3394
        %v3907 = vunpack.c.l.b16 %v3395
        %v3908 = vunpack.c.l.b16 %v3396
        %v3909 = vunpack.c.l.b16 %v3397
        %v3910 = vunpack.c.l.b16 %v3398
        %v3911 = vunpack.c.l.b16 %v3399
        %v3912 = vunpack.c.l.b16 %v3400
        %v3913 = vunpack.c.l.b16 %v3401
        %v3914 = vunpack.c.l.b16 %v3402
        %v3915 = vunpack.c.l.b16 %v3403
        %v3916 = vunpack.c.l.b16 %v3404
        %v3917 = vunpack.c.l.b16 %v3405
        %v3918 = vunpack.c.l.b16 %v3406
        %v3919 = vunpack.c.l.b16 %v3407
        %v3920 = vunpack.c.l.b16 %v3408
        %v3921 = vunpack.c.l.b16 %v3409
        %v3922 = vunpack.c.l.b16 %v3410
        %v3923 = vunpack.c.l.b16 %v3411
        %v3924 = vunpack.c.l.b16 %v3412
        %v3925 = vunpack.c.l.b16 %v3413
        %v3926 = vunpack.c.l.b16 %v3414
        %v3927 = vunpack.c.l.b16 %v3415
        %v3928 = vunpack.c.l.b16 %v3416
        %v3929 = vunpack.c.l.b16 %v3417
        %v3930 = vunpack.c.l.b16 %v3418
        %v3931 = vunpack.c.l.b16 %v3419
        %v3932 = vunpack.c.l.b16 %v3420
        %v3933 = vunpack.c.l.b16 %v3421
        %v3934 = vunpack.c.l.b16 %v3422
        %v3935 = vunpack.c.l.b16 %v3423
        %v3936 = vunpack.c.l.b16 %v3424
        %v3937 = vunpack.c.l.b16 %v3425
        %v3938 = vunpack.c.l.b16 %v3426
        %v3939 = vunpack.c.l.b16 %v3427
        %v3940 = vunpack.c.l.b16 %v3428
        %v3941 = vunpack.c.l.b16 %v3429
        %v3942 = vunpack.c.l.b16 %v3430
        %v3943 = vunpack.c.l.b16 %v3431
        %v3944 = vunpack.c.l.b16 %v3432
        %v3945 = vunpack.c.l.b16 %v3433
        %v3946 = vunpack.c.l.b16 %v3434
        %v3947 = vunpack.c.l.b16 %v3435
        %v3948 = vunpack.c.l.b16 %v3436
        %v3949 = vunpack.c.l.b16 %v3437
        %v3950 = vunpack.c.l.b16 %v3438
        %v3951 = vunpack.c.l.b16 %v3439
        %v3952 = vunpack.c.l.b16 %v3440
        %v3953 = vunpack.c.l.b16 %v3441
        %v3954 = vunpack.c.l.b16 %v3442
        %v3955 = vunpack.c.l.b16 %v3443
        %v3956 = vunpack.c.l.b16 %v3444
        %v3957 = vunpack.c.l.b16 %v3445
        %v3958 = vunpack.c.l.b16 %v3446
        %v3959 = vunpack.c.l.b16 %v3447
        %v3960 = vunpack.c.l.b16 %v3448
        %v3961 = vunpack.c.l.b16 %v3449
        %v3962 = vunpack.c.l.b16 %v3450
        %v3963 = vunpack.c.l.b16 %v3451
        %v3964 = vunpack.c.l.b16 %v3452
        %v3965 = vunpack.c.l.b16 %v3453
        %v3966 = vunpack.c.l.b16 %v3454
        %v3967 = vunpack.c.l.b16 %v3455
        %v3968 = vunpack.c.l.b16 %v3456
        %v3969 = vunpack.c.l.b16 %v3457
        %v3970 = vunpack.c.l.b16 %v3458
        %v3971 = vunpack.c.l.b16 %v3459
        %v3972 = vunpack.c.l.b16 %v3460
        %v3973 = vunpack.c.l.b16 %v3461
        %v3974 = vunpack.c.l.b16 %v3462
        %v3975 = vunpack.c.l.b16 %v3463
        %v3976 = vunpack.c.l.b16 %v3464
        %v3977 = vunpack.c.l.b16 %v3465
        %v3978 = vunpack.c.l.b16 %v3466
        %v3979 = vunpack.c.l.b16 %v3467
        %v3980 = vunpack.c.l.b16 %v3468
        %v3981 = vunpack.c.l.b16 %v3469
        %v3982 = vunpack.c.l.b16 %v3470
        %v3983 = vunpack.c.l.b16 %v3471
        %v3984 = vunpack.c.l.b16 %v3472
        %v3985 = vunpack.c.l.b16 %v3473
        %v3986 = vunpack.c.l.b16 %v3474
        %v3987 = vunpack.c.l.b16 %v3475
        %v3988 = vunpack.c.l.b16 %v3476
        %v3989 = vunpack.c.l.b16 %v3477
        %v3990 = vunpack.c.l.b16 %v3478
        %v3991 = vunpack.c.l.b16 %v3479
        %v3992 = vunpack.c.l.b16 %v3480
        %v3993 = vunpack.c.l.b16 %v3481
        %v3994 = vunpack.c.l.b16 %v3482
        %v3995 = vunpack.c.l.b16 %v3483
        %v3996 = vunpack.c.l.b16 %v3484
        %v3997 = vunpack.c.l.b16 %v3485
        %v3998 = vunpack.c.l.b16 %v3486
        %v3999 = vunpack.c.l.b16 %v3487
        %v4000 = vunpack.c.l.b16 %v3488
        %v4001 = vunpack.c.l.b16 %v3489
        %v4002 = vunpack.c.l.b16 %v3490
        %v4003 = vunpack.c.l.b16 %v3491
        %v4004 = vunpack.c.l.b16 %v3492
        %v4005 = vunpack.c.l.b16 %v3493
        %v4006 = vunpack.c.l.b16 %v3494
        %v4007 = vunpack.c.l.b16 %v3495
        %v4008 = vunpack.c.l.b16 %v3496
        %v4009 = vunpack.c.l.b16 %v3497
        %v4010 = vunpack.c.l.b16 %v3498
        %v4011 = vunpack.c.l.b16 %v3499
        %v4012 = vunpack.c.l.b16 %v3500
        %v4013 = vunpack.c.l.b16 %v3501
        %v4014 = vunpack.c.l.b16 %v3502
        %v4015 = vunpack.c.l.b16 %v3503
        %v4016 = vunpack.c.l.b16 %v3504
        %v4017 = vunpack.c.l.b16 %v3505
        %v4018 = vunpack.c.l.b16 %v3506
        %v4019 = vunpack.c.l.b16 %v3507
        %v4020 = vunpack.c.l.b16 %v3508
        %v4021 = vunpack.c.l.b16 %v3509
        %v4022 = vunpack.c.l.b16 %v3510
        %v4023 = vunpack.c.l.b16 %v3511
        %v4024 = vunpack.c.l.b16 %v3512
        %v4025 = vunpack.c.l.b16 %v3513
        %v4026 = vunpack.c.l.b16 %v3514
        %v4027 = vunpack.c.l.b16 %v3515
        %v4028 = vunpack.c.l.b16 %v3516
        %v4029 = vunpack.c.l.b16 %v3517
        %v4030 = vunpack.c.l.b16 %v3518
        %v4031 = vunpack.c.l.b16 %v3519
        %v4032 = vunpack.c.l.b16 %v3520
        %v4033 = vunpack.c.l.b16 %v3521
        %v4034 = vunpack.c.l.b16 %v3522
        %v4035 = vunpack.c.l.b16 %v3523
        %v4036 = vunpack.c.l.b16 %v3524
        %v4037 = vunpack.c.l.b16 %v3525
        %v4038 = vunpack.c.l.b16 %v3526
        %v4039 = vunpack.c.l.b16 %v3527
        %v4040 = vunpack.c.l.b16 %v3528
        %v4041 = vunpack.c.l.b16 %v3529
        %v4042 = vunpack.c.l.b16 %v3530
        %v4043 = vunpack.c.l.b16 %v3531
        %v4044 = vunpack.c.l.b16 %v3532
        %v4045 = vunpack.c.l.b16 %v3533
        %v4046 = vunpack.c.l.b16 %v3534
        %v4047 = vunpack.c.l.b16 %v3535
        %v4048 = vunpack.c.l.b16 %v3536
        %v4049 = vunpack.c.l.b16 %v3537
        %v4050 = vunpack.c.l.b16 %v3538
        %v4051 = vunpack.c.l.b16 %v3539
        %v4052 = vunpack.c.l.b16 %v3540
        %v4053 = vunpack.c.l.b16 %v3541
        %v4054 = vunpack.c.l.b16 %v3542
        %v4055 = vunpack.c.l.b16 %v3543
        %v4056 = vunpack.c.l.b16 %v3544
        %v4057 = vunpack.c.l.b16 %v3545
        %v4058 = vunpack.c.l.b16 %v3546
        %v4059 = vunpack.c.l.b16 %v3547
        %v4060 = vunpack.c.l.b16 %v3548
        %v4061 = vunpack.c.l.b16 %v3549
        %v4062 = vunpack.c.l.b16 %v3550
        %v4063 = vunpack.c.l.b16 %v3551
        %v4064 = vunpack.c.l.b16 %v3552
        %v4065 = vunpack.c.l.b16 %v3553
        %v4066 = vunpack.c.l.b16 %v3554
        %v4067 = vunpack.c.l.b16 %v3555
        %v4068 = vunpack.c.l.b16 %v3556
        %v4069 = vunpack.c.l.b16 %v3557
        %v4070 = vunpack.c.l.b16 %v3558
        %v4071 = vunpack.c.l.b16 %v3559
        %v4072 = vunpack.c.l.b16 %v3560
        %v4073 = vunpack.c.l.b16 %v3561
        %v4074 = vunpack.c.l.b16 %v3562
        %v4075 = vunpack.c.l.b16 %v3563
        %v4076 = vunpack.c.l.b16 %v3564
        %v4077 = vunpack.c.l.b16 %v3565
        %v4078 = vunpack.c.l.b16 %v3566
        %v4079 = vunpack.c.l.b16 %v3567
        %v4080 = vunpack.c.l.b16 %v3568
        %v4081 = vunpack.c.l.b16 %v3569
        %v4082 = vunpack.c.l.b16 %v3570
        %v4083 = vunpack.c.l.b16 %v3571
        %v4084 = vunpack.c.l.b16 %v3572
        %v4085 = vunpack.c.l.b16 %v3573
        %v4086 = vunpack.c.l.b16 %v3574
        %v4087 = vunpack.c.l.b16 %v3575
        %v4088 = vunpack.c.l.b16 %v3576
        %v4089 = vunpack.c.l.b16 %v3577
        %v4090 = vunpack.c.l.b16 %v3578
        %v4091 = vunpack.c.l.b16 %v3579
        %v4092 = vunpack.c.l.b16 %v3580
        %v4093 = vunpack.c.l.b16 %v3581
        %v4094 = vunpack.c.l.b16 %v3582
        %v4095 = vunpack.c.l.b16 %v3583
        %v4096 = vunpack.c.l.b16 %v3584
        %v4097 = vunpack.c.l.b16 %v3585
        %v4098 = vunpack.c.l.b16 %v3586
        %v4099 = vunpack.c.l.b16 %v3587
        %v4100 = vunpack.c.l.b16 %v3588
        %v4101 = vunpack.c.l.b16 %v3589
        %v4102 = vunpack.c.l.b16 %v3590
        %v4103 = vunpack.c.l.b16 %v3591
        %v4104 = vunpack.c.l.b16 %v3592
        %v4105 = vunpack.c.l.b16 %v3593
        %v4106 = vunpack.c.l.b16 %v3594
        %v4107 = vunpack.c.l.b16 %v3595
        %v4108 = vunpack.c.l.b16 %v3596
        %v4109 = vunpack.c.l.b16 %v3597
        %v4110 = vunpack.c.l.b16 %v3598
        %v4111 = vunpack.c.l.b16 %v3599
        %v4112 = vunpack.c.l.b16 %v3600
        %v4113 = vunpack.c.l.b16 %v3601
        %v4114 = vunpack.c.l.b16 %v3602
        %v4115 = vunpack.c.l.b16 %v3603
        %v4116 = vunpack.c.l.b16 %v3604
        %v4117 = vunpack.c.l.b16 %v3605
        %v4118 = vunpack.c.l.b16 %v3606
        %v4119 = vunpack.c.l.b16 %v3607
        %v4120 = vunpack.c.l.b16 %v3608
        %v4121 = vunpack.c.l.b16 %v3609
        %v4122 = vunpack.c.l.b16 %v3610
        %v4123 = vunpack.c.l.b16 %v3611
        %v4124 = vunpack.c.l.b16 %v3612
        %v4125 = vunpack.c.l.b16 %v3613
        %v4126 = vunpack.c.l.b16 %v3614
        %v4127 = vpack.c.b16 %v3872, %v3871
        %v4128 = vpack.c.b16 %v3874, %v3873
        %v4129 = vpack.c.b16 %v3876, %v3875
        %v4130 = vpack.c.b16 %v3878, %v3877
        %v4131 = vpack.c.b16 %v3880, %v3879
        %v4132 = vpack.c.b16 %v3882, %v3881
        %v4133 = vpack.c.b16 %v3884, %v3883
        %v4134 = vpack.c.b16 %v3886, %v3885
        %v4135 = vpack.c.b16 %v3888, %v3887
        %v4136 = vpack.c.b16 %v3890, %v3889
        %v4137 = vpack.c.b16 %v3892, %v3891
        %v4138 = vpack.c.b16 %v3894, %v3893
        %v4139 = vpack.c.b16 %v3896, %v3895
        %v4140 = vpack.c.b16 %v3898, %v3897
        %v4141 = vpack.c.b16 %v3900, %v3899
        %v4142 = vpack.c.b16 %v3902, %v3901
        %v4143 = vpack.c.b16 %v3904, %v3903
        %v4144 = vpack.c.b16 %v3906, %v3905
        %v4145 = vpack.c.b16 %v3908, %v3907
        %v4146 = vpack.c.b16 %v3910, %v3909
        %v4147 = vpack.c.b16 %v3912, %v3911
        %v4148 = vpack.c.b16 %v3914, %v3913
        %v4149 = vpack.c.b16 %v3916, %v3915
        %v4150 = vpack.c.b16 %v3918, %v3917
        %v4151 = vpack.c.b16 %v3920, %v3919
        %v4152 = vpack.c.b16 %v3922, %v3921
        %v4153 = vpack.c.b16 %v3924, %v3923
        %v4154 = vpack.c.b16 %v3926, %v3925
        %v4155 = vpack.c.b16 %v3928, %v3927
        %v4156 = vpack.c.b16 %v3930, %v3929
        %v4157 = vpack.c.b16 %v3932, %v3931
        %v4158 = vpack.c.b16 %v3934, %v3933
        %v4159 = vpack.c.b16 %v3936, %v3935
        %v4160 = vpack.c.b16 %v3938, %v3937
        %v4161 = vpack.c.b16 %v3940, %v3939
        %v4162 = vpack.c.b16 %v3942, %v3941
        %v4163 = vpack.c.b16 %v3944, %v3943
        %v4164 = vpack.c.b16 %v3946, %v3945
        %v4165 = vpack.c.b16 %v3948, %v3947
        %v4166 = vpack.c.b16 %v3950, %v3949
        %v4167 = vpack.c.b16 %v3952, %v3951
        %v4168 = vpack.c.b16 %v3954, %v3953
        %v4169 = vpack.c.b16 %v3956, %v3955
        %v4170 = vpack.c.b16 %v3958, %v3957
        %v4171 = vpack.c.b16 %v3960, %v3959
        %v4172 = vpack.c.b16 %v3962, %v3961
        %v4173 = vpack.c.b16 %v3964, %v3963
        %v4174 = vpack.c.b16 %v3966, %v3965
        %v4175 = vpack.c.b16 %v3968, %v3967
        %v4176 = vpack.c.b16 %v3970, %v3969
        %v4177 = vpack.c.b16 %v3972, %v3971
        %v4178 = vpack.c.b16 %v3974, %v3973
        %v4179 = vpack.c.b16 %v3976, %v3975
        %v4180 = vpack.c.b16 %v3978, %v3977
        %v4181 = vpack.c.b16 %v3980, %v3979
        %v4182 = vpack.c.b16 %v3982, %v3981
        %v4183 = vpack.c.b16 %v3984, %v3983
        %v4184 = vpack.c.b16 %v3986, %v3985
        %v4185 = vpack.c.b16 %v3988, %v3987
        %v4186 = vpack.c.b16 %v3990, %v3989
        %v4187 = vpack.c.b16 %v3992, %v3991
        %v4188 = vpack.c.b16 %v3994, %v3993
        %v4189 = vpack.c.b16 %v3996, %v3995
        %v4190 = vpack.c.b16 %v3998, %v3997
        %v4191 = vpack.c.b16 %v4000, %v3999
        %v4192 = vpack.c.b16 %v4002, %v4001
        %v4193 = vpack.c.b16 %v4004, %v4003
        %v4194 = vpack.c.b16 %v4006, %v4005
        %v4195 = vpack.c.b16 %v4008, %v4007
        %v4196 = vpack.c.b16 %v4010, %v4009
        %v4197 = vpack.c.b16 %v4012, %v4011
        %v4198 = vpack.c.b16 %v4014, %v4013
        %v4199 = vpack.c.b16 %v4016, %v4015
        %v4200 = vpack.c.b16 %v4018, %v4017
        %v4201 = vpack.c.b16 %v4020, %v4019
        %v4202 = vpack.c.b16 %v4022, %v4021
        %v4203 = vpack.c.b16 %v4024, %v4023
        %v4204 = vpack.c.b16 %v4026, %v4025
        %v4205 = vpack.c.b16 %v4028, %v4027
        %v4206 = vpack.c.b16 %v4030, %v4029
        %v4207 = vpack.c.b16 %v4032, %v4031
        %v4208 = vpack.c.b16 %v4034, %v4033
        %v4209 = vpack.c.b16 %v4036, %v4035
        %v4210 = vpack.c.b16 %v4038, %v4037
        %v4211 = vpack.c.b16 %v4040, %v4039
        %v4212 = vpack.c.b16 %v4042, %v4041
        %v4213 = vpack.c.b16 %v4044, %v4043
        %v4214 = vpack.c.b16 %v4046, %v4045
        %v4215 = vpack.c.b16 %v4048, %v4047
        %v4216 = vpack.c.b16 %v4050, %v4049
        %v4217 = vpack.c.b16 %v4052, %v4051
        %v4218 = vpack.c.b16 %v4054, %v4053
        %v4219 = vpack.c.b16 %v4056, %v4055
        %v4220 = vpack.c.b16 %v4058, %v4057
        %v4221 = vpack.c.b16 %v4060, %v4059
        %v4222 = vpack.c.b16 %v4062, %v4061
        %v4223 = vpack.c.b16 %v4064, %v4063
        %v4224 = vpack.c.b16 %v4066, %v4065
        %v4225 = vpack.c.b16 %v4068, %v4067
        %v4226 = vpack.c.b16 %v4070, %v4069
        %v4227 = vpack.c.b16 %v4072, %v4071
        %v4228 = vpack.c.b16 %v4074, %v4073
        %v4229 = vpack.c.b16 %v4076, %v4075
        %v4230 = vpack.c.b16 %v4078, %v4077
        %v4231 = vpack.c.b16 %v4080, %v4079
        %v4232 = vpack.c.b16 %v4082, %v4081
        %v4233 = vpack.c.b16 %v4084, %v4083
        %v4234 = vpack.c.b16 %v4086, %v4085
        %v4235 = vpack.c.b16 %v4088, %v4087
        %v4236 = vpack.c.b16 %v4090, %v4089
        %v4237 = vpack.c.b16 %v4092, %v4091
        %v4238 = vpack.c.b16 %v4094, %v4093
        %v4239 = vpack.c.b16 %v4096, %v4095
        %v4240 = vpack.c.b16 %v4098, %v4097
        %v4241 = vpack.c.b16 %v4100, %v4099
        %v4242 = vpack.c.b16 %v4102, %v4101
        %v4243 = vpack.c.b16 %v4104, %v4103
        %v4244 = vpack.c.b16 %v4106, %v4105
        %v4245 = vpack.c.b16 %v4108, %v4107
        %v4246 = vpack.c.b16 %v4110, %v4109
        %v4247 = vpack.c.b16 %v4112, %v4111
        %v4248 = vpack.c.b16 %v4114, %v4113
        %v4249 = vpack.c.b16 %v4116, %v4115
        %v4250 = vpack.c.b16 %v4118, %v4117
        %v4251 = vpack.c.b16 %v4120, %v4119
        %v4252 = vpack.c.b16 %v4122, %v4121
        %v4253 = vpack.c.b16 %v4124, %v4123
        %v4254 = vpack.c.b16 %v4126, %v4125
        %4383 = vmatprep.subr.bf16.mxu0 0
        %4384 = vmatpush1.bf16.msra.mxu0 %v4134
        %4385 = vmatprep.subr.bf16.mxu0 0
        %4386 = vmatpush1.bf16.msra.mxu0 %v4133
        %4387 = vmatprep.subr.bf16.mxu0 0
        %4388 = vmatpush1.bf16.msra.mxu0 %v4132
        %4389 = vmatprep.subr.bf16.mxu0 0
        %4390 = vmatpush1.bf16.msra.mxu0 %v4131
        %4391 = vmatprep.subr.bf16.mxu0 0
        %4392 = vmatpush1.bf16.msra.mxu0 %v4130
        %4393 = vmatprep.subr.bf16.mxu0 0
        %4394 = vmatpush1.bf16.msra.mxu0 %v4129
        %4395 = vmatprep.subr.bf16.mxu0 0
        %4396 = vmatpush1.bf16.msra.mxu0 %v4128
        %4397 = vmatprep.subr.bf16.mxu0 0
        %4398 = vmatpush1.bf16.msra.mxu0 %v4127
        %4399 = vmatprep.subr.bf16.mxu0 0
        %4400 = vmatpush2.bf16.msra.mxu0 %v4142
        %4401 = vmatprep.subr.bf16.mxu0 0
        %4402 = vmatpush2.bf16.msra.mxu0 %v4141
        %4403 = vmatprep.subr.bf16.mxu0 0
        %4404 = vmatpush2.bf16.msra.mxu0 %v4140
        %4405 = vmatprep.subr.bf16.mxu0 0
        %4406 = vmatpush2.bf16.msra.mxu0 %v4139
        %4407 = vmatprep.subr.bf16.mxu0 0
        %4408 = vmatpush2.bf16.msra.mxu0 %v4138
        %4409 = vmatprep.subr.bf16.mxu0 0
        %4410 = vmatpush2.bf16.msra.mxu0 %v4137
        %4411 = vmatprep.subr.bf16.mxu0 0
        %4412 = vmatpush2.bf16.msra.mxu0 %v4136
        %4413 = vmatprep.subr.bf16.mxu0 0
        %4414 = vmatpush2.bf16.msra.mxu0 %v4135
        %4415 = vmatprep.mubr.bf16.mxu0 %v3344
        %4416 = vmatmul.mubr.bf16.gmra.mxu0 %v3343
        %v4417 = vpop.f32.mrf.mxu0
        %v4418 = vadd.f32 0.0, %v4417
        %v4419 = vpop.f32.mrf.mxu0
        %v4420 = vpop.f32.mrf.mxu0
        %v4421 = vpop.f32.mrf.mxu0
        %4422 = vdwg.mxu0
        %4423 = vmatprep.subr.bf16.mxu0 0
        %4424 = vmatpush1.bf16.msra.mxu0 %v4150
        %4425 = vmatprep.subr.bf16.mxu0 0
        %4426 = vmatpush1.bf16.msra.mxu0 %v4149
        %4427 = vmatprep.subr.bf16.mxu0 0
        %4428 = vmatpush1.bf16.msra.mxu0 %v4148
        %4429 = vmatprep.subr.bf16.mxu0 0
        %4430 = vmatpush1.bf16.msra.mxu0 %v4147
        %4431 = vmatprep.subr.bf16.mxu0 0
        %4432 = vmatpush1.bf16.msra.mxu0 %v4146
        %4433 = vmatprep.subr.bf16.mxu0 0
        %4434 = vmatpush1.bf16.msra.mxu0 %v4145
        %4435 = vmatprep.subr.bf16.mxu0 0
        %4436 = vmatpush1.bf16.msra.mxu0 %v4144
        %4437 = vmatprep.subr.bf16.mxu0 0
        %4438 = vmatpush1.bf16.msra.mxu0 %v4143
        %4439 = vmatprep.subr.bf16.mxu0 0
        %4440 = vmatpush2.bf16.msra.mxu0 %v4158
        %4441 = vmatprep.subr.bf16.mxu0 0
        %4442 = vmatpush2.bf16.msra.mxu0 %v4157
        %4443 = vmatprep.subr.bf16.mxu0 0
        %4444 = vmatpush2.bf16.msra.mxu0 %v4156
        %4445 = vmatprep.subr.bf16.mxu0 0
        %4446 = vmatpush2.bf16.msra.mxu0 %v4155
        %4447 = vmatprep.subr.bf16.mxu0 0
        %4448 = vmatpush2.bf16.msra.mxu0 %v4154
        %4449 = vmatprep.subr.bf16.mxu0 0
        %4450 = vmatpush2.bf16.msra.mxu0 %v4153
        %4451 = vmatprep.subr.bf16.mxu0 0
        %4452 = vmatpush2.bf16.msra.mxu0 %v4152
        %4453 = vmatprep.subr.bf16.mxu0 0
        %4454 = vmatpush2.bf16.msra.mxu0 %v4151
        %4455 = vmatprep.mubr.bf16.mxu0 %v3346
        %4456 = vmatmul.mubr.bf16.gmra.mxu0 %v3345
        %v4457 = vpop.f32.mrf.mxu0
        %v4458 = vadd.f32 %v4418, %v4457
        %v4459 = vpop.f32.mrf.mxu0
        %v4460 = vpop.f32.mrf.mxu0
        %v4461 = vpop.f32.mrf.mxu0
        %4462 = vdwg.mxu0
        %4463 = vmatprep.subr.bf16.mxu0 0
        %4464 = vmatpush1.bf16.msra.mxu0 %v4166
        %4465 = vmatprep.subr.bf16.mxu0 0
        %4466 = vmatpush1.bf16.msra.mxu0 %v4165
        %4467 = vmatprep.subr.bf16.mxu0 0
        %4468 = vmatpush1.bf16.msra.mxu0 %v4164
        %4469 = vmatprep.subr.bf16.mxu0 0
        %4470 = vmatpush1.bf16.msra.mxu0 %v4163
        %4471 = vmatprep.subr.bf16.mxu0 0
        %4472 = vmatpush1.bf16.msra.mxu0 %v4162
        %4473 = vmatprep.subr.bf16.mxu0 0
        %4474 = vmatpush1.bf16.msra.mxu0 %v4161
        %4475 = vmatprep.subr.bf16.mxu0 0
        %4476 = vmatpush1.bf16.msra.mxu0 %v4160
        %4477 = vmatprep.subr.bf16.mxu0 0
        %4478 = vmatpush1.bf16.msra.mxu0 %v4159
        %4479 = vmatprep.subr.bf16.mxu0 0
        %4480 = vmatpush2.bf16.msra.mxu0 %v4174
        %4481 = vmatprep.subr.bf16.mxu0 0
        %4482 = vmatpush2.bf16.msra.mxu0 %v4173
        %4483 = vmatprep.subr.bf16.mxu0 0
        %4484 = vmatpush2.bf16.msra.mxu0 %v4172
        %4485 = vmatprep.subr.bf16.mxu0 0
        %4486 = vmatpush2.bf16.msra.mxu0 %v4171
        %4487 = vmatprep.subr.bf16.mxu0 0
        %4488 = vmatpush2.bf16.msra.mxu0 %v4170
        %4489 = vmatprep.subr.bf16.mxu0 0
        %4490 = vmatpush2.bf16.msra.mxu0 %v4169
        %4491 = vmatprep.subr.bf16.mxu0 0
        %4492 = vmatpush2.bf16.msra.mxu0 %v4168
        %4493 = vmatprep.subr.bf16.mxu0 0
        %4494 = vmatpush2.bf16.msra.mxu0 %v4167
        %4495 = vmatprep.mubr.bf16.mxu0 %v3348
        %4496 = vmatmul.mubr.bf16.gmra.mxu0 %v3347
        %v4497 = vpop.f32.mrf.mxu0
        %v4498 = vadd.f32 %v4458, %v4497
        %v4499 = vpop.f32.mrf.mxu0
        %v4500 = vpop.f32.mrf.mxu0
        %v4501 = vpop.f32.mrf.mxu0
        %4502 = vdwg.mxu0
        %4503 = vmatprep.subr.bf16.mxu0 0
        %4504 = vmatpush1.bf16.msra.mxu0 %v4182
        %4505 = vmatprep.subr.bf16.mxu0 0
        %4506 = vmatpush1.bf16.msra.mxu0 %v4181
        %4507 = vmatprep.subr.bf16.mxu0 0
        %4508 = vmatpush1.bf16.msra.mxu0 %v4180
        %4509 = vmatprep.subr.bf16.mxu0 0
        %4510 = vmatpush1.bf16.msra.mxu0 %v4179
        %4511 = vmatprep.subr.bf16.mxu0 0
        %4512 = vmatpush1.bf16.msra.mxu0 %v4178
        %4513 = vmatprep.subr.bf16.mxu0 0
        %4514 = vmatpush1.bf16.msra.mxu0 %v4177
        %4515 = vmatprep.subr.bf16.mxu0 0
        %4516 = vmatpush1.bf16.msra.mxu0 %v4176
        %4517 = vmatprep.subr.bf16.mxu0 0
        %4518 = vmatpush1.bf16.msra.mxu0 %v4175
        %4519 = vmatprep.subr.bf16.mxu0 0
        %4520 = vmatpush2.bf16.msra.mxu0 %v4190
        %4521 = vmatprep.subr.bf16.mxu0 0
        %4522 = vmatpush2.bf16.msra.mxu0 %v4189
        %4523 = vmatprep.subr.bf16.mxu0 0
        %4524 = vmatpush2.bf16.msra.mxu0 %v4188
        %4525 = vmatprep.subr.bf16.mxu0 0
        %4526 = vmatpush2.bf16.msra.mxu0 %v4187
        %4527 = vmatprep.subr.bf16.mxu0 0
        %4528 = vmatpush2.bf16.msra.mxu0 %v4186
        %4529 = vmatprep.subr.bf16.mxu0 0
        %4530 = vmatpush2.bf16.msra.mxu0 %v4185
        %4531 = vmatprep.subr.bf16.mxu0 0
        %4532 = vmatpush2.bf16.msra.mxu0 %v4184
        %4533 = vmatprep.subr.bf16.mxu0 0
        %4534 = vmatpush2.bf16.msra.mxu0 %v4183
        %4535 = vmatprep.mubr.bf16.mxu0 %v3350
        %4536 = vmatmul.mubr.bf16.gmra.mxu0 %v3349
        %v4537 = vpop.f32.mrf.mxu0
        %v4538 = vadd.f32 %v4498, %v4537
        %v4539 = vpop.f32.mrf.mxu0
        %v4540 = vpop.f32.mrf.mxu0
        %v4541 = vpop.f32.mrf.mxu0
        %4542 = vdwg.mxu0
        %4543 = vmatprep.subr.bf16.mxu0 0
        %4544 = vmatpush1.bf16.msra.mxu0 %v4198
        %4545 = vmatprep.subr.bf16.mxu0 0
        %4546 = vmatpush1.bf16.msra.mxu0 %v4197
        %4547 = vmatprep.subr.bf16.mxu0 0
        %4548 = vmatpush1.bf16.msra.mxu0 %v4196
        %4549 = vmatprep.subr.bf16.mxu0 0
        %4550 = vmatpush1.bf16.msra.mxu0 %v4195
        %4551 = vmatprep.subr.bf16.mxu0 0
        %4552 = vmatpush1.bf16.msra.mxu0 %v4194
        %4553 = vmatprep.subr.bf16.mxu0 0
        %4554 = vmatpush1.bf16.msra.mxu0 %v4193
        %4555 = vmatprep.subr.bf16.mxu0 0
        %4556 = vmatpush1.bf16.msra.mxu0 %v4192
        %4557 = vmatprep.subr.bf16.mxu0 0
        %4558 = vmatpush1.bf16.msra.mxu0 %v4191
        %4559 = vmatprep.subr.bf16.mxu0 0
        %4560 = vmatpush2.bf16.msra.mxu0 %v4206
        %4561 = vmatprep.subr.bf16.mxu0 0
        %4562 = vmatpush2.bf16.msra.mxu0 %v4205
        %4563 = vmatprep.subr.bf16.mxu0 0
        %4564 = vmatpush2.bf16.msra.mxu0 %v4204
        %4565 = vmatprep.subr.bf16.mxu0 0
        %4566 = vmatpush2.bf16.msra.mxu0 %v4203
        %4567 = vmatprep.subr.bf16.mxu0 0
        %4568 = vmatpush2.bf16.msra.mxu0 %v4202
        %4569 = vmatprep.subr.bf16.mxu0 0
        %4570 = vmatpush2.bf16.msra.mxu0 %v4201
        %4571 = vmatprep.subr.bf16.mxu0 0
        %4572 = vmatpush2.bf16.msra.mxu0 %v4200
        %4573 = vmatprep.subr.bf16.mxu0 0
        %4574 = vmatpush2.bf16.msra.mxu0 %v4199
        %4575 = vmatprep.mubr.bf16.mxu0 %v3352
        %4576 = vmatmul.mubr.bf16.gmra.mxu0 %v3351
        %v4577 = vpop.f32.mrf.mxu0
        %v4578 = vadd.f32 %v4538, %v4577
        %v4579 = vpop.f32.mrf.mxu0
        %v4580 = vpop.f32.mrf.mxu0
        %v4581 = vpop.f32.mrf.mxu0
        %4582 = vdwg.mxu0
        %4583 = vmatprep.subr.bf16.mxu0 0
        %4584 = vmatpush1.bf16.msra.mxu0 %v4214
        %4585 = vmatprep.subr.bf16.mxu0 0
        %4586 = vmatpush1.bf16.msra.mxu0 %v4213
        %4587 = vmatprep.subr.bf16.mxu0 0
        %4588 = vmatpush1.bf16.msra.mxu0 %v4212
        %4589 = vmatprep.subr.bf16.mxu0 0
        %4590 = vmatpush1.bf16.msra.mxu0 %v4211
        %4591 = vmatprep.subr.bf16.mxu0 0
        %4592 = vmatpush1.bf16.msra.mxu0 %v4210
        %4593 = vmatprep.subr.bf16.mxu0 0
        %4594 = vmatpush1.bf16.msra.mxu0 %v4209
        %4595 = vmatprep.subr.bf16.mxu0 0
        %4596 = vmatpush1.bf16.msra.mxu0 %v4208
        %4597 = vmatprep.subr.bf16.mxu0 0
        %4598 = vmatpush1.bf16.msra.mxu0 %v4207
        %4599 = vmatprep.subr.bf16.mxu0 0
        %4600 = vmatpush2.bf16.msra.mxu0 %v4222
        %4601 = vmatprep.subr.bf16.mxu0 0
        %4602 = vmatpush2.bf16.msra.mxu0 %v4221
        %4603 = vmatprep.subr.bf16.mxu0 0
        %4604 = vmatpush2.bf16.msra.mxu0 %v4220
        %4605 = vmatprep.subr.bf16.mxu0 0
        %4606 = vmatpush2.bf16.msra.mxu0 %v4219
        %4607 = vmatprep.subr.bf16.mxu0 0
        %4608 = vmatpush2.bf16.msra.mxu0 %v4218
        %4609 = vmatprep.subr.bf16.mxu0 0
        %4610 = vmatpush2.bf16.msra.mxu0 %v4217
        %4611 = vmatprep.subr.bf16.mxu0 0
        %4612 = vmatpush2.bf16.msra.mxu0 %v4216
        %4613 = vmatprep.subr.bf16.mxu0 0
        %4614 = vmatpush2.bf16.msra.mxu0 %v4215
        %4615 = vmatprep.mubr.bf16.mxu0 %v3354
        %4616 = vmatmul.mubr.bf16.gmra.mxu0 %v3353
        %v4617 = vpop.f32.mrf.mxu0
        %v4618 = vadd.f32 %v4578, %v4617
        %v4619 = vpop.f32.mrf.mxu0
        %v4620 = vpop.f32.mrf.mxu0
        %v4621 = vpop.f32.mrf.mxu0
        %4622 = vdwg.mxu0
        %4623 = vmatprep.subr.bf16.mxu0 0
        %4624 = vmatpush1.bf16.msra.mxu0 %v4230
        %4625 = vmatprep.subr.bf16.mxu0 0
        %4626 = vmatpush1.bf16.msra.mxu0 %v4229
        %4627 = vmatprep.subr.bf16.mxu0 0
        %4628 = vmatpush1.bf16.msra.mxu0 %v4228
        %4629 = vmatprep.subr.bf16.mxu0 0
        %4630 = vmatpush1.bf16.msra.mxu0 %v4227
        %4631 = vmatprep.subr.bf16.mxu0 0
        %4632 = vmatpush1.bf16.msra.mxu0 %v4226
        %4633 = vmatprep.subr.bf16.mxu0 0
        %4634 = vmatpush1.bf16.msra.mxu0 %v4225
        %4635 = vmatprep.subr.bf16.mxu0 0
        %4636 = vmatpush1.bf16.msra.mxu0 %v4224
        %4637 = vmatprep.subr.bf16.mxu0 0
        %4638 = vmatpush1.bf16.msra.mxu0 %v4223
        %4639 = vmatprep.subr.bf16.mxu0 0
        %4640 = vmatpush2.bf16.msra.mxu0 %v4238
        %4641 = vmatprep.subr.bf16.mxu0 0
        %4642 = vmatpush2.bf16.msra.mxu0 %v4237
        %4643 = vmatprep.subr.bf16.mxu0 0
        %4644 = vmatpush2.bf16.msra.mxu0 %v4236
        %4645 = vmatprep.subr.bf16.mxu0 0
        %4646 = vmatpush2.bf16.msra.mxu0 %v4235
        %4647 = vmatprep.subr.bf16.mxu0 0
        %4648 = vmatpush2.bf16.msra.mxu0 %v4234
        %4649 = vmatprep.subr.bf16.mxu0 0
        %4650 = vmatpush2.bf16.msra.mxu0 %v4233
        %4651 = vmatprep.subr.bf16.mxu0 0
        %4652 = vmatpush2.bf16.msra.mxu0 %v4232
        %4653 = vmatprep.subr.bf16.mxu0 0
        %4654 = vmatpush2.bf16.msra.mxu0 %v4231
        %4655 = vmatprep.mubr.bf16.mxu0 %v3356
        %4656 = vmatmul.mubr.bf16.gmra.mxu0 %v3355
        %v4657 = vpop.f32.mrf.mxu0
        %v4658 = vadd.f32 %v4618, %v4657
        %v4659 = vpop.f32.mrf.mxu0
        %v4660 = vpop.f32.mrf.mxu0
        %v4661 = vpop.f32.mrf.mxu0
        %4662 = vdwg.mxu0
        %4663 = vmatprep.subr.bf16.mxu0 0
        %4664 = vmatpush1.bf16.msra.mxu0 %v4246
        %4665 = vmatprep.subr.bf16.mxu0 0
        %4666 = vmatpush1.bf16.msra.mxu0 %v4245
        %4667 = vmatprep.subr.bf16.mxu0 0
        %4668 = vmatpush1.bf16.msra.mxu0 %v4244
        %4669 = vmatprep.subr.bf16.mxu0 0
        %4670 = vmatpush1.bf16.msra.mxu0 %v4243
        %4671 = vmatprep.subr.bf16.mxu0 0
        %4672 = vmatpush1.bf16.msra.mxu0 %v4242
        %4673 = vmatprep.subr.bf16.mxu0 0
        %4674 = vmatpush1.bf16.msra.mxu0 %v4241
        %4675 = vmatprep.subr.bf16.mxu0 0
        %4676 = vmatpush1.bf16.msra.mxu0 %v4240
        %4677 = vmatprep.subr.bf16.mxu0 0
        %4678 = vmatpush1.bf16.msra.mxu0 %v4239
        %4679 = vmatprep.subr.bf16.mxu0 0
        %4680 = vmatpush2.bf16.msra.mxu0 %v4254
        %4681 = vmatprep.subr.bf16.mxu0 0
        %4682 = vmatpush2.bf16.msra.mxu0 %v4253
        %4683 = vmatprep.subr.bf16.mxu0 0
        %4684 = vmatpush2.bf16.msra.mxu0 %v4252
        %4685 = vmatprep.subr.bf16.mxu0 0
        %4686 = vmatpush2.bf16.msra.mxu0 %v4251
        %4687 = vmatprep.subr.bf16.mxu0 0
        %4688 = vmatpush2.bf16.msra.mxu0 %v4250
        %4689 = vmatprep.subr.bf16.mxu0 0
        %4690 = vmatpush2.bf16.msra.mxu0 %v4249
        %4691 = vmatprep.subr.bf16.mxu0 0
        %4692 = vmatpush2.bf16.msra.mxu0 %v4248
        %4693 = vmatprep.subr.bf16.mxu0 0
        %4694 = vmatpush2.bf16.msra.mxu0 %v4247
        %4695 = vmatprep.mubr.bf16.mxu0 %v3358
        %4696 = vmatmul.mubr.bf16.gmra.mxu0 %v3357
        %v4697 = vpop.f32.mrf.mxu0
        %v4698 = vadd.f32 %v4658, %v4697
        %v4699 = vpop.f32.mrf.mxu0
        %v4700 = vpop.f32.mrf.mxu0
        %v4701 = vpop.f32.mrf.mxu0
        %4702 = vdwg.mxu0
        %v4703 = vadd.f32 %v2682, %v4698
        %v4704 = vld [vmem:[%s23] sm:$0x1]
        %v4706 = vlaneseq
        %v4707 = vshrl.u32 %v4706, 7
        %v4708 = vsub.s32 0, %v4707
        %v4709 = vrot.slane %v4704, %v4708
        %v4711 = vadd.f32 %v4703, %v4709
        %4712 = vst.msk [vmem:[%s768] sm:$0xff] %vm798, %v4711
        %s4713 = sand.u32 %s570, 1
        %s4714 = scalar_lea.sflag [#allocation3], %s4713
        %s4715 = sand.u32 %s570, 1
        %s4716 = smul.addr %s4715, 8
        %s4717 = scalar_lea.vmem [#allocation2], %s4716
        // Predicated region
        $region117: #{tpu_custom_call.1} parent=115 // pred_check
          %p4718 = pneg %p580
        $region118: #{tpu_custom_call.1} parent=115 // pred_check_branch
          %4720 = sbr.rel (%p4718) target = $region120
        $region119: #{tpu_custom_call.1} parent=115 // pred_region
          %s4722 = ssub.s32 128, 128
          %4723 = vsyncadd %s4714, %s4722
          %s4724 = smul.addr %s38, 128
          %s4725 = scalar_lea.hbm %s24, %s4724
          %s4727 = sshll.u32 %s4717, 4
          %s4728 = int_to_ptr.vmem [resolvable:$true] %s4727
          %4730 = dma.vmem_to_hbm [thread:$0]  %s4728, 128, %s4725, %s4714
        $region120: #{tpu_custom_call.1} parent=115 // pred_fallthru
          _
      $region116: #{tpu_custom_call.1} parent=5 // pred_fallthru
        _
      %p4731 = scmp.le.s32.totalorder 2, %s33
      // Predicated region
      $region121: #{tpu_custom_call.1} parent=5 // pred_check
        %p4732 = pneg %p4731
      $region122: #{tpu_custom_call.1} parent=5 // pred_check_branch
        %4734 = sbr.rel (%p4732) target = $region124
      $region123: #{tpu_custom_call.1} parent=5 // pred_region
        %s4735 = ssub.s32 %s33, 2
        // Predicated region
        $region125: #{tpu_custom_call.1} parent=123 // pred_check
          %p4736 = pneg %p586
        $region126: #{tpu_custom_call.1} parent=123 // pred_check_branch
          %4738 = sbr.rel (%p4736) target = $region128
        $region127: #{tpu_custom_call.1} parent=123 // pred_region
          %s4739 = sand.u32 %s571, 1
          %s4740 = scalar_lea.sflag [#allocation3], %s4739
          %s4741 = sand.u32 %s571, 1
          %s4742 = smul.addr %s4741, 8
          %s4743 = scalar_lea.vmem [#allocation2], %s4742
          %4744 = dma.done %s4740, 128
        $region128: #{tpu_custom_call.1} parent=123 // pred_fallthru
          _
      $region124: #{tpu_custom_call.1} parent=5 // pred_fallthru
        _
    $region6: #{tpu_custom_call.1} parent=1 // loop_footer
      %s37 = sadd.s32 1, %s33
    $region7: #{tpu_custom_call.1} parent=1 // loop_footer_branch
      %32 = sbr.rel target = $region3
    $region8: #{tpu_custom_call.1} parent=1 // loop_exit
      _
    %4745 = vsyncpa [#allocation3], 1
    %s4746 = scalar_lea.sflag [#allocation3], 1
    %4747 = vsyncpa %s4746, 1

</llo_original>
